<compile_context>
chip_gen: v6e
topology: v6e:2x2x1
jax: 0.10.0
libtpu: 0.0.40
codegen_flags: <defaults>
</compile_context>

<pallas_src>
import functools

import jax
import jax.numpy as jnp
from jax.experimental import pallas as pl
from jax.experimental.pallas import tpu as pltpu


def _round_up(x, m):
    return (x + m - 1) // m * m


def _convt_poly_kernel(x_ref, w_ref, b_ref, o_ref, *, phase_offs, M_lane):
    """One grid step == one image, all stride*stride output phases.

    x_ref: (1, C_in, L)            edge-padded (NOT zero-dilated) input, flattened
    w_ref: (T, C_out, C_in)        per-tap weight matrices, phase-major order
    b_ref: (C_out, 1)              bias, f32
    o_ref: (1, P2, C_out, M_lane)  P2 = stride*stride phase planes, lane-dense
    """
    bias = b_ref[...].astype(jnp.float32)                    # (C_out, 1)
    t = 0
    for p, offs in enumerate(phase_offs):
        acc = jnp.zeros((o_ref.shape[2], M_lane), jnp.float32)
        for off in offs:
            # Contiguous lane window of the flattened padded image: no scratch
            # copy, the window feeds the accumulating matmul directly.
            xw = x_ref[0, :, pl.ds(off, M_lane)]              # (C_in, M_lane)
            acc = acc + jnp.dot(w_ref[t], xw,
                                preferred_element_type=jnp.float32)
            t += 1
        o_ref[0, p, :, :] = (acc + bias).astype(o_ref.dtype)  # unmasked lanes


def transposed_upsample(x, weight, bias, *, stride=2, compute_dtype=jnp.bfloat16):
    """ConvTranspose2d semantics: padding=0, output_padding=0, dilation=1.

    x:      (N, C_in, H, W)        NCHW, like PyTorch
    weight: (C_in, C_out, ks, ks)  PyTorch ConvTranspose2d weight layout
    bias:   (C_out,)
    returns (N, C_out, (H-1)*stride+ks, (W-1)*stride+ks)
    """
    N, C_in, H, W = x.shape
    wc_in, C_out, KH, KW = weight.shape
    assert wc_in == C_in
    if stride != 2:
        raise NotImplementedError("polyphase path is specialized for stride=2")
    assert KH % 2 == 1 and KW % 2 == 1, "odd kernel sizes only"

    H_out = (H - 1) * stride + KH
    W_out = (W - 1) * stride + KW

    cdt = compute_dtype if compute_dtype is not None else x.dtype

    Ph, Pw = (KH - 1) // 2, (KW - 1) // 2       # symmetric edge pad (un-dilated!)
    Hp, Wp = H + 2 * Ph, W + 2 * Pw             # padded input extents
    Hm = pl.cdiv(H_out, stride)                 # rows per phase (incl. one junk row)
    M = Hm * Wp                                 # flat phase output (full padded width)
    M_lane = _round_up(M, 128)                  # 128-multiple -> unmasked stores

    # Per-phase taps: for phase r (stride=2), kernel rows kh = r, r+2, ...; the
    # corresponding window offset into the padded image is a = P - (kh - r)//2.
    def taps_1d(r, K):
        return [((K - 1) // 2 - (kh - r) // 2, kh) for kh in range(r, K, 2)]

    phase_offs, w_list = [], []
    for rh in range(stride):
        for rw in range(stride):
            offs = []
            for ah, kh in taps_1d(rh, KH):
                for aw, kw in taps_1d(rw, KW):
                    offs.append(ah * Wp + aw)
                    w_list.append(weight[:, :, kh, kw].T)     # (C_out, C_in)
            phase_offs.append(tuple(offs))
    w_taps = jnp.stack(w_list, axis=0).astype(cdt)            # (T, C_out, C_in)
    T = w_taps.shape[0]                                       # = KH*KW
    b2 = bias.reshape(C_out, 1).astype(jnp.float32)

    # Edge-pad the raw input once, flatten spatially, tail-pad so every tap
    # window read (including junk rows/columns) stays in bounds and aligned.
    max_off = max(max(offs) for offs in phase_offs)
    L = _round_up(max(Hp * Wp, max_off + M_lane), 128)
    x_pad = jnp.pad(x.astype(cdt), ((0, 0), (0, 0), (Ph, Ph), (Pw, Pw)))
    x_flat = jnp.pad(x_pad.reshape(N, C_in, Hp * Wp),
                     ((0, 0), (0, 0), (0, L - Hp * Wp)))

    n_phases = stride * stride
    kernel = functools.partial(_convt_poly_kernel,
                               phase_offs=tuple(phase_offs), M_lane=M_lane)

    grid_spec = pltpu.PrefetchScalarGridSpec(
        num_scalar_prefetch=0,
        grid=(N,),
        in_specs=[
            pl.BlockSpec((1, C_in, L), lambda n: (n, 0, 0)),
            pl.BlockSpec((T, C_out, C_in), lambda n: (0, 0, 0)),
            pl.BlockSpec((C_out, 1), lambda n: (0, 0)),
        ],
        out_specs=pl.BlockSpec((1, n_phases, C_out, M_lane),
                               lambda n: (n, 0, 0, 0)),
    )

    in_isize = jnp.dtype(cdt).itemsize
    out_isize = jnp.dtype(x.dtype).itemsize
    tile_bytes = (2 * C_in * L * in_isize                        # dbl-buffered input
                  + T * C_out * C_in * in_isize + C_out * 4      # weights + bias
                  + 2 * n_phases * C_out * M_lane * out_isize)   # dbl-buffered output
    try:
        vmem_cap = int(pltpu.get_tpu_info().vmem_capacity_bytes)
    except Exception:  # conservative fallback if the query is unavailable
        vmem_cap = 64 * 1024 * 1024
    # Footprint-derived limit with generous headroom, capped per generation
    # (~112 MiB on v5e/v6e, ~56 MiB on v7x) instead of a fixed 32 MiB clamp.
    vmem_limit = int(min(max(8 * tile_bytes, 16 * 1024 * 1024),
                         (vmem_cap * 7) // 8))

    cost = pl.CostEstimate(
        flops=2 * N * T * C_in * C_out * M_lane,
        transcendentals=0,
        bytes_accessed=(N * C_in * L * in_isize
                        + T * C_out * C_in * in_isize + C_out * 4
                        + N * n_phases * C_out * M_lane * out_isize),
    )

    out_ph = pl.pallas_call(
        kernel,
        out_shape=jax.ShapeDtypeStruct((N, n_phases, C_out, M_lane), x.dtype),
        grid_spec=grid_spec,
        compiler_params=pltpu.CompilerParams(
            dimension_semantics=("parallel",),
            vmem_limit_bytes=vmem_limit),
        cost_estimate=cost,
    )(x_flat, w_taps, b2)

    # (N, phases, C_out, M_lane) -> NCHW: drop the lane tail, interleave the
    # 2x2 phases (free reshape/transpose on output-sized data), crop junk.
    ph = out_ph[:, :, :, :M].reshape(N, stride, stride, C_out, Hm, Wp)
    out = jnp.transpose(ph, (0, 3, 4, 1, 5, 2)).reshape(
        N, C_out, stride * Hm, stride * Wp)
    return out[:, :, :H_out, :W_out]


def _ref_conv_transpose(x, weight, bias, stride=2):
    """Pure-JAX reference with exact PyTorch ConvTranspose2d semantics."""
    N, C_in, H, W = x.shape
    _, C_out, KH, KW = weight.shape
    H_out = (H - 1) * stride + KH
    W_out = (W - 1) * stride + KW
    out = jnp.zeros((N, C_out, H_out, W_out), jnp.float32)
    for kh in range(KH):
        for kw in range(KW):
            contrib = jnp.einsum('nchw,cd->ndhw', x, weight[:, :, kh, kw])
            out = out.at[:, :,
                         kh:kh + (H - 1) * stride + 1:stride,
                         kw:kw + (W - 1) * stride + 1:stride].add(contrib)
    return out + bias[None, :, None, None]


if __name__ == "__main__":
    key = jax.random.PRNGKey(0)
    kx, kw_, kb = jax.random.split(key, 3)

    N, C_in, H, W = 2, 4, 16, 16          # small NCHW input
    C_out, ks = 4, 5                      # TransposedUpsample(channels=4, ks=5)

    x = jax.random.normal(kx, (N, C_in, H, W), jnp.float32)
    weight = jax.random.normal(kw_, (C_in, C_out, ks, ks), jnp.float32) * 0.1
    bias = jax.random.normal(kb, (C_out,), jnp.float32) * 0.1

    y_ref = _ref_conv_transpose(x, weight, bias)
    expect_shape = (N, C_out, (H - 1) * 2 + ks, (W - 1) * 2 + ks)

    # f32 compute path: bit-tight check of the polyphase/offset/weight mapping.
    y32 = jax.block_until_ready(
        transposed_upsample(x, weight, bias, compute_dtype=jnp.float32))
    assert y32.shape == expect_shape, y32.shape
    err32 = float(jnp.max(jnp.abs(y32 - y_ref)))
    assert jnp.allclose(y32, y_ref, rtol=1e-4, atol=1e-4), err32

    # Default bf16 compute path (f32 accumulation): looser tolerance expected.
    y16 = jax.block_until_ready(transposed_upsample(x, weight, bias))
    assert y16.shape == expect_shape, y16.shape
    err16 = float(jnp.max(jnp.abs(y16 - y_ref)))
    assert jnp.allclose(y16, y_ref, rtol=3e-2, atol=3e-2), err16

    print("KERNEL_OK")
</pallas_src>

<mosaic_0001>
module attributes {stable_mosaic.version = 11 : i64} {
  func.func @_convt_poly_kernel(%arg0: i32, %arg1: memref<1x4x512xf32, #tpu.memory_space<vmem>>, %arg2: memref<25x4x4xf32, #tpu.memory_space<vmem>>, %arg3: memref<4x1xf32, #tpu.memory_space<vmem>>, %arg4: memref<1x4x4x384xf32, #tpu.memory_space<vmem>>) attributes {dimension_semantics = [#tpu.dimension_semantics<parallel>], iteration_bounds = array<i64: 2>, scalar_prefetch = 0 : i64, scratch_operands = 0 : i64, tpu.core_type = #tpu.core_type<tc>, window_params = [{transform_indices = @transform_0, window_bounds = array<i64: 1, 4, 512>}, {pipeline_mode = #tpu.pipeline_mode<synchronous>, transform_indices = @transform_1, window_bounds = array<i64: 25, 4, 4>}, {pipeline_mode = #tpu.pipeline_mode<synchronous>, transform_indices = @transform_2, window_bounds = array<i64: 4, 1>}, {transform_indices = @transform_3, window_bounds = array<i64: 1, 4, 4, 384>}]} {
    %c0 = arith.constant 0 : index
    %c0_0 = arith.constant 0 : index
    %0 = vector.load %arg3[%c0, %c0_0] : memref<4x1xf32, #tpu.memory_space<vmem>>, vector<4x1xf32>
    %cst = arith.constant 0.000000e+00 : f32
    %1 = vector.broadcast %cst : f32 to vector<4x384xf32>
    %c0_1 = arith.constant 0 : index
    %c0_2 = arith.constant 0 : index
    %c42 = arith.constant 42 : index
    %2 = vector.load %arg1[%c0_1, %c0_2, %c42] : memref<1x4x512xf32, #tpu.memory_space<vmem>>, vector<1x4x384xf32>
    %3 = vector.shape_cast %2 : vector<1x4x384xf32> to vector<4x384xf32>
    %c0_3 = arith.constant 0 : index
    %c0_4 = arith.constant 0 : index
    %c0_5 = arith.constant 0 : index
    %4 = vector.load %arg2[%c0_3, %c0_4, %c0_5] : memref<25x4x4xf32, #tpu.memory_space<vmem>>, vector<1x4x4xf32>
    %5 = vector.shape_cast %4 : vector<1x4x4xf32> to vector<4x4xf32>
    %cst_6 = arith.constant dense<0.000000e+00> : vector<4x384xf32>
    %6 = tpu.matmul %5, %3, %cst_6 {dimension_numbers = #tpu.dot_dimension_numbers<[1], [0], [0], [1], [0, 0, 1, 1], [], []>} : vector<4x4xf32>, vector<4x384xf32>, vector<4x384xf32> -> vector<4x384xf32>
    %7 = arith.addf %1, %6 : vector<4x384xf32>
    %c0_7 = arith.constant 0 : index
    %c0_8 = arith.constant 0 : index
    %c41 = arith.constant 41 : index
    %8 = vector.load %arg1[%c0_7, %c0_8, %c41] : memref<1x4x512xf32, #tpu.memory_space<vmem>>, vector<1x4x384xf32>
    %9 = vector.shape_cast %8 : vector<1x4x384xf32> to vector<4x384xf32>
    %c1 = arith.constant 1 : index
    %c0_9 = arith.constant 0 : index
    %c0_10 = arith.constant 0 : index
    %10 = vector.load %arg2[%c1, %c0_9, %c0_10] : memref<25x4x4xf32, #tpu.memory_space<vmem>>, vector<1x4x4xf32>
    %11 = vector.shape_cast %10 : vector<1x4x4xf32> to vector<4x4xf32>
    %cst_11 = arith.constant dense<0.000000e+00> : vector<4x384xf32>
    %12 = tpu.matmul %11, %9, %cst_11 {dimension_numbers = #tpu.dot_dimension_numbers<[1], [0], [0], [1], [0, 0, 1, 1], [], []>} : vector<4x4xf32>, vector<4x384xf32>, vector<4x384xf32> -> vector<4x384xf32>
    %13 = arith.addf %7, %12 : vector<4x384xf32>
    %c0_12 = arith.constant 0 : index
    %c0_13 = arith.constant 0 : index
    %c40 = arith.constant 40 : index
    %14 = vector.load %arg1[%c0_12, %c0_13, %c40] : memref<1x4x512xf32, #tpu.memory_space<vmem>>, vector<1x4x384xf32>
    %15 = vector.shape_cast %14 : vector<1x4x384xf32> to vector<4x384xf32>
    %c2 = arith.constant 2 : index
    %c0_14 = arith.constant 0 : index
    %c0_15 = arith.constant 0 : index
    %16 = vector.load %arg2[%c2, %c0_14, %c0_15] : memref<25x4x4xf32, #tpu.memory_space<vmem>>, vector<1x4x4xf32>
    %17 = vector.shape_cast %16 : vector<1x4x4xf32> to vector<4x4xf32>
    %cst_16 = arith.constant dense<0.000000e+00> : vector<4x384xf32>
    %18 = tpu.matmul %17, %15, %cst_16 {dimension_numbers = #tpu.dot_dimension_numbers<[1], [0], [0], [1], [0, 0, 1, 1], [], []>} : vector<4x4xf32>, vector<4x384xf32>, vector<4x384xf32> -> vector<4x384xf32>
    %19 = arith.addf %13, %18 : vector<4x384xf32>
    %c0_17 = arith.constant 0 : index
    %c0_18 = arith.constant 0 : index
    %c22 = arith.constant 22 : index
    %20 = vector.load %arg1[%c0_17, %c0_18, %c22] : memref<1x4x512xf32, #tpu.memory_space<vmem>>, vector<1x4x384xf32>
    %21 = vector.shape_cast %20 : vector<1x4x384xf32> to vector<4x384xf32>
    %c3 = arith.constant 3 : index
    %c0_19 = arith.constant 0 : index
    %c0_20 = arith.constant 0 : index
    %22 = vector.load %arg2[%c3, %c0_19, %c0_20] : memref<25x4x4xf32, #tpu.memory_space<vmem>>, vector<1x4x4xf32>
    %23 = vector.shape_cast %22 : vector<1x4x4xf32> to vector<4x4xf32>
    %cst_21 = arith.constant dense<0.000000e+00> : vector<4x384xf32>
    %24 = tpu.matmul %23, %21, %cst_21 {dimension_numbers = #tpu.dot_dimension_numbers<[1], [0], [0], [1], [0, 0, 1, 1], [], []>} : vector<4x4xf32>, vector<4x384xf32>, vector<4x384xf32> -> vector<4x384xf32>
    %25 = arith.addf %19, %24 : vector<4x384xf32>
    %c0_22 = arith.constant 0 : index
    %c0_23 = arith.constant 0 : index
    %c21 = arith.constant 21 : index
    %26 = vector.load %arg1[%c0_22, %c0_23, %c21] : memref<1x4x512xf32, #tpu.memory_space<vmem>>, vector<1x4x384xf32>
    %27 = vector.shape_cast %26 : vector<1x4x384xf32> to vector<4x384xf32>
    %c4 = arith.constant 4 : index
    %c0_24 = arith.constant 0 : index
    %c0_25 = arith.constant 0 : index
    %28 = vector.load %arg2[%c4, %c0_24, %c0_25] : memref<25x4x4xf32, #tpu.memory_space<vmem>>, vector<1x4x4xf32>
    %29 = vector.shape_cast %28 : vector<1x4x4xf32> to vector<4x4xf32>
    %cst_26 = arith.constant dense<0.000000e+00> : vector<4x384xf32>
    %30 = tpu.matmul %29, %27, %cst_26 {dimension_numbers = #tpu.dot_dimension_numbers<[1], [0], [0], [1], [0, 0, 1, 1], [], []>} : vector<4x4xf32>, vector<4x384xf32>, vector<4x384xf32> -> vector<4x384xf32>
    %31 = arith.addf %25, %30 : vector<4x384xf32>
    %c0_27 = arith.constant 0 : index
    %c0_28 = arith.constant 0 : index
    %c20 = arith.constant 20 : index
    %32 = vector.load %arg1[%c0_27, %c0_28, %c20] : memref<1x4x512xf32, #tpu.memory_space<vmem>>, vector<1x4x384xf32>
    %33 = vector.shape_cast %32 : vector<1x4x384xf32> to vector<4x384xf32>
    %c5 = arith.constant 5 : index
    %c0_29 = arith.constant 0 : index
    %c0_30 = arith.constant 0 : index
    %34 = vector.load %arg2[%c5, %c0_29, %c0_30] : memref<25x4x4xf32, #tpu.memory_space<vmem>>, vector<1x4x4xf32>
    %35 = vector.shape_cast %34 : vector<1x4x4xf32> to vector<4x4xf32>
    %cst_31 = arith.constant dense<0.000000e+00> : vector<4x384xf32>
    %36 = tpu.matmul %35, %33, %cst_31 {dimension_numbers = #tpu.dot_dimension_numbers<[1], [0], [0], [1], [0, 0, 1, 1], [], []>} : vector<4x4xf32>, vector<4x384xf32>, vector<4x384xf32> -> vector<4x384xf32>
    %37 = arith.addf %31, %36 : vector<4x384xf32>
    %c0_32 = arith.constant 0 : index
    %c0_33 = arith.constant 0 : index
    %c2_34 = arith.constant 2 : index
    %38 = vector.load %arg1[%c0_32, %c0_33, %c2_34] : memref<1x4x512xf32, #tpu.memory_space<vmem>>, vector<1x4x384xf32>
    %39 = vector.shape_cast %38 : vector<1x4x384xf32> to vector<4x384xf32>
    %c6 = arith.constant 6 : index
    %c0_35 = arith.constant 0 : index
    %c0_36 = arith.constant 0 : index
    %40 = vector.load %arg2[%c6, %c0_35, %c0_36] : memref<25x4x4xf32, #tpu.memory_space<vmem>>, vector<1x4x4xf32>
    %41 = vector.shape_cast %40 : vector<1x4x4xf32> to vector<4x4xf32>
    %cst_37 = arith.constant dense<0.000000e+00> : vector<4x384xf32>
    %42 = tpu.matmul %41, %39, %cst_37 {dimension_numbers = #tpu.dot_dimension_numbers<[1], [0], [0], [1], [0, 0, 1, 1], [], []>} : vector<4x4xf32>, vector<4x384xf32>, vector<4x384xf32> -> vector<4x384xf32>
    %43 = arith.addf %37, %42 : vector<4x384xf32>
    %c0_38 = arith.constant 0 : index
    %c0_39 = arith.constant 0 : index
    %c1_40 = arith.constant 1 : index
    %44 = vector.load %arg1[%c0_38, %c0_39, %c1_40] : memref<1x4x512xf32, #tpu.memory_space<vmem>>, vector<1x4x384xf32>
    %45 = vector.shape_cast %44 : vector<1x4x384xf32> to vector<4x384xf32>
    %c7 = arith.constant 7 : index
    %c0_41 = arith.constant 0 : index
    %c0_42 = arith.constant 0 : index
    %46 = vector.load %arg2[%c7, %c0_41, %c0_42] : memref<25x4x4xf32, #tpu.memory_space<vmem>>, vector<1x4x4xf32>
    %47 = vector.shape_cast %46 : vector<1x4x4xf32> to vector<4x4xf32>
    %cst_43 = arith.constant dense<0.000000e+00> : vector<4x384xf32>
    %48 = tpu.matmul %47, %45, %cst_43 {dimension_numbers = #tpu.dot_dimension_numbers<[1], [0], [0], [1], [0, 0, 1, 1], [], []>} : vector<4x4xf32>, vector<4x384xf32>, vector<4x384xf32> -> vector<4x384xf32>
    %49 = arith.addf %43, %48 : vector<4x384xf32>
    %c0_44 = arith.constant 0 : index
    %c0_45 = arith.constant 0 : index
    %c0_46 = arith.constant 0 : index
    %50 = vector.load %arg1[%c0_44, %c0_45, %c0_46] : memref<1x4x512xf32, #tpu.memory_space<vmem>>, vector<1x4x384xf32>
    %51 = vector.shape_cast %50 : vector<1x4x384xf32> to vector<4x384xf32>
    %c8 = arith.constant 8 : index
    %c0_47 = arith.constant 0 : index
    %c0_48 = arith.constant 0 : index
    %52 = vector.load %arg2[%c8, %c0_47, %c0_48] : memref<25x4x4xf32, #tpu.memory_space<vmem>>, vector<1x4x4xf32>
    %53 = vector.shape_cast %52 : vector<1x4x4xf32> to vector<4x4xf32>
    %cst_49 = arith.constant dense<0.000000e+00> : vector<4x384xf32>
    %54 = tpu.matmul %53, %51, %cst_49 {dimension_numbers = #tpu.dot_dimension_numbers<[1], [0], [0], [1], [0, 0, 1, 1], [], []>} : vector<4x4xf32>, vector<4x384xf32>, vector<4x384xf32> -> vector<4x384xf32>
    %55 = arith.addf %49, %54 : vector<4x384xf32>
    %56 = vector.broadcast %0 : vector<4x1xf32> to vector<4x384xf32>
    %57 = arith.addf %55, %56 : vector<4x384xf32>
    %c0_50 = arith.constant 0 : index
    %c0_51 = arith.constant 0 : index
    %c0_52 = arith.constant 0 : index
    %c0_53 = arith.constant 0 : index
    %58 = vector.load %arg4[%c0_50, %c0_51, %c0_52, %c0_53] : memref<1x4x4x384xf32, #tpu.memory_space<vmem>>, vector<1x1x4x384xf32>
    %59 = vector.shape_cast %58 : vector<1x1x4x384xf32> to vector<4x384xf32>
    %60 = vector.shape_cast %57 : vector<4x384xf32> to vector<1x1x4x384xf32>
    tpu.vector_store %arg4[%c0_50, %c0_51, %c0_52, %c0_53], %60 {strides = array<i32>} : memref<1x4x4x384xf32, #tpu.memory_space<vmem>>, vector<1x1x4x384xf32>,
    %cst_54 = arith.constant 0.000000e+00 : f32
    %61 = vector.broadcast %cst_54 : f32 to vector<4x384xf32>
    %c0_55 = arith.constant 0 : index
    %c0_56 = arith.constant 0 : index
    %c42_57 = arith.constant 42 : index
    %62 = vector.load %arg1[%c0_55, %c0_56, %c42_57] : memref<1x4x512xf32, #tpu.memory_space<vmem>>, vector<1x4x384xf32>
    %63 = vector.shape_cast %62 : vector<1x4x384xf32> to vector<4x384xf32>
    %c9 = arith.constant 9 : index
    %c0_58 = arith.constant 0 : index
    %c0_59 = arith.constant 0 : index
    %64 = vector.load %arg2[%c9, %c0_58, %c0_59] : memref<25x4x4xf32, #tpu.memory_space<vmem>>, vector<1x4x4xf32>
    %65 = vector.shape_cast %64 : vector<1x4x4xf32> to vector<4x4xf32>
    %cst_60 = arith.constant dense<0.000000e+00> : vector<4x384xf32>
    %66 = tpu.matmul %65, %63, %cst_60 {dimension_numbers = #tpu.dot_dimension_numbers<[1], [0], [0], [1], [0, 0, 1, 1], [], []>} : vector<4x4xf32>, vector<4x384xf32>, vector<4x384xf32> -> vector<4x384xf32>
    %67 = arith.addf %61, %66 : vector<4x384xf32>
    %c0_61 = arith.constant 0 : index
    %c0_62 = arith.constant 0 : index
    %c41_63 = arith.constant 41 : index
    %68 = vector.load %arg1[%c0_61, %c0_62, %c41_63] : memref<1x4x512xf32, #tpu.memory_space<vmem>>, vector<1x4x384xf32>
    %69 = vector.shape_cast %68 : vector<1x4x384xf32> to vector<4x384xf32>
    %c10 = arith.constant 10 : index
    %c0_64 = arith.constant 0 : index
    %c0_65 = arith.constant 0 : index
    %70 = vector.load %arg2[%c10, %c0_64, %c0_65] : memref<25x4x4xf32, #tpu.memory_space<vmem>>, vector<1x4x4xf32>
    %71 = vector.shape_cast %70 : vector<1x4x4xf32> to vector<4x4xf32>
    %cst_66 = arith.constant dense<0.000000e+00> : vector<4x384xf32>
    %72 = tpu.matmul %71, %69, %cst_66 {dimension_numbers = #tpu.dot_dimension_numbers<[1], [0], [0], [1], [0, 0, 1, 1], [], []>} : vector<4x4xf32>, vector<4x384xf32>, vector<4x384xf32> -> vector<4x384xf32>
    %73 = arith.addf %67, %72 : vector<4x384xf32>
    %c0_67 = arith.constant 0 : index
    %c0_68 = arith.constant 0 : index
    %c22_69 = arith.constant 22 : index
    %74 = vector.load %arg1[%c0_67, %c0_68, %c22_69] : memref<1x4x512xf32, #tpu.memory_space<vmem>>, vector<1x4x384xf32>
    %75 = vector.shape_cast %74 : vector<1x4x384xf32> to vector<4x384xf32>
    %c11 = arith.constant 11 : index
    %c0_70 = arith.constant 0 : index
    %c0_71 = arith.constant 0 : index
    %76 = vector.load %arg2[%c11, %c0_70, %c0_71] : memref<25x4x4xf32, #tpu.memory_space<vmem>>, vector<1x4x4xf32>
    %77 = vector.shape_cast %76 : vector<1x4x4xf32> to vector<4x4xf32>
    %cst_72 = arith.constant dense<0.000000e+00> : vector<4x384xf32>
    %78 = tpu.matmul %77, %75, %cst_72 {dimension_numbers = #tpu.dot_dimension_numbers<[1], [0], [0], [1], [0, 0, 1, 1], [], []>} : vector<4x4xf32>, vector<4x384xf32>, vector<4x384xf32> -> vector<4x384xf32>
    %79 = arith.addf %73, %78 : vector<4x384xf32>
    %c0_73 = arith.constant 0 : index
    %c0_74 = arith.constant 0 : index
    %c21_75 = arith.constant 21 : index
    %80 = vector.load %arg1[%c0_73, %c0_74, %c21_75] : memref<1x4x512xf32, #tpu.memory_space<vmem>>, vector<1x4x384xf32>
    %81 = vector.shape_cast %80 : vector<1x4x384xf32> to vector<4x384xf32>
    %c12 = arith.constant 12 : index
    %c0_76 = arith.constant 0 : index
    %c0_77 = arith.constant 0 : index
    %82 = vector.load %arg2[%c12, %c0_76, %c0_77] : memref<25x4x4xf32, #tpu.memory_space<vmem>>, vector<1x4x4xf32>
    %83 = vector.shape_cast %82 : vector<1x4x4xf32> to vector<4x4xf32>
    %cst_78 = arith.constant dense<0.000000e+00> : vector<4x384xf32>
    %84 = tpu.matmul %83, %81, %cst_78 {dimension_numbers = #tpu.dot_dimension_numbers<[1], [0], [0], [1], [0, 0, 1, 1], [], []>} : vector<4x4xf32>, vector<4x384xf32>, vector<4x384xf32> -> vector<4x384xf32>
    %85 = arith.addf %79, %84 : vector<4x384xf32>
    %c0_79 = arith.constant 0 : index
    %c0_80 = arith.constant 0 : index
    %c2_81 = arith.constant 2 : index
    %86 = vector.load %arg1[%c0_79, %c0_80, %c2_81] : memref<1x4x512xf32, #tpu.memory_space<vmem>>, vector<1x4x384xf32>
    %87 = vector.shape_cast %86 : vector<1x4x384xf32> to vector<4x384xf32>
    %c13 = arith.constant 13 : index
    %c0_82 = arith.constant 0 : index
    %c0_83 = arith.constant 0 : index
    %88 = vector.load %arg2[%c13, %c0_82, %c0_83] : memref<25x4x4xf32, #tpu.memory_space<vmem>>, vector<1x4x4xf32>
    %89 = vector.shape_cast %88 : vector<1x4x4xf32> to vector<4x4xf32>
    %cst_84 = arith.constant dense<0.000000e+00> : vector<4x384xf32>
    %90 = tpu.matmul %89, %87, %cst_84 {dimension_numbers = #tpu.dot_dimension_numbers<[1], [0], [0], [1], [0, 0, 1, 1], [], []>} : vector<4x4xf32>, vector<4x384xf32>, vector<4x384xf32> -> vector<4x384xf32>
    %91 = arith.addf %85, %90 : vector<4x384xf32>
    %c0_85 = arith.constant 0 : index
    %c0_86 = arith.constant 0 : index
    %c1_87 = arith.constant 1 : index
    %92 = vector.load %arg1[%c0_85, %c0_86, %c1_87] : memref<1x4x512xf32, #tpu.memory_space<vmem>>, vector<1x4x384xf32>
    %93 = vector.shape_cast %92 : vector<1x4x384xf32> to vector<4x384xf32>
    %c14 = arith.constant 14 : index
    %c0_88 = arith.constant 0 : index
    %c0_89 = arith.constant 0 : index
    %94 = vector.load %arg2[%c14, %c0_88, %c0_89] : memref<25x4x4xf32, #tpu.memory_space<vmem>>, vector<1x4x4xf32>
    %95 = vector.shape_cast %94 : vector<1x4x4xf32> to vector<4x4xf32>
    %cst_90 = arith.constant dense<0.000000e+00> : vector<4x384xf32>
    %96 = tpu.matmul %95, %93, %cst_90 {dimension_numbers = #tpu.dot_dimension_numbers<[1], [0], [0], [1], [0, 0, 1, 1], [], []>} : vector<4x4xf32>, vector<4x384xf32>, vector<4x384xf32> -> vector<4x384xf32>
    %97 = arith.addf %91, %96 : vector<4x384xf32>
    %98 = vector.broadcast %0 : vector<4x1xf32> to vector<4x384xf32>
    %99 = arith.addf %97, %98 : vector<4x384xf32>
    %c0_91 = arith.constant 0 : index
    %c1_92 = arith.constant 1 : index
    %c0_93 = arith.constant 0 : index
    %c0_94 = arith.constant 0 : index
    %100 = vector.load %arg4[%c0_91, %c1_92, %c0_93, %c0_94] : memref<1x4x4x384xf32, #tpu.memory_space<vmem>>, vector<1x1x4x384xf32>
    %101 = vector.shape_cast %100 : vector<1x1x4x384xf32> to vector<4x384xf32>
    %102 = vector.shape_cast %99 : vector<4x384xf32> to vector<1x1x4x384xf32>
    tpu.vector_store %arg4[%c0_91, %c1_92, %c0_93, %c0_94], %102 {strides = array<i32>} : memref<1x4x4x384xf32, #tpu.memory_space<vmem>>, vector<1x1x4x384xf32>,
    %cst_95 = arith.constant 0.000000e+00 : f32
    %103 = vector.broadcast %cst_95 : f32 to vector<4x384xf32>
    %c0_96 = arith.constant 0 : index
    %c0_97 = arith.constant 0 : index
    %c42_98 = arith.constant 42 : index
    %104 = vector.load %arg1[%c0_96, %c0_97, %c42_98] : memref<1x4x512xf32, #tpu.memory_space<vmem>>, vector<1x4x384xf32>
    %105 = vector.shape_cast %104 : vector<1x4x384xf32> to vector<4x384xf32>
    %c15 = arith.constant 15 : index
    %c0_99 = arith.constant 0 : index
    %c0_100 = arith.constant 0 : index
    %106 = vector.load %arg2[%c15, %c0_99, %c0_100] : memref<25x4x4xf32, #tpu.memory_space<vmem>>, vector<1x4x4xf32>
    %107 = vector.shape_cast %106 : vector<1x4x4xf32> to vector<4x4xf32>
    %cst_101 = arith.constant dense<0.000000e+00> : vector<4x384xf32>
    %108 = tpu.matmul %107, %105, %cst_101 {dimension_numbers = #tpu.dot_dimension_numbers<[1], [0], [0], [1], [0, 0, 1, 1], [], []>} : vector<4x4xf32>, vector<4x384xf32>, vector<4x384xf32> -> vector<4x384xf32>
    %109 = arith.addf %103, %108 : vector<4x384xf32>
    %c0_102 = arith.constant 0 : index
    %c0_103 = arith.constant 0 : index
    %c41_104 = arith.constant 41 : index
    %110 = vector.load %arg1[%c0_102, %c0_103, %c41_104] : memref<1x4x512xf32, #tpu.memory_space<vmem>>, vector<1x4x384xf32>
    %111 = vector.shape_cast %110 : vector<1x4x384xf32> to vector<4x384xf32>
    %c16 = arith.constant 16 : index
    %c0_105 = arith.constant 0 : index
    %c0_106 = arith.constant 0 : index
    %112 = vector.load %arg2[%c16, %c0_105, %c0_106] : memref<25x4x4xf32, #tpu.memory_space<vmem>>, vector<1x4x4xf32>
    %113 = vector.shape_cast %112 : vector<1x4x4xf32> to vector<4x4xf32>
    %cst_107 = arith.constant dense<0.000000e+00> : vector<4x384xf32>
    %114 = tpu.matmul %113, %111, %cst_107 {dimension_numbers = #tpu.dot_dimension_numbers<[1], [0], [0], [1], [0, 0, 1, 1], [], []>} : vector<4x4xf32>, vector<4x384xf32>, vector<4x384xf32> -> vector<4x384xf32>
    %115 = arith.addf %109, %114 : vector<4x384xf32>
    %c0_108 = arith.constant 0 : index
    %c0_109 = arith.constant 0 : index
    %c40_110 = arith.constant 40 : index
    %116 = vector.load %arg1[%c0_108, %c0_109, %c40_110] : memref<1x4x512xf32, #tpu.memory_space<vmem>>, vector<1x4x384xf32>
    %117 = vector.shape_cast %116 : vector<1x4x384xf32> to vector<4x384xf32>
    %c17 = arith.constant 17 : index
    %c0_111 = arith.constant 0 : index
    %c0_112 = arith.constant 0 : index
    %118 = vector.load %arg2[%c17, %c0_111, %c0_112] : memref<25x4x4xf32, #tpu.memory_space<vmem>>, vector<1x4x4xf32>
    %119 = vector.shape_cast %118 : vector<1x4x4xf32> to vector<4x4xf32>
    %cst_113 = arith.constant dense<0.000000e+00> : vector<4x384xf32>
    %120 = tpu.matmul %119, %117, %cst_113 {dimension_numbers = #tpu.dot_dimension_numbers<[1], [0], [0], [1], [0, 0, 1, 1], [], []>} : vector<4x4xf32>, vector<4x384xf32>, vector<4x384xf32> -> vector<4x384xf32>
    %121 = arith.addf %115, %120 : vector<4x384xf32>
    %c0_114 = arith.constant 0 : index
    %c0_115 = arith.constant 0 : index
    %c22_116 = arith.constant 22 : index
    %122 = vector.load %arg1[%c0_114, %c0_115, %c22_116] : memref<1x4x512xf32, #tpu.memory_space<vmem>>, vector<1x4x384xf32>
    %123 = vector.shape_cast %122 : vector<1x4x384xf32> to vector<4x384xf32>
    %c18 = arith.constant 18 : index
    %c0_117 = arith.constant 0 : index
    %c0_118 = arith.constant 0 : index
    %124 = vector.load %arg2[%c18, %c0_117, %c0_118] : memref<25x4x4xf32, #tpu.memory_space<vmem>>, vector<1x4x4xf32>
    %125 = vector.shape_cast %124 : vector<1x4x4xf32> to vector<4x4xf32>
    %cst_119 = arith.constant dense<0.000000e+00> : vector<4x384xf32>
    %126 = tpu.matmul %125, %123, %cst_119 {dimension_numbers = #tpu.dot_dimension_numbers<[1], [0], [0], [1], [0, 0, 1, 1], [], []>} : vector<4x4xf32>, vector<4x384xf32>, vector<4x384xf32> -> vector<4x384xf32>
    %127 = arith.addf %121, %126 : vector<4x384xf32>
    %c0_120 = arith.constant 0 : index
    %c0_121 = arith.constant 0 : index
    %c21_122 = arith.constant 21 : index
    %128 = vector.load %arg1[%c0_120, %c0_121, %c21_122] : memref<1x4x512xf32, #tpu.memory_space<vmem>>, vector<1x4x384xf32>
    %129 = vector.shape_cast %128 : vector<1x4x384xf32> to vector<4x384xf32>
    %c19 = arith.constant 19 : index
    %c0_123 = arith.constant 0 : index
    %c0_124 = arith.constant 0 : index
    %130 = vector.load %arg2[%c19, %c0_123, %c0_124] : memref<25x4x4xf32, #tpu.memory_space<vmem>>, vector<1x4x4xf32>
    %131 = vector.shape_cast %130 : vector<1x4x4xf32> to vector<4x4xf32>
    %cst_125 = arith.constant dense<0.000000e+00> : vector<4x384xf32>
    %132 = tpu.matmul %131, %129, %cst_125 {dimension_numbers = #tpu.dot_dimension_numbers<[1], [0], [0], [1], [0, 0, 1, 1], [], []>} : vector<4x4xf32>, vector<4x384xf32>, vector<4x384xf32> -> vector<4x384xf32>
    %133 = arith.addf %127, %132 : vector<4x384xf32>
    %c0_126 = arith.constant 0 : index
    %c0_127 = arith.constant 0 : index
    %c20_128 = arith.constant 20 : index
    %134 = vector.load %arg1[%c0_126, %c0_127, %c20_128] : memref<1x4x512xf32, #tpu.memory_space<vmem>>, vector<1x4x384xf32>
    %135 = vector.shape_cast %134 : vector<1x4x384xf32> to vector<4x384xf32>
    %c20_129 = arith.constant 20 : index
    %c0_130 = arith.constant 0 : index
    %c0_131 = arith.constant 0 : index
    %136 = vector.load %arg2[%c20_129, %c0_130, %c0_131] : memref<25x4x4xf32, #tpu.memory_space<vmem>>, vector<1x4x4xf32>
    %137 = vector.shape_cast %136 : vector<1x4x4xf32> to vector<4x4xf32>
    %cst_132 = arith.constant dense<0.000000e+00> : vector<4x384xf32>
    %138 = tpu.matmul %137, %135, %cst_132 {dimension_numbers = #tpu.dot_dimension_numbers<[1], [0], [0], [1], [0, 0, 1, 1], [], []>} : vector<4x4xf32>, vector<4x384xf32>, vector<4x384xf32> -> vector<4x384xf32>
    %139 = arith.addf %133, %138 : vector<4x384xf32>
    %140 = vector.broadcast %0 : vector<4x1xf32> to vector<4x384xf32>
    %141 = arith.addf %139, %140 : vector<4x384xf32>
    %c0_133 = arith.constant 0 : index
    %c2_134 = arith.constant 2 : index
    %c0_135 = arith.constant 0 : index
    %c0_136 = arith.constant 0 : index
    %142 = vector.load %arg4[%c0_133, %c2_134, %c0_135, %c0_136] : memref<1x4x4x384xf32, #tpu.memory_space<vmem>>, vector<1x1x4x384xf32>
    %143 = vector.shape_cast %142 : vector<1x1x4x384xf32> to vector<4x384xf32>
    %144 = vector.shape_cast %141 : vector<4x384xf32> to vector<1x1x4x384xf32>
    tpu.vector_store %arg4[%c0_133, %c2_134, %c0_135, %c0_136], %144 {strides = array<i32>} : memref<1x4x4x384xf32, #tpu.memory_space<vmem>>, vector<1x1x4x384xf32>,
    %cst_137 = arith.constant 0.000000e+00 : f32
    %145 = vector.broadcast %cst_137 : f32 to vector<4x384xf32>
    %c0_138 = arith.constant 0 : index
    %c0_139 = arith.constant 0 : index
    %c42_140 = arith.constant 42 : index
    %146 = vector.load %arg1[%c0_138, %c0_139, %c42_140] : memref<1x4x512xf32, #tpu.memory_space<vmem>>, vector<1x4x384xf32>
    %147 = vector.shape_cast %146 : vector<1x4x384xf32> to vector<4x384xf32>
    %c21_141 = arith.constant 21 : index
    %c0_142 = arith.constant 0 : index
    %c0_143 = arith.constant 0 : index
    %148 = vector.load %arg2[%c21_141, %c0_142, %c0_143] : memref<25x4x4xf32, #tpu.memory_space<vmem>>, vector<1x4x4xf32>
    %149 = vector.shape_cast %148 : vector<1x4x4xf32> to vector<4x4xf32>
    %cst_144 = arith.constant dense<0.000000e+00> : vector<4x384xf32>
    %150 = tpu.matmul %149, %147, %cst_144 {dimension_numbers = #tpu.dot_dimension_numbers<[1], [0], [0], [1], [0, 0, 1, 1], [], []>} : vector<4x4xf32>, vector<4x384xf32>, vector<4x384xf32> -> vector<4x384xf32>
    %151 = arith.addf %145, %150 : vector<4x384xf32>
    %c0_145 = arith.constant 0 : index
    %c0_146 = arith.constant 0 : index
    %c41_147 = arith.constant 41 : index
    %152 = vector.load %arg1[%c0_145, %c0_146, %c41_147] : memref<1x4x512xf32, #tpu.memory_space<vmem>>, vector<1x4x384xf32>
    %153 = vector.shape_cast %152 : vector<1x4x384xf32> to vector<4x384xf32>
    %c22_148 = arith.constant 22 : index
    %c0_149 = arith.constant 0 : index
    %c0_150 = arith.constant 0 : index
    %154 = vector.load %arg2[%c22_148, %c0_149, %c0_150] : memref<25x4x4xf32, #tpu.memory_space<vmem>>, vector<1x4x4xf32>
    %155 = vector.shape_cast %154 : vector<1x4x4xf32> to vector<4x4xf32>
    %cst_151 = arith.constant dense<0.000000e+00> : vector<4x384xf32>
    %156 = tpu.matmul %155, %153, %cst_151 {dimension_numbers = #tpu.dot_dimension_numbers<[1], [0], [0], [1], [0, 0, 1, 1], [], []>} : vector<4x4xf32>, vector<4x384xf32>, vector<4x384xf32> -> vector<4x384xf32>
    %157 = arith.addf %151, %156 : vector<4x384xf32>
    %c0_152 = arith.constant 0 : index
    %c0_153 = arith.constant 0 : index
    %c22_154 = arith.constant 22 : index
    %158 = vector.load %arg1[%c0_152, %c0_153, %c22_154] : memref<1x4x512xf32, #tpu.memory_space<vmem>>, vector<1x4x384xf32>
    %159 = vector.shape_cast %158 : vector<1x4x384xf32> to vector<4x384xf32>
    %c23 = arith.constant 23 : index
    %c0_155 = arith.constant 0 : index
    %c0_156 = arith.constant 0 : index
    %160 = vector.load %arg2[%c23, %c0_155, %c0_156] : memref<25x4x4xf32, #tpu.memory_space<vmem>>, vector<1x4x4xf32>
    %161 = vector.shape_cast %160 : vector<1x4x4xf32> to vector<4x4xf32>
    %cst_157 = arith.constant dense<0.000000e+00> : vector<4x384xf32>
    %162 = tpu.matmul %161, %159, %cst_157 {dimension_numbers = #tpu.dot_dimension_numbers<[1], [0], [0], [1], [0, 0, 1, 1], [], []>} : vector<4x4xf32>, vector<4x384xf32>, vector<4x384xf32> -> vector<4x384xf32>
    %163 = arith.addf %157, %162 : vector<4x384xf32>
    %c0_158 = arith.constant 0 : index
    %c0_159 = arith.constant 0 : index
    %c21_160 = arith.constant 21 : index
    %164 = vector.load %arg1[%c0_158, %c0_159, %c21_160] : memref<1x4x512xf32, #tpu.memory_space<vmem>>, vector<1x4x384xf32>
    %165 = vector.shape_cast %164 : vector<1x4x384xf32> to vector<4x384xf32>
    %c24 = arith.constant 24 : index
    %c0_161 = arith.constant 0 : index
    %c0_162 = arith.constant 0 : index
    %166 = vector.load %arg2[%c24, %c0_161, %c0_162] : memref<25x4x4xf32, #tpu.memory_space<vmem>>, vector<1x4x4xf32>
    %167 = vector.shape_cast %166 : vector<1x4x4xf32> to vector<4x4xf32>
    %cst_163 = arith.constant dense<0.000000e+00> : vector<4x384xf32>
    %168 = tpu.matmul %167, %165, %cst_163 {dimension_numbers = #tpu.dot_dimension_numbers<[1], [0], [0], [1], [0, 0, 1, 1], [], []>} : vector<4x4xf32>, vector<4x384xf32>, vector<4x384xf32> -> vector<4x384xf32>
    %169 = arith.addf %163, %168 : vector<4x384xf32>
    %170 = vector.broadcast %0 : vector<4x1xf32> to vector<4x384xf32>
    %171 = arith.addf %169, %170 : vector<4x384xf32>
    %c0_164 = arith.constant 0 : index
    %c3_165 = arith.constant 3 : index
    %c0_166 = arith.constant 0 : index
    %c0_167 = arith.constant 0 : index
    %172 = vector.load %arg4[%c0_164, %c3_165, %c0_166, %c0_167] : memref<1x4x4x384xf32, #tpu.memory_space<vmem>>, vector<1x1x4x384xf32>
    %173 = vector.shape_cast %172 : vector<1x1x4x384xf32> to vector<4x384xf32>
    %174 = vector.shape_cast %171 : vector<4x384xf32> to vector<1x1x4x384xf32>
    tpu.vector_store %arg4[%c0_164, %c3_165, %c0_166, %c0_167], %174 {strides = array<i32>} : memref<1x4x4x384xf32, #tpu.memory_space<vmem>>, vector<1x1x4x384xf32>,
    return
  }
  func.func @transform_0(%arg0: i32) -> (i32, i32, i32) {
    %c0_i32 = arith.constant 0 : i32
    %c0_i32_0 = arith.constant 0 : i32
    %c0_i32_1 = arith.constant 0 : i32
    return %arg0, %c0_i32, %c0_i32_0 : i32, i32, i32
  }
  func.func @transform_1(%arg0: i32) -> (i32, i32, i32) {
    %c0_i32 = arith.constant 0 : i32
    %c0_i32_0 = arith.constant 0 : i32
    %c0_i32_1 = arith.constant 0 : i32
    %c0_i32_2 = arith.constant 0 : i32
    return %c0_i32, %c0_i32_0, %c0_i32_1 : i32, i32, i32
  }
  func.func @transform_2(%arg0: i32) -> (i32, i32) {
    %c0_i32 = arith.constant 0 : i32
    %c0_i32_0 = arith.constant 0 : i32
    %c0_i32_1 = arith.constant 0 : i32
    return %c0_i32, %c0_i32_0 : i32, i32
  }
  func.func @transform_3(%arg0: i32) -> (i32, i32, i32, i32) {
    %c0_i32 = arith.constant 0 : i32
    %c0_i32_0 = arith.constant 0 : i32
    %c0_i32_1 = arith.constant 0 : i32
    %c0_i32_2 = arith.constant 0 : i32
    return %arg0, %c0_i32, %c0_i32_0, %c0_i32_1 : i32, i32, i32, i32
  }
}

</mosaic_0001>

<llo_original>
// kernel: tpu_custom_call.1
$region0: #{tpu_custom_call.1}
  #allocation0 [shape = 'u32[]', space=smem, size = 0x4, offset = 0x4, fixed_abs, tag = 'smem constant byte address 0x4 - core index']
  #allocation1 [shape = 'u32[144,128]{1,0:T(1,128)}', space=vmem, size = 0x12000, scoped, tag = 'internal scratch']
  %s0 = inlined_call_operand.vmem [shape: f32[2,4,512], index: 0, kind: input, shape index: {}]
  %s1 = inlined_call_operand.vmem [shape: f32[25,4,4], index: 1, kind: input, shape index: {}]
  %s2 = inlined_call_operand.vmem [shape: f32[4,1], index: 2, kind: input, shape index: {}]
  %s3 = inlined_call_operand.hbm [shape: f32[2,4,4,384], index: 3, kind: output, shape index: {}]
  %s4 = sld [smem:[#allocation0]]
  $region45: #{tpu_custom_call.1} parent=0
    _
  %s6 = ssub.s32 1, %s4
  %s7 = scalar_select 0, %s6, %s4
  $region1: #{tpu_custom_call.1} parent=0
    #allocation2 [shape = 'u8[49152]{0}', space=vmem, size = 0xc000, scoped, tag = 'output window, operand 0']
    #allocation3 [shape = 's32[2]{0}', space=sflag, size = 0x8, scoped, tag = 'scoped memory for tpu_custom_call.1']
    %8 = vsyncpa [#allocation3], 0
    %s9 = scalar_lea.sflag [#allocation3], 1
    %10 = vsyncpa %s9, 0
    loop: start=0, step=1, limit=4
    $region2: #{tpu_custom_call.1} parent=1 // loop_pre_header
      _
    $region3: #{tpu_custom_call.1} parent=1 // loop_header
      %s12 = sphi 0, %s16
      %p13 = scmp.ge.s32.totalorder %s12, 4
      %s22 = sphi 0, %s24
      %s25 = sphi 0, %s22
      %s26 = sphi 0, %s25
      %s42 = sphi 0, %s26
      %s46 = sphi 0, %s46
      %s48 = sphi 0, %s46
      %s49 = sphi 0, %s48
      %s63 = sphi 0, %s49
      %s67 = sphi 0, %s67
      %s69 = sphi 0, %s67
      %s70 = sphi 0, %s69
      %s84 = sphi 0, %s70
      %s90 = sphi 0, %s92
      %s93 = sphi 0, %s90
      %s94 = sphi 0, %s93
      %s110 = sphi 0, %s94
    $region4: #{tpu_custom_call.1} parent=1 // loop_header_branch
      %15 = sbr.rel (%p13) target = $region8
    $region5: #{tpu_custom_call.1} parent=1 // loop_body
      %s17 = ssub.s32 %s12, 1
      %s18 = ssub.s32 %s12, 2
      %s19 = sadd.s32 %s12, 1
      %s20 = ssub.s32 %s12, %s19
      %p21 = scmp.eq.s32.totalorder %s20, 0
      %s23 = sadd.s32 %s22, 1
      %s24 = scalar_select %p21, %s22, %s23
      %p27 = pneg %p21
      %p28 = scmp.eq.s32.totalorder %s12, 1
      %p29 = por %p27, %p28
      %p30 = scmp.ne.s32.totalorder %s22, %s25
      %p31 = scmp.eq.s32.totalorder %s12, 0
      %p32 = por %p30, %p31
      %p33 = scmp.ne.s32.totalorder %s22, %s25
      %p34 = scmp.eq.s32.totalorder %s17, 1
      %p35 = por %p33, %p34
      %p36 = scmp.ne.s32.totalorder %s25, %s26
      %p37 = scmp.eq.s32.totalorder %s17, 0
      %p38 = por %p36, %p37
      %p39 = scmp.ne.s32.totalorder %s25, %s26
      %p40 = scmp.eq.s32.totalorder %s18, 1
      %p41 = por %p39, %p40
      %p43 = scmp.ne.s32.totalorder %s26, %s42
      %p44 = scmp.eq.s32.totalorder %s18, 0
      %p45 = por %p43, %p44
      %s47 = sadd.s32 %s46, 1
      %p50 = scmp.eq.s32.totalorder %s12, 1
      %p51 = scmp.ne.s32.totalorder %s46, %s48
      %p52 = scmp.eq.s32.totalorder %s12, 0
      %p53 = por %p51, %p52
      %p54 = scmp.ne.s32.totalorder %s46, %s48
      %p55 = scmp.eq.s32.totalorder %s17, 1
      %p56 = por %p54, %p55
      %p57 = scmp.ne.s32.totalorder %s48, %s49
      %p58 = scmp.eq.s32.totalorder %s17, 0
      %p59 = por %p57, %p58
      %p60 = scmp.ne.s32.totalorder %s48, %s49
      %p61 = scmp.eq.s32.totalorder %s18, 1
      %p62 = por %p60, %p61
      %p64 = scmp.ne.s32.totalorder %s49, %s63
      %p65 = scmp.eq.s32.totalorder %s18, 0
      %p66 = por %p64, %p65
      %s68 = sadd.s32 %s67, 1
      %p71 = scmp.eq.s32.totalorder %s12, 1
      %p72 = scmp.ne.s32.totalorder %s67, %s69
      %p73 = scmp.eq.s32.totalorder %s12, 0
      %p74 = por %p72, %p73
      %p75 = scmp.ne.s32.totalorder %s67, %s69
      %p76 = scmp.eq.s32.totalorder %s17, 1
      %p77 = por %p75, %p76
      %p78 = scmp.ne.s32.totalorder %s69, %s70
      %p79 = scmp.eq.s32.totalorder %s17, 0
      %p80 = por %p78, %p79
      %p81 = scmp.ne.s32.totalorder %s69, %s70
      %p82 = scmp.eq.s32.totalorder %s18, 1
      %p83 = por %p81, %p82
      %p85 = scmp.ne.s32.totalorder %s70, %s84
      %p86 = scmp.eq.s32.totalorder %s18, 0
      %p87 = por %p85, %p86
      %s88 = ssub.s32 %s12, %s19
      %p89 = scmp.eq.s32.totalorder %s88, 0
      %s91 = sadd.s32 %s90, 1
      %s92 = scalar_select %p89, %s90, %s91
      %p95 = pneg %p89
      %p96 = scmp.eq.s32.totalorder %s12, 1
      %p97 = por %p95, %p96
      %p98 = scmp.ne.s32.totalorder %s90, %s93
      %p99 = scmp.eq.s32.totalorder %s12, 0
      %p100 = por %p98, %p99
      %p101 = scmp.ne.s32.totalorder %s90, %s93
      %p102 = scmp.eq.s32.totalorder %s17, 1
      %p103 = por %p101, %p102
      %p104 = scmp.ne.s32.totalorder %s93, %s94
      %p105 = scmp.eq.s32.totalorder %s17, 0
      %p106 = por %p104, %p105
      %p107 = scmp.ne.s32.totalorder %s93, %s94
      %p108 = scmp.eq.s32.totalorder %s18, 1
      %p109 = por %p107, %p108
      %p111 = scmp.ne.s32.totalorder %s94, %s110
      %p112 = scmp.eq.s32.totalorder %s18, 0
      %p113 = por %p111, %p112
      %p114 = scmp.le.s32.totalorder 1, %s12
      %p115 = scmp.lt.s32.totalorder %s12, 3
      %p116 = pnand %p114, %p115
      %p117 = pneg %p116
      // Predicated region
      $region9: #{tpu_custom_call.1} parent=5 // pred_check
        _
      $region10: #{tpu_custom_call.1} parent=5 // pred_check_branch
        %119 = sbr.rel (%p116) target = $region12
      $region11: #{tpu_custom_call.1} parent=5 // pred_region
        %s120 = ssub.s32 %s12, 1
        // Predicated region
        $region13: #{tpu_custom_call.1} parent=11 // pred_check
          %p121 = pneg %p59
        $region14: #{tpu_custom_call.1} parent=11 // pred_check_branch
          %123 = sbr.rel (%p121) target = $region16
        $region15: #{tpu_custom_call.1} parent=11 // pred_region
          _
        $region16: #{tpu_custom_call.1} parent=11 // pred_fallthru
          _
        // Predicated region
        $region17: #{tpu_custom_call.1} parent=11 // pred_check
          %p124 = pneg %p80
        $region18: #{tpu_custom_call.1} parent=11 // pred_check_branch
          %126 = sbr.rel (%p124) target = $region20
        $region19: #{tpu_custom_call.1} parent=11 // pred_region
          _
        $region20: #{tpu_custom_call.1} parent=11 // pred_fallthru
          _
      $region12: #{tpu_custom_call.1} parent=5 // pred_fallthru
        _
      %p127 = scmp.lt.s32.totalorder %s12, 2
      // Predicated region
      $region21: #{tpu_custom_call.1} parent=5 // pred_check
        %p128 = pneg %p127
      $region22: #{tpu_custom_call.1} parent=5 // pred_check_branch
        %130 = sbr.rel (%p128) target = $region24
      $region23: #{tpu_custom_call.1} parent=5 // pred_region
        // Predicated region
        $region25: #{tpu_custom_call.1} parent=23 // pred_check
          %p131 = pneg %p32
        $region26: #{tpu_custom_call.1} parent=23 // pred_check_branch
          %133 = sbr.rel (%p131) target = $region28
        $region27: #{tpu_custom_call.1} parent=23 // pred_region
          %p134 = scmp.lt.s32.totalorder %s12, 1
          %s135 = scalar_select %p134, %s12, 1
          %s136 = smul.addr %s135, 4
          %s137 = smul.addr %s136, 4
          %s138 = scalar_lea.vmem %s0, %s137
        $region28: #{tpu_custom_call.1} parent=23 // pred_fallthru
          _
      $region24: #{tpu_custom_call.1} parent=5 // pred_fallthru
        _
      %p139 = scmp.le.s32.totalorder 1, %s12
      %p140 = scmp.lt.s32.totalorder %s12, 3
      %p141 = pnand %p139, %p140
      %p142 = pneg %p141
      // Predicated region
      $region29: #{tpu_custom_call.1} parent=5 // pred_check
        _
      $region30: #{tpu_custom_call.1} parent=5 // pred_check_branch
        %144 = sbr.rel (%p141) target = $region32
      $region31: #{tpu_custom_call.1} parent=5 // pred_region
        %s145 = ssub.s32 %s12, 1
        %p146 = scmp.lt.s32.totalorder %s17, 1
        %s147 = scalar_select %p146, %s17, 1
        %s148 = smul.addr %s147, 4
        %s149 = smul.addr %s148, 4
        %s150 = scalar_lea.vmem %s0, %s149
        %p151 = pneg %p38
        %p152 = pneg %p35
        %p153 = pneg %p59
        %p154 = pneg %p56
        %p155 = pneg %p80
        %p156 = pneg %p77
        %p157 = pneg %p106
        %p158 = pneg %p103
        %s159 = sand.u32 %s93, 1
        %s160 = scalar_lea.sflag [#allocation3], %s159
        %s161 = sand.u32 %s93, 1
        %s162 = smul.addr %s161, 48
        %s163 = scalar_lea.vmem [#allocation2], %s162
        %p164 = scmp.lt.s32.totalorder %s17, 1
        %s165 = scalar_select %p164, %s17, 1
        %s166 = smul.addr %s165, 4
        %s167 = smul.addr %s166, 4
        %s168 = scalar_lea.vmem %s0, %s167
        %v169 = vld [vmem:[%s2] sm:$0xf]
        %v170 = vld [vmem:[%s168] sm:$0xff]
        %v171 = vld [vmem:[%s168 + $0x8] sm:$0xff]
        %v172 = vld [vmem:[%s1] sm:$0xf]
        %s173 = scalar_lea.vmem %s1, 4
        %v174 = vld [vmem:[%s173] sm:$0xf]
        %v177 = vcombine.high %v170, %v170
        %v178 = vcombine.high %v171, %v171
        %179 = vrot.lane.b32.xlu0 %v170, 87
        %v180 = vpop.permute.xlu0 %179
        %181 = vrot.lane.b32.xlu0 %v177, 87
        %v182 = vpop.permute.xlu0 %181
        %183 = vrot.lane.b32.xlu0 %v171, 87
        %v184 = vpop.permute.xlu0 %183
        %185 = vrot.lane.b32.xlu0 %v178, 87
        %v186 = vpop.permute.xlu0 %185
        %vm187 = vcmask 711680
        %v188 = vsel %vm187, %v180, %v182
        %v189 = vsel %vm187, %v182, %v184
        %v190 = vsel %vm187, %v184, %v186
        %vm191 = vcmask 31744
        %v193 = vsel %vm191, %v174, 0
        %vm195 = vcmask 1043456
        %v196 = vsel %vm195, %v188, 0
        %v198 = vsel %vm195, %v189, 0
        %v200 = vsel %vm195, %v190, 0
        %202 = vmatprep.subr.mxu0 0.0
        %203 = vmatpush1.msra.mxu0 0.0
        %204 = vmatprep.subr.mxu0 0.0
        %205 = vmatpush1.msra.mxu0 0.0
        %206 = vmatprep.subr.mxu0 0.0
        %207 = vmatpush1.msra.mxu0 0.0
        %208 = vmatprep.subr.mxu0 0.0
        %209 = vmatpush1.msra.mxu0 0.0
        %210 = vmatprep.subr.mxu0 0.0
        %211 = vmatpush1.msra.mxu0 0.0
        %212 = vmatprep.subr.mxu0 0.0
        %213 = vmatpush1.msra.mxu0 0.0
        %214 = vmatprep.subr.mxu0 0.0
        %215 = vmatpush1.msra.mxu0 0.0
        %216 = vmatprep.subr.mxu0 0.0
        %217 = vmatpush1.msra.mxu0 0.0
        %218 = vmatprep.subr.mxu0 0.0
        %219 = vmatpush1.msra.mxu0 0.0
        %220 = vmatprep.subr.mxu0 0.0
        %221 = vmatpush1.msra.mxu0 0.0
        %222 = vmatprep.subr.mxu0 0.0
        %223 = vmatpush1.msra.mxu0 0.0
        %224 = vmatprep.subr.mxu0 0.0
        %225 = vmatpush1.msra.mxu0 0.0
        %226 = vmatprep.subr.mxu0 0.0
        %227 = vmatpush1.msra.mxu0 0.0
        %228 = vmatprep.subr.mxu0 0.0
        %229 = vmatpush1.msra.mxu0 0.0
        %230 = vmatprep.subr.mxu0 0.0
        %231 = vmatpush1.msra.mxu0 0.0
        %232 = vmatprep.subr.mxu0 %v198
        %233 = vmatpush1.msra.mxu0 %v196
        %234 = vmatprep.subr.mxu0 0.0
        %235 = vmatpush2.msra.mxu0 0.0
        %236 = vmatprep.subr.mxu0 0.0
        %237 = vmatpush2.msra.mxu0 0.0
        %238 = vmatprep.subr.mxu0 0.0
        %239 = vmatpush2.msra.mxu0 0.0
        %240 = vmatprep.subr.mxu0 0.0
        %241 = vmatpush2.msra.mxu0 0.0
        %242 = vmatprep.subr.mxu0 0.0
        %243 = vmatpush2.msra.mxu0 0.0
        %244 = vmatprep.subr.mxu0 0.0
        %245 = vmatpush2.msra.mxu0 0.0
        %246 = vmatprep.subr.mxu0 0.0
        %247 = vmatpush2.msra.mxu0 0.0
        %248 = vmatprep.subr.mxu0 0.0
        %249 = vmatpush2.msra.mxu0 0.0
        %250 = vmatprep.subr.mxu0 0.0
        %251 = vmatpush2.msra.mxu0 0.0
        %252 = vmatprep.subr.mxu0 0.0
        %253 = vmatpush2.msra.mxu0 0.0
        %254 = vmatprep.subr.mxu0 0.0
        %255 = vmatpush2.msra.mxu0 0.0
        %256 = vmatprep.subr.mxu0 0.0
        %257 = vmatpush2.msra.mxu0 0.0
        %258 = vmatprep.subr.mxu0 0.0
        %259 = vmatpush2.msra.mxu0 0.0
        %260 = vmatprep.subr.mxu0 0.0
        %261 = vmatpush2.msra.mxu0 0.0
        %262 = vmatprep.subr.mxu0 0.0
        %263 = vmatpush2.msra.mxu0 0.0
        %264 = vmatprep.subr.mxu0 0.0
        %265 = vmatpush2.msra.mxu0 0.0
        %266 = vmatprep.mubr.f32.mxu0 0.0
        %267 = vmatmul.mubr.f32.gmra.mxu0 %v193
        %v268 = vpop.f32.mrf.mxu0
        %v269 = vadd.f32 0.0, %v268
        %v270 = vpop.f32.mrf.mxu0
        %v271 = vadd.f32 0.0, %v270
        %272 = vdwg.mxu0
        %273 = vmatprep.subr.mxu0 0.0
        %274 = vmatpush1.msra.mxu0 0.0
        %275 = vmatprep.subr.mxu0 0.0
        %276 = vmatpush1.msra.mxu0 0.0
        %277 = vmatprep.subr.mxu0 0.0
        %278 = vmatpush1.msra.mxu0 0.0
        %279 = vmatprep.subr.mxu0 0.0
        %280 = vmatpush1.msra.mxu0 0.0
        %281 = vmatprep.subr.mxu0 0.0
        %282 = vmatpush1.msra.mxu0 0.0
        %283 = vmatprep.subr.mxu0 0.0
        %284 = vmatpush1.msra.mxu0 0.0
        %285 = vmatprep.subr.mxu0 0.0
        %286 = vmatpush1.msra.mxu0 0.0
        %287 = vmatprep.subr.mxu0 0.0
        %288 = vmatpush1.msra.mxu0 0.0
        %289 = vmatprep.subr.mxu0 0.0
        %290 = vmatpush1.msra.mxu0 0.0
        %291 = vmatprep.subr.mxu0 0.0
        %292 = vmatpush1.msra.mxu0 0.0
        %293 = vmatprep.subr.mxu0 0.0
        %294 = vmatpush1.msra.mxu0 0.0
        %295 = vmatprep.subr.mxu0 0.0
        %296 = vmatpush1.msra.mxu0 0.0
        %297 = vmatprep.subr.mxu0 0.0
        %298 = vmatpush1.msra.mxu0 0.0
        %299 = vmatprep.subr.mxu0 0.0
        %300 = vmatpush1.msra.mxu0 0.0
        %301 = vmatprep.subr.mxu0 0.0
        %302 = vmatpush1.msra.mxu0 0.0
        %303 = vmatprep.subr.mxu0 0.0
        %304 = vmatpush1.msra.mxu0 %v200
        %305 = vmatprep.subr.mxu0 0.0
        %306 = vmatpush2.msra.mxu0 0.0
        %307 = vmatprep.subr.mxu0 0.0
        %308 = vmatpush2.msra.mxu0 0.0
        %309 = vmatprep.subr.mxu0 0.0
        %310 = vmatpush2.msra.mxu0 0.0
        %311 = vmatprep.subr.mxu0 0.0
        %312 = vmatpush2.msra.mxu0 0.0
        %313 = vmatprep.subr.mxu0 0.0
        %314 = vmatpush2.msra.mxu0 0.0
        %315 = vmatprep.subr.mxu0 0.0
        %316 = vmatpush2.msra.mxu0 0.0
        %317 = vmatprep.subr.mxu0 0.0
        %318 = vmatpush2.msra.mxu0 0.0
        %319 = vmatprep.subr.mxu0 0.0
        %320 = vmatpush2.msra.mxu0 0.0
        %321 = vmatprep.subr.mxu0 0.0
        %322 = vmatpush2.msra.mxu0 0.0
        %323 = vmatprep.subr.mxu0 0.0
        %324 = vmatpush2.msra.mxu0 0.0
        %325 = vmatprep.subr.mxu0 0.0
        %326 = vmatpush2.msra.mxu0 0.0
        %327 = vmatprep.subr.mxu0 0.0
        %328 = vmatpush2.msra.mxu0 0.0
        %329 = vmatprep.subr.mxu0 0.0
        %330 = vmatpush2.msra.mxu0 0.0
        %331 = vmatprep.subr.mxu0 0.0
        %332 = vmatpush2.msra.mxu0 0.0
        %333 = vmatprep.subr.mxu0 0.0
        %334 = vmatpush2.msra.mxu0 0.0
        %335 = vmatprep.subr.mxu0 0.0
        %336 = vmatpush2.msra.mxu0 0.0
        %337 = vmatprep.mubr.f32.mxu0 0.0
        %338 = vmatmul.mubr.f32.gmra.mxu0 %v193
        %v339 = vpop.f32.mrf.mxu0
        %v340 = vadd.f32 0.0, %v339
        %v341 = vpop.f32.mrf.mxu0
        %342 = vdwg.mxu0
        %343 = vrot.lane.b32.xlu0 %v170, 86
        %v344 = vpop.permute.xlu0 %343
        %345 = vrot.lane.b32.xlu0 %v177, 86
        %v346 = vpop.permute.xlu0 %345
        %347 = vrot.lane.b32.xlu0 %v171, 86
        %v348 = vpop.permute.xlu0 %347
        %349 = vrot.lane.b32.xlu0 %v178, 86
        %v350 = vpop.permute.xlu0 %349
        %vm351 = vcmask 703488
        %v352 = vsel %vm351, %v344, %v346
        %v353 = vsel %vm351, %v346, %v348
        %v354 = vsel %vm351, %v348, %v350
        %v356 = vsel %vm191, %v172, 0
        %v358 = vsel %vm195, %v352, 0
        %v360 = vsel %vm195, %v353, 0
        %v362 = vsel %vm195, %v354, 0
        %364 = vmatprep.subr.mxu0 0.0
        %365 = vmatpush1.msra.mxu0 0.0
        %366 = vmatprep.subr.mxu0 0.0
        %367 = vmatpush1.msra.mxu0 0.0
        %368 = vmatprep.subr.mxu0 0.0
        %369 = vmatpush1.msra.mxu0 0.0
        %370 = vmatprep.subr.mxu0 0.0
        %371 = vmatpush1.msra.mxu0 0.0
        %372 = vmatprep.subr.mxu0 0.0
        %373 = vmatpush1.msra.mxu0 0.0
        %374 = vmatprep.subr.mxu0 0.0
        %375 = vmatpush1.msra.mxu0 0.0
        %376 = vmatprep.subr.mxu0 0.0
        %377 = vmatpush1.msra.mxu0 0.0
        %378 = vmatprep.subr.mxu0 0.0
        %379 = vmatpush1.msra.mxu0 0.0
        %380 = vmatprep.subr.mxu0 0.0
        %381 = vmatpush1.msra.mxu0 0.0
        %382 = vmatprep.subr.mxu0 0.0
        %383 = vmatpush1.msra.mxu0 0.0
        %384 = vmatprep.subr.mxu0 0.0
        %385 = vmatpush1.msra.mxu0 0.0
        %386 = vmatprep.subr.mxu0 0.0
        %387 = vmatpush1.msra.mxu0 0.0
        %388 = vmatprep.subr.mxu0 0.0
        %389 = vmatpush1.msra.mxu0 0.0
        %390 = vmatprep.subr.mxu0 0.0
        %391 = vmatpush1.msra.mxu0 0.0
        %392 = vmatprep.subr.mxu0 0.0
        %393 = vmatpush1.msra.mxu0 0.0
        %394 = vmatprep.subr.mxu0 %v360
        %395 = vmatpush1.msra.mxu0 %v358
        %396 = vmatprep.subr.mxu0 0.0
        %397 = vmatpush2.msra.mxu0 0.0
        %398 = vmatprep.subr.mxu0 0.0
        %399 = vmatpush2.msra.mxu0 0.0
        %400 = vmatprep.subr.mxu0 0.0
        %401 = vmatpush2.msra.mxu0 0.0
        %402 = vmatprep.subr.mxu0 0.0
        %403 = vmatpush2.msra.mxu0 0.0
        %404 = vmatprep.subr.mxu0 0.0
        %405 = vmatpush2.msra.mxu0 0.0
        %406 = vmatprep.subr.mxu0 0.0
        %407 = vmatpush2.msra.mxu0 0.0
        %408 = vmatprep.subr.mxu0 0.0
        %409 = vmatpush2.msra.mxu0 0.0
        %410 = vmatprep.subr.mxu0 0.0
        %411 = vmatpush2.msra.mxu0 0.0
        %412 = vmatprep.subr.mxu0 0.0
        %413 = vmatpush2.msra.mxu0 0.0
        %414 = vmatprep.subr.mxu0 0.0
        %415 = vmatpush2.msra.mxu0 0.0
        %416 = vmatprep.subr.mxu0 0.0
        %417 = vmatpush2.msra.mxu0 0.0
        %418 = vmatprep.subr.mxu0 0.0
        %419 = vmatpush2.msra.mxu0 0.0
        %420 = vmatprep.subr.mxu0 0.0
        %421 = vmatpush2.msra.mxu0 0.0
        %422 = vmatprep.subr.mxu0 0.0
        %423 = vmatpush2.msra.mxu0 0.0
        %424 = vmatprep.subr.mxu0 0.0
        %425 = vmatpush2.msra.mxu0 0.0
        %426 = vmatprep.subr.mxu0 0.0
        %427 = vmatpush2.msra.mxu0 0.0
        %428 = vmatprep.mubr.f32.mxu0 0.0
        %429 = vmatmul.mubr.f32.gmra.mxu0 %v356
        %v430 = vpop.f32.mrf.mxu0
        %v431 = vadd.f32 %v269, %v430
        %v432 = vpop.f32.mrf.mxu0
        %v433 = vadd.f32 %v271, %v432
        %434 = vdwg.mxu0
        %435 = vmatprep.subr.mxu0 0.0
        %436 = vmatpush1.msra.mxu0 0.0
        %437 = vmatprep.subr.mxu0 0.0
        %438 = vmatpush1.msra.mxu0 0.0
        %439 = vmatprep.subr.mxu0 0.0
        %440 = vmatpush1.msra.mxu0 0.0
        %441 = vmatprep.subr.mxu0 0.0
        %442 = vmatpush1.msra.mxu0 0.0
        %443 = vmatprep.subr.mxu0 0.0
        %444 = vmatpush1.msra.mxu0 0.0
        %445 = vmatprep.subr.mxu0 0.0
        %446 = vmatpush1.msra.mxu0 0.0
        %447 = vmatprep.subr.mxu0 0.0
        %448 = vmatpush1.msra.mxu0 0.0
        %449 = vmatprep.subr.mxu0 0.0
        %450 = vmatpush1.msra.mxu0 0.0
        %451 = vmatprep.subr.mxu0 0.0
        %452 = vmatpush1.msra.mxu0 0.0
        %453 = vmatprep.subr.mxu0 0.0
        %454 = vmatpush1.msra.mxu0 0.0
        %455 = vmatprep.subr.mxu0 0.0
        %456 = vmatpush1.msra.mxu0 0.0
        %457 = vmatprep.subr.mxu0 0.0
        %458 = vmatpush1.msra.mxu0 0.0
        %459 = vmatprep.subr.mxu0 0.0
        %460 = vmatpush1.msra.mxu0 0.0
        %461 = vmatprep.subr.mxu0 0.0
        %462 = vmatpush1.msra.mxu0 0.0
        %463 = vmatprep.subr.mxu0 0.0
        %464 = vmatpush1.msra.mxu0 0.0
        %465 = vmatprep.subr.mxu0 0.0
        %466 = vmatpush1.msra.mxu0 %v362
        %467 = vmatprep.subr.mxu0 0.0
        %468 = vmatpush2.msra.mxu0 0.0
        %469 = vmatprep.subr.mxu0 0.0
        %470 = vmatpush2.msra.mxu0 0.0
        %471 = vmatprep.subr.mxu0 0.0
        %472 = vmatpush2.msra.mxu0 0.0
        %473 = vmatprep.subr.mxu0 0.0
        %474 = vmatpush2.msra.mxu0 0.0
        %475 = vmatprep.subr.mxu0 0.0
        %476 = vmatpush2.msra.mxu0 0.0
        %477 = vmatprep.subr.mxu0 0.0
        %478 = vmatpush2.msra.mxu0 0.0
        %479 = vmatprep.subr.mxu0 0.0
        %480 = vmatpush2.msra.mxu0 0.0
        %481 = vmatprep.subr.mxu0 0.0
        %482 = vmatpush2.msra.mxu0 0.0
        %483 = vmatprep.subr.mxu0 0.0
        %484 = vmatpush2.msra.mxu0 0.0
        %485 = vmatprep.subr.mxu0 0.0
        %486 = vmatpush2.msra.mxu0 0.0
        %487 = vmatprep.subr.mxu0 0.0
        %488 = vmatpush2.msra.mxu0 0.0
        %489 = vmatprep.subr.mxu0 0.0
        %490 = vmatpush2.msra.mxu0 0.0
        %491 = vmatprep.subr.mxu0 0.0
        %492 = vmatpush2.msra.mxu0 0.0
        %493 = vmatprep.subr.mxu0 0.0
        %494 = vmatpush2.msra.mxu0 0.0
        %495 = vmatprep.subr.mxu0 0.0
        %496 = vmatpush2.msra.mxu0 0.0
        %497 = vmatprep.subr.mxu0 0.0
        %498 = vmatpush2.msra.mxu0 0.0
        %499 = vmatprep.mubr.f32.mxu0 0.0
        %500 = vmatmul.mubr.f32.gmra.mxu0 %v356
        %v501 = vpop.f32.mrf.mxu0
        %v502 = vadd.f32 %v340, %v501
        %v503 = vpop.f32.mrf.mxu0
        %504 = vdwg.mxu0
        %v505 = vld [vmem:[%s168] sm:$0xff]
        %v506 = vld [vmem:[%s168 + $0x8] sm:$0xff]
        %s507 = scalar_lea.vmem %s1, 8
        %v508 = vld [vmem:[%s507] sm:$0xf]
        %v511 = vcombine.high %v505, %v505
        %v512 = vcombine.high %v506, %v506
        %513 = vrot.lane.b32.xlu0 %v505, 88
        %v514 = vpop.permute.xlu0 %513
        %515 = vrot.lane.b32.xlu0 %v511, 88
        %v516 = vpop.permute.xlu0 %515
        %517 = vrot.lane.b32.xlu0 %v506, 88
        %v518 = vpop.permute.xlu0 %517
        %519 = vrot.lane.b32.xlu0 %v512, 88
        %v520 = vpop.permute.xlu0 %519
        %vm521 = vcmask 719872
        %v522 = vsel %vm521, %v514, %v516
        %v523 = vsel %vm521, %v516, %v518
        %v524 = vsel %vm521, %v518, %v520
        %v526 = vsel %vm191, %v508, 0
        %v528 = vsel %vm195, %v522, 0
        %v530 = vsel %vm195, %v523, 0
        %v532 = vsel %vm195, %v524, 0
        %534 = vmatprep.subr.mxu0 0.0
        %535 = vmatpush1.msra.mxu0 0.0
        %536 = vmatprep.subr.mxu0 0.0
        %537 = vmatpush1.msra.mxu0 0.0
        %538 = vmatprep.subr.mxu0 0.0
        %539 = vmatpush1.msra.mxu0 0.0
        %540 = vmatprep.subr.mxu0 0.0
        %541 = vmatpush1.msra.mxu0 0.0
        %542 = vmatprep.subr.mxu0 0.0
        %543 = vmatpush1.msra.mxu0 0.0
        %544 = vmatprep.subr.mxu0 0.0
        %545 = vmatpush1.msra.mxu0 0.0
        %546 = vmatprep.subr.mxu0 0.0
        %547 = vmatpush1.msra.mxu0 0.0
        %548 = vmatprep.subr.mxu0 0.0
        %549 = vmatpush1.msra.mxu0 0.0
        %550 = vmatprep.subr.mxu0 0.0
        %551 = vmatpush1.msra.mxu0 0.0
        %552 = vmatprep.subr.mxu0 0.0
        %553 = vmatpush1.msra.mxu0 0.0
        %554 = vmatprep.subr.mxu0 0.0
        %555 = vmatpush1.msra.mxu0 0.0
        %556 = vmatprep.subr.mxu0 0.0
        %557 = vmatpush1.msra.mxu0 0.0
        %558 = vmatprep.subr.mxu0 0.0
        %559 = vmatpush1.msra.mxu0 0.0
        %560 = vmatprep.subr.mxu0 0.0
        %561 = vmatpush1.msra.mxu0 0.0
        %562 = vmatprep.subr.mxu0 0.0
        %563 = vmatpush1.msra.mxu0 0.0
        %564 = vmatprep.subr.mxu0 %v530
        %565 = vmatpush1.msra.mxu0 %v528
        %566 = vmatprep.subr.mxu0 0.0
        %567 = vmatpush2.msra.mxu0 0.0
        %568 = vmatprep.subr.mxu0 0.0
        %569 = vmatpush2.msra.mxu0 0.0
        %570 = vmatprep.subr.mxu0 0.0
        %571 = vmatpush2.msra.mxu0 0.0
        %572 = vmatprep.subr.mxu0 0.0
        %573 = vmatpush2.msra.mxu0 0.0
        %574 = vmatprep.subr.mxu0 0.0
        %575 = vmatpush2.msra.mxu0 0.0
        %576 = vmatprep.subr.mxu0 0.0
        %577 = vmatpush2.msra.mxu0 0.0
        %578 = vmatprep.subr.mxu0 0.0
        %579 = vmatpush2.msra.mxu0 0.0
        %580 = vmatprep.subr.mxu0 0.0
        %581 = vmatpush2.msra.mxu0 0.0
        %582 = vmatprep.subr.mxu0 0.0
        %583 = vmatpush2.msra.mxu0 0.0
        %584 = vmatprep.subr.mxu0 0.0
        %585 = vmatpush2.msra.mxu0 0.0
        %586 = vmatprep.subr.mxu0 0.0
        %587 = vmatpush2.msra.mxu0 0.0
        %588 = vmatprep.subr.mxu0 0.0
        %589 = vmatpush2.msra.mxu0 0.0
        %590 = vmatprep.subr.mxu0 0.0
        %591 = vmatpush2.msra.mxu0 0.0
        %592 = vmatprep.subr.mxu0 0.0
        %593 = vmatpush2.msra.mxu0 0.0
        %594 = vmatprep.subr.mxu0 0.0
        %595 = vmatpush2.msra.mxu0 0.0
        %596 = vmatprep.subr.mxu0 0.0
        %597 = vmatpush2.msra.mxu0 0.0
        %598 = vmatprep.mubr.f32.mxu0 0.0
        %599 = vmatmul.mubr.f32.gmra.mxu0 %v526
        %v600 = vpop.f32.mrf.mxu0
        %v601 = vadd.f32 0.0, %v600
        %v602 = vpop.f32.mrf.mxu0
        %v603 = vadd.f32 0.0, %v602
        %604 = vdwg.mxu0
        %605 = vmatprep.subr.mxu0 0.0
        %606 = vmatpush1.msra.mxu0 0.0
        %607 = vmatprep.subr.mxu0 0.0
        %608 = vmatpush1.msra.mxu0 0.0
        %609 = vmatprep.subr.mxu0 0.0
        %610 = vmatpush1.msra.mxu0 0.0
        %611 = vmatprep.subr.mxu0 0.0
        %612 = vmatpush1.msra.mxu0 0.0
        %613 = vmatprep.subr.mxu0 0.0
        %614 = vmatpush1.msra.mxu0 0.0
        %615 = vmatprep.subr.mxu0 0.0
        %616 = vmatpush1.msra.mxu0 0.0
        %617 = vmatprep.subr.mxu0 0.0
        %618 = vmatpush1.msra.mxu0 0.0
        %619 = vmatprep.subr.mxu0 0.0
        %620 = vmatpush1.msra.mxu0 0.0
        %621 = vmatprep.subr.mxu0 0.0
        %622 = vmatpush1.msra.mxu0 0.0
        %623 = vmatprep.subr.mxu0 0.0
        %624 = vmatpush1.msra.mxu0 0.0
        %625 = vmatprep.subr.mxu0 0.0
        %626 = vmatpush1.msra.mxu0 0.0
        %627 = vmatprep.subr.mxu0 0.0
        %628 = vmatpush1.msra.mxu0 0.0
        %629 = vmatprep.subr.mxu0 0.0
        %630 = vmatpush1.msra.mxu0 0.0
        %631 = vmatprep.subr.mxu0 0.0
        %632 = vmatpush1.msra.mxu0 0.0
        %633 = vmatprep.subr.mxu0 0.0
        %634 = vmatpush1.msra.mxu0 0.0
        %635 = vmatprep.subr.mxu0 0.0
        %636 = vmatpush1.msra.mxu0 %v532
        %637 = vmatprep.subr.mxu0 0.0
        %638 = vmatpush2.msra.mxu0 0.0
        %639 = vmatprep.subr.mxu0 0.0
        %640 = vmatpush2.msra.mxu0 0.0
        %641 = vmatprep.subr.mxu0 0.0
        %642 = vmatpush2.msra.mxu0 0.0
        %643 = vmatprep.subr.mxu0 0.0
        %644 = vmatpush2.msra.mxu0 0.0
        %645 = vmatprep.subr.mxu0 0.0
        %646 = vmatpush2.msra.mxu0 0.0
        %647 = vmatprep.subr.mxu0 0.0
        %648 = vmatpush2.msra.mxu0 0.0
        %649 = vmatprep.subr.mxu0 0.0
        %650 = vmatpush2.msra.mxu0 0.0
        %651 = vmatprep.subr.mxu0 0.0
        %652 = vmatpush2.msra.mxu0 0.0
        %653 = vmatprep.subr.mxu0 0.0
        %654 = vmatpush2.msra.mxu0 0.0
        %655 = vmatprep.subr.mxu0 0.0
        %656 = vmatpush2.msra.mxu0 0.0
        %657 = vmatprep.subr.mxu0 0.0
        %658 = vmatpush2.msra.mxu0 0.0
        %659 = vmatprep.subr.mxu0 0.0
        %660 = vmatpush2.msra.mxu0 0.0
        %661 = vmatprep.subr.mxu0 0.0
        %662 = vmatpush2.msra.mxu0 0.0
        %663 = vmatprep.subr.mxu0 0.0
        %664 = vmatpush2.msra.mxu0 0.0
        %665 = vmatprep.subr.mxu0 0.0
        %666 = vmatpush2.msra.mxu0 0.0
        %667 = vmatprep.subr.mxu0 0.0
        %668 = vmatpush2.msra.mxu0 0.0
        %669 = vmatprep.mubr.f32.mxu0 0.0
        %670 = vmatmul.mubr.f32.gmra.mxu0 %v526
        %v671 = vpop.f32.mrf.mxu0
        %v672 = vadd.f32 0.0, %v671
        %v673 = vpop.f32.mrf.mxu0
        %674 = vdwg.mxu0
        %v675 = vadd.f32 %v431, %v601
        %v676 = vadd.f32 %v433, %v603
        %v677 = vadd.f32 %v502, %v672
        %v678 = vld [vmem:[%s168] sm:$0xff]
        %v679 = vld [vmem:[%s168 + $0x8] sm:$0xff]
        %s680 = scalar_lea.vmem %s1, 12
        %v681 = vld [vmem:[%s680] sm:$0xf]
        %v684 = vcombine.high %v678, %v678
        %v685 = vcombine.high %v679, %v679
        %686 = vrot.lane.b32.xlu0 %v678, 106
        %v687 = vpop.permute.xlu0 %686
        %688 = vrot.lane.b32.xlu0 %v684, 106
        %v689 = vpop.permute.xlu0 %688
        %690 = vrot.lane.b32.xlu0 %v679, 106
        %v691 = vpop.permute.xlu0 %690
        %692 = vrot.lane.b32.xlu0 %v685, 106
        %v693 = vpop.permute.xlu0 %692
        %vm694 = vcmask 867328
        %v695 = vsel %vm694, %v687, %v689
        %v696 = vsel %vm694, %v689, %v691
        %v697 = vsel %vm694, %v691, %v693
        %v699 = vsel %vm191, %v681, 0
        %v701 = vsel %vm195, %v695, 0
        %v703 = vsel %vm195, %v696, 0
        %v705 = vsel %vm195, %v697, 0
        %707 = vmatprep.subr.mxu0 0.0
        %708 = vmatpush1.msra.mxu0 0.0
        %709 = vmatprep.subr.mxu0 0.0
        %710 = vmatpush1.msra.mxu0 0.0
        %711 = vmatprep.subr.mxu0 0.0
        %712 = vmatpush1.msra.mxu0 0.0
        %713 = vmatprep.subr.mxu0 0.0
        %714 = vmatpush1.msra.mxu0 0.0
        %715 = vmatprep.subr.mxu0 0.0
        %716 = vmatpush1.msra.mxu0 0.0
        %717 = vmatprep.subr.mxu0 0.0
        %718 = vmatpush1.msra.mxu0 0.0
        %719 = vmatprep.subr.mxu0 0.0
        %720 = vmatpush1.msra.mxu0 0.0
        %721 = vmatprep.subr.mxu0 0.0
        %722 = vmatpush1.msra.mxu0 0.0
        %723 = vmatprep.subr.mxu0 0.0
        %724 = vmatpush1.msra.mxu0 0.0
        %725 = vmatprep.subr.mxu0 0.0
        %726 = vmatpush1.msra.mxu0 0.0
        %727 = vmatprep.subr.mxu0 0.0
        %728 = vmatpush1.msra.mxu0 0.0
        %729 = vmatprep.subr.mxu0 0.0
        %730 = vmatpush1.msra.mxu0 0.0
        %731 = vmatprep.subr.mxu0 0.0
        %732 = vmatpush1.msra.mxu0 0.0
        %733 = vmatprep.subr.mxu0 0.0
        %734 = vmatpush1.msra.mxu0 0.0
        %735 = vmatprep.subr.mxu0 0.0
        %736 = vmatpush1.msra.mxu0 0.0
        %737 = vmatprep.subr.mxu0 %v703
        %738 = vmatpush1.msra.mxu0 %v701
        %739 = vmatprep.subr.mxu0 0.0
        %740 = vmatpush2.msra.mxu0 0.0
        %741 = vmatprep.subr.mxu0 0.0
        %742 = vmatpush2.msra.mxu0 0.0
        %743 = vmatprep.subr.mxu0 0.0
        %744 = vmatpush2.msra.mxu0 0.0
        %745 = vmatprep.subr.mxu0 0.0
        %746 = vmatpush2.msra.mxu0 0.0
        %747 = vmatprep.subr.mxu0 0.0
        %748 = vmatpush2.msra.mxu0 0.0
        %749 = vmatprep.subr.mxu0 0.0
        %750 = vmatpush2.msra.mxu0 0.0
        %751 = vmatprep.subr.mxu0 0.0
        %752 = vmatpush2.msra.mxu0 0.0
        %753 = vmatprep.subr.mxu0 0.0
        %754 = vmatpush2.msra.mxu0 0.0
        %755 = vmatprep.subr.mxu0 0.0
        %756 = vmatpush2.msra.mxu0 0.0
        %757 = vmatprep.subr.mxu0 0.0
        %758 = vmatpush2.msra.mxu0 0.0
        %759 = vmatprep.subr.mxu0 0.0
        %760 = vmatpush2.msra.mxu0 0.0
        %761 = vmatprep.subr.mxu0 0.0
        %762 = vmatpush2.msra.mxu0 0.0
        %763 = vmatprep.subr.mxu0 0.0
        %764 = vmatpush2.msra.mxu0 0.0
        %765 = vmatprep.subr.mxu0 0.0
        %766 = vmatpush2.msra.mxu0 0.0
        %767 = vmatprep.subr.mxu0 0.0
        %768 = vmatpush2.msra.mxu0 0.0
        %769 = vmatprep.subr.mxu0 0.0
        %770 = vmatpush2.msra.mxu0 0.0
        %771 = vmatprep.mubr.f32.mxu0 0.0
        %772 = vmatmul.mubr.f32.gmra.mxu0 %v699
        %v773 = vpop.f32.mrf.mxu0
        %v774 = vadd.f32 0.0, %v773
        %v775 = vpop.f32.mrf.mxu0
        %v776 = vadd.f32 0.0, %v775
        %777 = vdwg.mxu0
        %778 = vmatprep.subr.mxu0 0.0
        %779 = vmatpush1.msra.mxu0 0.0
        %780 = vmatprep.subr.mxu0 0.0
        %781 = vmatpush1.msra.mxu0 0.0
        %782 = vmatprep.subr.mxu0 0.0
        %783 = vmatpush1.msra.mxu0 0.0
        %784 = vmatprep.subr.mxu0 0.0
        %785 = vmatpush1.msra.mxu0 0.0
        %786 = vmatprep.subr.mxu0 0.0
        %787 = vmatpush1.msra.mxu0 0.0
        %788 = vmatprep.subr.mxu0 0.0
        %789 = vmatpush1.msra.mxu0 0.0
        %790 = vmatprep.subr.mxu0 0.0
        %791 = vmatpush1.msra.mxu0 0.0
        %792 = vmatprep.subr.mxu0 0.0
        %793 = vmatpush1.msra.mxu0 0.0
        %794 = vmatprep.subr.mxu0 0.0
        %795 = vmatpush1.msra.mxu0 0.0
        %796 = vmatprep.subr.mxu0 0.0
        %797 = vmatpush1.msra.mxu0 0.0
        %798 = vmatprep.subr.mxu0 0.0
        %799 = vmatpush1.msra.mxu0 0.0
        %800 = vmatprep.subr.mxu0 0.0
        %801 = vmatpush1.msra.mxu0 0.0
        %802 = vmatprep.subr.mxu0 0.0
        %803 = vmatpush1.msra.mxu0 0.0
        %804 = vmatprep.subr.mxu0 0.0
        %805 = vmatpush1.msra.mxu0 0.0
        %806 = vmatprep.subr.mxu0 0.0
        %807 = vmatpush1.msra.mxu0 0.0
        %808 = vmatprep.subr.mxu0 0.0
        %809 = vmatpush1.msra.mxu0 %v705
        %810 = vmatprep.subr.mxu0 0.0
        %811 = vmatpush2.msra.mxu0 0.0
        %812 = vmatprep.subr.mxu0 0.0
        %813 = vmatpush2.msra.mxu0 0.0
        %814 = vmatprep.subr.mxu0 0.0
        %815 = vmatpush2.msra.mxu0 0.0
        %816 = vmatprep.subr.mxu0 0.0
        %817 = vmatpush2.msra.mxu0 0.0
        %818 = vmatprep.subr.mxu0 0.0
        %819 = vmatpush2.msra.mxu0 0.0
        %820 = vmatprep.subr.mxu0 0.0
        %821 = vmatpush2.msra.mxu0 0.0
        %822 = vmatprep.subr.mxu0 0.0
        %823 = vmatpush2.msra.mxu0 0.0
        %824 = vmatprep.subr.mxu0 0.0
        %825 = vmatpush2.msra.mxu0 0.0
        %826 = vmatprep.subr.mxu0 0.0
        %827 = vmatpush2.msra.mxu0 0.0
        %828 = vmatprep.subr.mxu0 0.0
        %829 = vmatpush2.msra.mxu0 0.0
        %830 = vmatprep.subr.mxu0 0.0
        %831 = vmatpush2.msra.mxu0 0.0
        %832 = vmatprep.subr.mxu0 0.0
        %833 = vmatpush2.msra.mxu0 0.0
        %834 = vmatprep.subr.mxu0 0.0
        %835 = vmatpush2.msra.mxu0 0.0
        %836 = vmatprep.subr.mxu0 0.0
        %837 = vmatpush2.msra.mxu0 0.0
        %838 = vmatprep.subr.mxu0 0.0
        %839 = vmatpush2.msra.mxu0 0.0
        %840 = vmatprep.subr.mxu0 0.0
        %841 = vmatpush2.msra.mxu0 0.0
        %842 = vmatprep.mubr.f32.mxu0 0.0
        %843 = vmatmul.mubr.f32.gmra.mxu0 %v699
        %v844 = vpop.f32.mrf.mxu0
        %v845 = vadd.f32 0.0, %v844
        %v846 = vpop.f32.mrf.mxu0
        %847 = vdwg.mxu0
        %v848 = vadd.f32 %v675, %v774
        %v849 = vadd.f32 %v676, %v776
        %v850 = vadd.f32 %v677, %v845
        %v851 = vld [vmem:[%s168] sm:$0xff]
        %v852 = vld [vmem:[%s168 + $0x8] sm:$0xff]
        %s853 = scalar_lea.vmem %s1, 16
        %v854 = vld [vmem:[%s853] sm:$0xf]
        %v857 = vcombine.high %v851, %v851
        %v858 = vcombine.high %v852, %v852
        %859 = vrot.lane.b32.xlu0 %v851, 107
        %v860 = vpop.permute.xlu0 %859
        %861 = vrot.lane.b32.xlu0 %v857, 107
        %v862 = vpop.permute.xlu0 %861
        %863 = vrot.lane.b32.xlu0 %v852, 107
        %v864 = vpop.permute.xlu0 %863
        %865 = vrot.lane.b32.xlu0 %v858, 107
        %v866 = vpop.permute.xlu0 %865
        %vm867 = vcmask 875520
        %v868 = vsel %vm867, %v860, %v862
        %v869 = vsel %vm867, %v862, %v864
        %v870 = vsel %vm867, %v864, %v866
        %v872 = vsel %vm191, %v854, 0
        %v874 = vsel %vm195, %v868, 0
        %v876 = vsel %vm195, %v869, 0
        %v878 = vsel %vm195, %v870, 0
        %880 = vmatprep.subr.mxu0 0.0
        %881 = vmatpush1.msra.mxu0 0.0
        %882 = vmatprep.subr.mxu0 0.0
        %883 = vmatpush1.msra.mxu0 0.0
        %884 = vmatprep.subr.mxu0 0.0
        %885 = vmatpush1.msra.mxu0 0.0
        %886 = vmatprep.subr.mxu0 0.0
        %887 = vmatpush1.msra.mxu0 0.0
        %888 = vmatprep.subr.mxu0 0.0
        %889 = vmatpush1.msra.mxu0 0.0
        %890 = vmatprep.subr.mxu0 0.0
        %891 = vmatpush1.msra.mxu0 0.0
        %892 = vmatprep.subr.mxu0 0.0
        %893 = vmatpush1.msra.mxu0 0.0
        %894 = vmatprep.subr.mxu0 0.0
        %895 = vmatpush1.msra.mxu0 0.0
        %896 = vmatprep.subr.mxu0 0.0
        %897 = vmatpush1.msra.mxu0 0.0
        %898 = vmatprep.subr.mxu0 0.0
        %899 = vmatpush1.msra.mxu0 0.0
        %900 = vmatprep.subr.mxu0 0.0
        %901 = vmatpush1.msra.mxu0 0.0
        %902 = vmatprep.subr.mxu0 0.0
        %903 = vmatpush1.msra.mxu0 0.0
        %904 = vmatprep.subr.mxu0 0.0
        %905 = vmatpush1.msra.mxu0 0.0
        %906 = vmatprep.subr.mxu0 0.0
        %907 = vmatpush1.msra.mxu0 0.0
        %908 = vmatprep.subr.mxu0 0.0
        %909 = vmatpush1.msra.mxu0 0.0
        %910 = vmatprep.subr.mxu0 %v876
        %911 = vmatpush1.msra.mxu0 %v874
        %912 = vmatprep.subr.mxu0 0.0
        %913 = vmatpush2.msra.mxu0 0.0
        %914 = vmatprep.subr.mxu0 0.0
        %915 = vmatpush2.msra.mxu0 0.0
        %916 = vmatprep.subr.mxu0 0.0
        %917 = vmatpush2.msra.mxu0 0.0
        %918 = vmatprep.subr.mxu0 0.0
        %919 = vmatpush2.msra.mxu0 0.0
        %920 = vmatprep.subr.mxu0 0.0
        %921 = vmatpush2.msra.mxu0 0.0
        %922 = vmatprep.subr.mxu0 0.0
        %923 = vmatpush2.msra.mxu0 0.0
        %924 = vmatprep.subr.mxu0 0.0
        %925 = vmatpush2.msra.mxu0 0.0
        %926 = vmatprep.subr.mxu0 0.0
        %927 = vmatpush2.msra.mxu0 0.0
        %928 = vmatprep.subr.mxu0 0.0
        %929 = vmatpush2.msra.mxu0 0.0
        %930 = vmatprep.subr.mxu0 0.0
        %931 = vmatpush2.msra.mxu0 0.0
        %932 = vmatprep.subr.mxu0 0.0
        %933 = vmatpush2.msra.mxu0 0.0
        %934 = vmatprep.subr.mxu0 0.0
        %935 = vmatpush2.msra.mxu0 0.0
        %936 = vmatprep.subr.mxu0 0.0
        %937 = vmatpush2.msra.mxu0 0.0
        %938 = vmatprep.subr.mxu0 0.0
        %939 = vmatpush2.msra.mxu0 0.0
        %940 = vmatprep.subr.mxu0 0.0
        %941 = vmatpush2.msra.mxu0 0.0
        %942 = vmatprep.subr.mxu0 0.0
        %943 = vmatpush2.msra.mxu0 0.0
        %944 = vmatprep.mubr.f32.mxu0 0.0
        %945 = vmatmul.mubr.f32.gmra.mxu0 %v872
        %v946 = vpop.f32.mrf.mxu0
        %v947 = vadd.f32 0.0, %v946
        %v948 = vpop.f32.mrf.mxu0
        %v949 = vadd.f32 0.0, %v948
        %950 = vdwg.mxu0
        %951 = vmatprep.subr.mxu0 0.0
        %952 = vmatpush1.msra.mxu0 0.0
        %953 = vmatprep.subr.mxu0 0.0
        %954 = vmatpush1.msra.mxu0 0.0
        %955 = vmatprep.subr.mxu0 0.0
        %956 = vmatpush1.msra.mxu0 0.0
        %957 = vmatprep.subr.mxu0 0.0
        %958 = vmatpush1.msra.mxu0 0.0
        %959 = vmatprep.subr.mxu0 0.0
        %960 = vmatpush1.msra.mxu0 0.0
        %961 = vmatprep.subr.mxu0 0.0
        %962 = vmatpush1.msra.mxu0 0.0
        %963 = vmatprep.subr.mxu0 0.0
        %964 = vmatpush1.msra.mxu0 0.0
        %965 = vmatprep.subr.mxu0 0.0
        %966 = vmatpush1.msra.mxu0 0.0
        %967 = vmatprep.subr.mxu0 0.0
        %968 = vmatpush1.msra.mxu0 0.0
        %969 = vmatprep.subr.mxu0 0.0
        %970 = vmatpush1.msra.mxu0 0.0
        %971 = vmatprep.subr.mxu0 0.0
        %972 = vmatpush1.msra.mxu0 0.0
        %973 = vmatprep.subr.mxu0 0.0
        %974 = vmatpush1.msra.mxu0 0.0
        %975 = vmatprep.subr.mxu0 0.0
        %976 = vmatpush1.msra.mxu0 0.0
        %977 = vmatprep.subr.mxu0 0.0
        %978 = vmatpush1.msra.mxu0 0.0
        %979 = vmatprep.subr.mxu0 0.0
        %980 = vmatpush1.msra.mxu0 0.0
        %981 = vmatprep.subr.mxu0 0.0
        %982 = vmatpush1.msra.mxu0 %v878
        %983 = vmatprep.subr.mxu0 0.0
        %984 = vmatpush2.msra.mxu0 0.0
        %985 = vmatprep.subr.mxu0 0.0
        %986 = vmatpush2.msra.mxu0 0.0
        %987 = vmatprep.subr.mxu0 0.0
        %988 = vmatpush2.msra.mxu0 0.0
        %989 = vmatprep.subr.mxu0 0.0
        %990 = vmatpush2.msra.mxu0 0.0
        %991 = vmatprep.subr.mxu0 0.0
        %992 = vmatpush2.msra.mxu0 0.0
        %993 = vmatprep.subr.mxu0 0.0
        %994 = vmatpush2.msra.mxu0 0.0
        %995 = vmatprep.subr.mxu0 0.0
        %996 = vmatpush2.msra.mxu0 0.0
        %997 = vmatprep.subr.mxu0 0.0
        %998 = vmatpush2.msra.mxu0 0.0
        %999 = vmatprep.subr.mxu0 0.0
        %1000 = vmatpush2.msra.mxu0 0.0
        %1001 = vmatprep.subr.mxu0 0.0
        %1002 = vmatpush2.msra.mxu0 0.0
        %1003 = vmatprep.subr.mxu0 0.0
        %1004 = vmatpush2.msra.mxu0 0.0
        %1005 = vmatprep.subr.mxu0 0.0
        %1006 = vmatpush2.msra.mxu0 0.0
        %1007 = vmatprep.subr.mxu0 0.0
        %1008 = vmatpush2.msra.mxu0 0.0
        %1009 = vmatprep.subr.mxu0 0.0
        %1010 = vmatpush2.msra.mxu0 0.0
        %1011 = vmatprep.subr.mxu0 0.0
        %1012 = vmatpush2.msra.mxu0 0.0
        %1013 = vmatprep.subr.mxu0 0.0
        %1014 = vmatpush2.msra.mxu0 0.0
        %1015 = vmatprep.mubr.f32.mxu0 0.0
        %1016 = vmatmul.mubr.f32.gmra.mxu0 %v872
        %v1017 = vpop.f32.mrf.mxu0
        %v1018 = vadd.f32 0.0, %v1017
        %v1019 = vpop.f32.mrf.mxu0
        %1020 = vdwg.mxu0
        %v1021 = vadd.f32 %v848, %v947
        %v1022 = vadd.f32 %v849, %v949
        %v1023 = vadd.f32 %v850, %v1018
        %v1024 = vld [vmem:[%s168] sm:$0xff]
        %v1025 = vld [vmem:[%s168 + $0x8] sm:$0xff]
        %s1026 = scalar_lea.vmem %s1, 20
        %v1027 = vld [vmem:[%s1026] sm:$0xf]
        %v1030 = vcombine.high %v1024, %v1024
        %v1031 = vcombine.high %v1025, %v1025
        %1032 = vrot.lane.b32.xlu0 %v1024, 108
        %v1033 = vpop.permute.xlu0 %1032
        %1034 = vrot.lane.b32.xlu0 %v1030, 108
        %v1035 = vpop.permute.xlu0 %1034
        %1036 = vrot.lane.b32.xlu0 %v1025, 108
        %v1037 = vpop.permute.xlu0 %1036
        %1038 = vrot.lane.b32.xlu0 %v1031, 108
        %v1039 = vpop.permute.xlu0 %1038
        %vm1040 = vcmask 883712
        %v1041 = vsel %vm1040, %v1033, %v1035
        %v1042 = vsel %vm1040, %v1035, %v1037
        %v1043 = vsel %vm1040, %v1037, %v1039
        %v1045 = vsel %vm191, %v1027, 0
        %v1047 = vsel %vm195, %v1041, 0
        %v1049 = vsel %vm195, %v1042, 0
        %v1051 = vsel %vm195, %v1043, 0
        %1053 = vmatprep.subr.mxu0 0.0
        %1054 = vmatpush1.msra.mxu0 0.0
        %1055 = vmatprep.subr.mxu0 0.0
        %1056 = vmatpush1.msra.mxu0 0.0
        %1057 = vmatprep.subr.mxu0 0.0
        %1058 = vmatpush1.msra.mxu0 0.0
        %1059 = vmatprep.subr.mxu0 0.0
        %1060 = vmatpush1.msra.mxu0 0.0
        %1061 = vmatprep.subr.mxu0 0.0
        %1062 = vmatpush1.msra.mxu0 0.0
        %1063 = vmatprep.subr.mxu0 0.0
        %1064 = vmatpush1.msra.mxu0 0.0
        %1065 = vmatprep.subr.mxu0 0.0
        %1066 = vmatpush1.msra.mxu0 0.0
        %1067 = vmatprep.subr.mxu0 0.0
        %1068 = vmatpush1.msra.mxu0 0.0
        %1069 = vmatprep.subr.mxu0 0.0
        %1070 = vmatpush1.msra.mxu0 0.0
        %1071 = vmatprep.subr.mxu0 0.0
        %1072 = vmatpush1.msra.mxu0 0.0
        %1073 = vmatprep.subr.mxu0 0.0
        %1074 = vmatpush1.msra.mxu0 0.0
        %1075 = vmatprep.subr.mxu0 0.0
        %1076 = vmatpush1.msra.mxu0 0.0
        %1077 = vmatprep.subr.mxu0 0.0
        %1078 = vmatpush1.msra.mxu0 0.0
        %1079 = vmatprep.subr.mxu0 0.0
        %1080 = vmatpush1.msra.mxu0 0.0
        %1081 = vmatprep.subr.mxu0 0.0
        %1082 = vmatpush1.msra.mxu0 0.0
        %1083 = vmatprep.subr.mxu0 %v1049
        %1084 = vmatpush1.msra.mxu0 %v1047
        %1085 = vmatprep.subr.mxu0 0.0
        %1086 = vmatpush2.msra.mxu0 0.0
        %1087 = vmatprep.subr.mxu0 0.0
        %1088 = vmatpush2.msra.mxu0 0.0
        %1089 = vmatprep.subr.mxu0 0.0
        %1090 = vmatpush2.msra.mxu0 0.0
        %1091 = vmatprep.subr.mxu0 0.0
        %1092 = vmatpush2.msra.mxu0 0.0
        %1093 = vmatprep.subr.mxu0 0.0
        %1094 = vmatpush2.msra.mxu0 0.0
        %1095 = vmatprep.subr.mxu0 0.0
        %1096 = vmatpush2.msra.mxu0 0.0
        %1097 = vmatprep.subr.mxu0 0.0
        %1098 = vmatpush2.msra.mxu0 0.0
        %1099 = vmatprep.subr.mxu0 0.0
        %1100 = vmatpush2.msra.mxu0 0.0
        %1101 = vmatprep.subr.mxu0 0.0
        %1102 = vmatpush2.msra.mxu0 0.0
        %1103 = vmatprep.subr.mxu0 0.0
        %1104 = vmatpush2.msra.mxu0 0.0
        %1105 = vmatprep.subr.mxu0 0.0
        %1106 = vmatpush2.msra.mxu0 0.0
        %1107 = vmatprep.subr.mxu0 0.0
        %1108 = vmatpush2.msra.mxu0 0.0
        %1109 = vmatprep.subr.mxu0 0.0
        %1110 = vmatpush2.msra.mxu0 0.0
        %1111 = vmatprep.subr.mxu0 0.0
        %1112 = vmatpush2.msra.mxu0 0.0
        %1113 = vmatprep.subr.mxu0 0.0
        %1114 = vmatpush2.msra.mxu0 0.0
        %1115 = vmatprep.subr.mxu0 0.0
        %1116 = vmatpush2.msra.mxu0 0.0
        %1117 = vmatprep.mubr.f32.mxu0 0.0
        %1118 = vmatmul.mubr.f32.gmra.mxu0 %v1045
        %v1119 = vpop.f32.mrf.mxu0
        %v1120 = vadd.f32 0.0, %v1119
        %v1121 = vpop.f32.mrf.mxu0
        %v1122 = vadd.f32 0.0, %v1121
        %1123 = vdwg.mxu0
        %1124 = vmatprep.subr.mxu0 0.0
        %1125 = vmatpush1.msra.mxu0 0.0
        %1126 = vmatprep.subr.mxu0 0.0
        %1127 = vmatpush1.msra.mxu0 0.0
        %1128 = vmatprep.subr.mxu0 0.0
        %1129 = vmatpush1.msra.mxu0 0.0
        %1130 = vmatprep.subr.mxu0 0.0
        %1131 = vmatpush1.msra.mxu0 0.0
        %1132 = vmatprep.subr.mxu0 0.0
        %1133 = vmatpush1.msra.mxu0 0.0
        %1134 = vmatprep.subr.mxu0 0.0
        %1135 = vmatpush1.msra.mxu0 0.0
        %1136 = vmatprep.subr.mxu0 0.0
        %1137 = vmatpush1.msra.mxu0 0.0
        %1138 = vmatprep.subr.mxu0 0.0
        %1139 = vmatpush1.msra.mxu0 0.0
        %1140 = vmatprep.subr.mxu0 0.0
        %1141 = vmatpush1.msra.mxu0 0.0
        %1142 = vmatprep.subr.mxu0 0.0
        %1143 = vmatpush1.msra.mxu0 0.0
        %1144 = vmatprep.subr.mxu0 0.0
        %1145 = vmatpush1.msra.mxu0 0.0
        %1146 = vmatprep.subr.mxu0 0.0
        %1147 = vmatpush1.msra.mxu0 0.0
        %1148 = vmatprep.subr.mxu0 0.0
        %1149 = vmatpush1.msra.mxu0 0.0
        %1150 = vmatprep.subr.mxu0 0.0
        %1151 = vmatpush1.msra.mxu0 0.0
        %1152 = vmatprep.subr.mxu0 0.0
        %1153 = vmatpush1.msra.mxu0 0.0
        %1154 = vmatprep.subr.mxu0 0.0
        %1155 = vmatpush1.msra.mxu0 %v1051
        %1156 = vmatprep.subr.mxu0 0.0
        %1157 = vmatpush2.msra.mxu0 0.0
        %1158 = vmatprep.subr.mxu0 0.0
        %1159 = vmatpush2.msra.mxu0 0.0
        %1160 = vmatprep.subr.mxu0 0.0
        %1161 = vmatpush2.msra.mxu0 0.0
        %1162 = vmatprep.subr.mxu0 0.0
        %1163 = vmatpush2.msra.mxu0 0.0
        %1164 = vmatprep.subr.mxu0 0.0
        %1165 = vmatpush2.msra.mxu0 0.0
        %1166 = vmatprep.subr.mxu0 0.0
        %1167 = vmatpush2.msra.mxu0 0.0
        %1168 = vmatprep.subr.mxu0 0.0
        %1169 = vmatpush2.msra.mxu0 0.0
        %1170 = vmatprep.subr.mxu0 0.0
        %1171 = vmatpush2.msra.mxu0 0.0
        %1172 = vmatprep.subr.mxu0 0.0
        %1173 = vmatpush2.msra.mxu0 0.0
        %1174 = vmatprep.subr.mxu0 0.0
        %1175 = vmatpush2.msra.mxu0 0.0
        %1176 = vmatprep.subr.mxu0 0.0
        %1177 = vmatpush2.msra.mxu0 0.0
        %1178 = vmatprep.subr.mxu0 0.0
        %1179 = vmatpush2.msra.mxu0 0.0
        %1180 = vmatprep.subr.mxu0 0.0
        %1181 = vmatpush2.msra.mxu0 0.0
        %1182 = vmatprep.subr.mxu0 0.0
        %1183 = vmatpush2.msra.mxu0 0.0
        %1184 = vmatprep.subr.mxu0 0.0
        %1185 = vmatpush2.msra.mxu0 0.0
        %1186 = vmatprep.subr.mxu0 0.0
        %1187 = vmatpush2.msra.mxu0 0.0
        %1188 = vmatprep.mubr.f32.mxu0 0.0
        %1189 = vmatmul.mubr.f32.gmra.mxu0 %v1045
        %v1190 = vpop.f32.mrf.mxu0
        %v1191 = vadd.f32 0.0, %v1190
        %v1192 = vpop.f32.mrf.mxu0
        %1193 = vdwg.mxu0
        %v1194 = vadd.f32 %v1021, %v1120
        %v1195 = vadd.f32 %v1022, %v1122
        %v1196 = vadd.f32 %v1023, %v1191
        %v1197 = vld [vmem:[%s168] sm:$0xff]
        %v1198 = vld [vmem:[%s168 + $0x8] sm:$0xff]
        %s1199 = scalar_lea.vmem %s1, 24
        %v1200 = vld [vmem:[%s1199] sm:$0xf]
        %v1203 = vcombine.high %v1197, %v1197
        %v1204 = vcombine.high %v1198, %v1198
        %1205 = vrot.lane.b32.xlu0 %v1197, 126
        %v1206 = vpop.permute.xlu0 %1205
        %1207 = vrot.lane.b32.xlu0 %v1203, 126
        %v1208 = vpop.permute.xlu0 %1207
        %1209 = vrot.lane.b32.xlu0 %v1198, 126
        %v1210 = vpop.permute.xlu0 %1209
        %1211 = vrot.lane.b32.xlu0 %v1204, 126
        %v1212 = vpop.permute.xlu0 %1211
        %vm1213 = vcmask 1031168
        %v1214 = vsel %vm1213, %v1206, %v1208
        %v1215 = vsel %vm1213, %v1208, %v1210
        %v1216 = vsel %vm1213, %v1210, %v1212
        %v1218 = vsel %vm191, %v1200, 0
        %v1220 = vsel %vm195, %v1214, 0
        %v1222 = vsel %vm195, %v1215, 0
        %v1224 = vsel %vm195, %v1216, 0
        %1226 = vmatprep.subr.mxu0 0.0
        %1227 = vmatpush1.msra.mxu0 0.0
        %1228 = vmatprep.subr.mxu0 0.0
        %1229 = vmatpush1.msra.mxu0 0.0
        %1230 = vmatprep.subr.mxu0 0.0
        %1231 = vmatpush1.msra.mxu0 0.0
        %1232 = vmatprep.subr.mxu0 0.0
        %1233 = vmatpush1.msra.mxu0 0.0
        %1234 = vmatprep.subr.mxu0 0.0
        %1235 = vmatpush1.msra.mxu0 0.0
        %1236 = vmatprep.subr.mxu0 0.0
        %1237 = vmatpush1.msra.mxu0 0.0
        %1238 = vmatprep.subr.mxu0 0.0
        %1239 = vmatpush1.msra.mxu0 0.0
        %1240 = vmatprep.subr.mxu0 0.0
        %1241 = vmatpush1.msra.mxu0 0.0
        %1242 = vmatprep.subr.mxu0 0.0
        %1243 = vmatpush1.msra.mxu0 0.0
        %1244 = vmatprep.subr.mxu0 0.0
        %1245 = vmatpush1.msra.mxu0 0.0
        %1246 = vmatprep.subr.mxu0 0.0
        %1247 = vmatpush1.msra.mxu0 0.0
        %1248 = vmatprep.subr.mxu0 0.0
        %1249 = vmatpush1.msra.mxu0 0.0
        %1250 = vmatprep.subr.mxu0 0.0
        %1251 = vmatpush1.msra.mxu0 0.0
        %1252 = vmatprep.subr.mxu0 0.0
        %1253 = vmatpush1.msra.mxu0 0.0
        %1254 = vmatprep.subr.mxu0 0.0
        %1255 = vmatpush1.msra.mxu0 0.0
        %1256 = vmatprep.subr.mxu0 %v1222
        %1257 = vmatpush1.msra.mxu0 %v1220
        %1258 = vmatprep.subr.mxu0 0.0
        %1259 = vmatpush2.msra.mxu0 0.0
        %1260 = vmatprep.subr.mxu0 0.0
        %1261 = vmatpush2.msra.mxu0 0.0
        %1262 = vmatprep.subr.mxu0 0.0
        %1263 = vmatpush2.msra.mxu0 0.0
        %1264 = vmatprep.subr.mxu0 0.0
        %1265 = vmatpush2.msra.mxu0 0.0
        %1266 = vmatprep.subr.mxu0 0.0
        %1267 = vmatpush2.msra.mxu0 0.0
        %1268 = vmatprep.subr.mxu0 0.0
        %1269 = vmatpush2.msra.mxu0 0.0
        %1270 = vmatprep.subr.mxu0 0.0
        %1271 = vmatpush2.msra.mxu0 0.0
        %1272 = vmatprep.subr.mxu0 0.0
        %1273 = vmatpush2.msra.mxu0 0.0
        %1274 = vmatprep.subr.mxu0 0.0
        %1275 = vmatpush2.msra.mxu0 0.0
        %1276 = vmatprep.subr.mxu0 0.0
        %1277 = vmatpush2.msra.mxu0 0.0
        %1278 = vmatprep.subr.mxu0 0.0
        %1279 = vmatpush2.msra.mxu0 0.0
        %1280 = vmatprep.subr.mxu0 0.0
        %1281 = vmatpush2.msra.mxu0 0.0
        %1282 = vmatprep.subr.mxu0 0.0
        %1283 = vmatpush2.msra.mxu0 0.0
        %1284 = vmatprep.subr.mxu0 0.0
        %1285 = vmatpush2.msra.mxu0 0.0
        %1286 = vmatprep.subr.mxu0 0.0
        %1287 = vmatpush2.msra.mxu0 0.0
        %1288 = vmatprep.subr.mxu0 0.0
        %1289 = vmatpush2.msra.mxu0 0.0
        %1290 = vmatprep.mubr.f32.mxu0 0.0
        %1291 = vmatmul.mubr.f32.gmra.mxu0 %v1218
        %v1292 = vpop.f32.mrf.mxu0
        %v1293 = vadd.f32 0.0, %v1292
        %v1294 = vpop.f32.mrf.mxu0
        %v1295 = vadd.f32 0.0, %v1294
        %1296 = vdwg.mxu0
        %1297 = vmatprep.subr.mxu0 0.0
        %1298 = vmatpush1.msra.mxu0 0.0
        %1299 = vmatprep.subr.mxu0 0.0
        %1300 = vmatpush1.msra.mxu0 0.0
        %1301 = vmatprep.subr.mxu0 0.0
        %1302 = vmatpush1.msra.mxu0 0.0
        %1303 = vmatprep.subr.mxu0 0.0
        %1304 = vmatpush1.msra.mxu0 0.0
        %1305 = vmatprep.subr.mxu0 0.0
        %1306 = vmatpush1.msra.mxu0 0.0
        %1307 = vmatprep.subr.mxu0 0.0
        %1308 = vmatpush1.msra.mxu0 0.0
        %1309 = vmatprep.subr.mxu0 0.0
        %1310 = vmatpush1.msra.mxu0 0.0
        %1311 = vmatprep.subr.mxu0 0.0
        %1312 = vmatpush1.msra.mxu0 0.0
        %1313 = vmatprep.subr.mxu0 0.0
        %1314 = vmatpush1.msra.mxu0 0.0
        %1315 = vmatprep.subr.mxu0 0.0
        %1316 = vmatpush1.msra.mxu0 0.0
        %1317 = vmatprep.subr.mxu0 0.0
        %1318 = vmatpush1.msra.mxu0 0.0
        %1319 = vmatprep.subr.mxu0 0.0
        %1320 = vmatpush1.msra.mxu0 0.0
        %1321 = vmatprep.subr.mxu0 0.0
        %1322 = vmatpush1.msra.mxu0 0.0
        %1323 = vmatprep.subr.mxu0 0.0
        %1324 = vmatpush1.msra.mxu0 0.0
        %1325 = vmatprep.subr.mxu0 0.0
        %1326 = vmatpush1.msra.mxu0 0.0
        %1327 = vmatprep.subr.mxu0 0.0
        %1328 = vmatpush1.msra.mxu0 %v1224
        %1329 = vmatprep.subr.mxu0 0.0
        %1330 = vmatpush2.msra.mxu0 0.0
        %1331 = vmatprep.subr.mxu0 0.0
        %1332 = vmatpush2.msra.mxu0 0.0
        %1333 = vmatprep.subr.mxu0 0.0
        %1334 = vmatpush2.msra.mxu0 0.0
        %1335 = vmatprep.subr.mxu0 0.0
        %1336 = vmatpush2.msra.mxu0 0.0
        %1337 = vmatprep.subr.mxu0 0.0
        %1338 = vmatpush2.msra.mxu0 0.0
        %1339 = vmatprep.subr.mxu0 0.0
        %1340 = vmatpush2.msra.mxu0 0.0
        %1341 = vmatprep.subr.mxu0 0.0
        %1342 = vmatpush2.msra.mxu0 0.0
        %1343 = vmatprep.subr.mxu0 0.0
        %1344 = vmatpush2.msra.mxu0 0.0
        %1345 = vmatprep.subr.mxu0 0.0
        %1346 = vmatpush2.msra.mxu0 0.0
        %1347 = vmatprep.subr.mxu0 0.0
        %1348 = vmatpush2.msra.mxu0 0.0
        %1349 = vmatprep.subr.mxu0 0.0
        %1350 = vmatpush2.msra.mxu0 0.0
        %1351 = vmatprep.subr.mxu0 0.0
        %1352 = vmatpush2.msra.mxu0 0.0
        %1353 = vmatprep.subr.mxu0 0.0
        %1354 = vmatpush2.msra.mxu0 0.0
        %1355 = vmatprep.subr.mxu0 0.0
        %1356 = vmatpush2.msra.mxu0 0.0
        %1357 = vmatprep.subr.mxu0 0.0
        %1358 = vmatpush2.msra.mxu0 0.0
        %1359 = vmatprep.subr.mxu0 0.0
        %1360 = vmatpush2.msra.mxu0 0.0
        %1361 = vmatprep.mubr.f32.mxu0 0.0
        %1362 = vmatmul.mubr.f32.gmra.mxu0 %v1218
        %v1363 = vpop.f32.mrf.mxu0
        %v1364 = vadd.f32 0.0, %v1363
        %v1365 = vpop.f32.mrf.mxu0
        %1366 = vdwg.mxu0
        %v1367 = vadd.f32 %v1194, %v1293
        %v1368 = vadd.f32 %v1195, %v1295
        %v1369 = vadd.f32 %v1196, %v1364
        %v1370 = vld [vmem:[%s168] sm:$0xff]
        %v1371 = vld [vmem:[%s168 + $0x8] sm:$0xff]
        %s1372 = scalar_lea.vmem %s1, 28
        %v1373 = vld [vmem:[%s1372] sm:$0xf]
        %v1376 = vcombine.high %v1370, %v1370
        %v1377 = vcombine.high %v1371, %v1371
        %1378 = vrot.lane.b32.xlu0 %v1370, 127
        %v1379 = vpop.permute.xlu0 %1378
        %1380 = vrot.lane.b32.xlu0 %v1376, 127
        %v1381 = vpop.permute.xlu0 %1380
        %1382 = vrot.lane.b32.xlu0 %v1371, 127
        %v1383 = vpop.permute.xlu0 %1382
        %1384 = vrot.lane.b32.xlu0 %v1377, 127
        %v1385 = vpop.permute.xlu0 %1384
        %vm1386 = vcmask 1039360
        %v1387 = vsel %vm1386, %v1379, %v1381
        %v1388 = vsel %vm1386, %v1381, %v1383
        %v1389 = vsel %vm1386, %v1383, %v1385
        %v1391 = vsel %vm191, %v1373, 0
        %v1393 = vsel %vm195, %v1387, 0
        %v1395 = vsel %vm195, %v1388, 0
        %v1397 = vsel %vm195, %v1389, 0
        %1399 = vmatprep.subr.mxu0 0.0
        %1400 = vmatpush1.msra.mxu0 0.0
        %1401 = vmatprep.subr.mxu0 0.0
        %1402 = vmatpush1.msra.mxu0 0.0
        %1403 = vmatprep.subr.mxu0 0.0
        %1404 = vmatpush1.msra.mxu0 0.0
        %1405 = vmatprep.subr.mxu0 0.0
        %1406 = vmatpush1.msra.mxu0 0.0
        %1407 = vmatprep.subr.mxu0 0.0
        %1408 = vmatpush1.msra.mxu0 0.0
        %1409 = vmatprep.subr.mxu0 0.0
        %1410 = vmatpush1.msra.mxu0 0.0
        %1411 = vmatprep.subr.mxu0 0.0
        %1412 = vmatpush1.msra.mxu0 0.0
        %1413 = vmatprep.subr.mxu0 0.0
        %1414 = vmatpush1.msra.mxu0 0.0
        %1415 = vmatprep.subr.mxu0 0.0
        %1416 = vmatpush1.msra.mxu0 0.0
        %1417 = vmatprep.subr.mxu0 0.0
        %1418 = vmatpush1.msra.mxu0 0.0
        %1419 = vmatprep.subr.mxu0 0.0
        %1420 = vmatpush1.msra.mxu0 0.0
        %1421 = vmatprep.subr.mxu0 0.0
        %1422 = vmatpush1.msra.mxu0 0.0
        %1423 = vmatprep.subr.mxu0 0.0
        %1424 = vmatpush1.msra.mxu0 0.0
        %1425 = vmatprep.subr.mxu0 0.0
        %1426 = vmatpush1.msra.mxu0 0.0
        %1427 = vmatprep.subr.mxu0 0.0
        %1428 = vmatpush1.msra.mxu0 0.0
        %1429 = vmatprep.subr.mxu0 %v1395
        %1430 = vmatpush1.msra.mxu0 %v1393
        %1431 = vmatprep.subr.mxu0 0.0
        %1432 = vmatpush2.msra.mxu0 0.0
        %1433 = vmatprep.subr.mxu0 0.0
        %1434 = vmatpush2.msra.mxu0 0.0
        %1435 = vmatprep.subr.mxu0 0.0
        %1436 = vmatpush2.msra.mxu0 0.0
        %1437 = vmatprep.subr.mxu0 0.0
        %1438 = vmatpush2.msra.mxu0 0.0
        %1439 = vmatprep.subr.mxu0 0.0
        %1440 = vmatpush2.msra.mxu0 0.0
        %1441 = vmatprep.subr.mxu0 0.0
        %1442 = vmatpush2.msra.mxu0 0.0
        %1443 = vmatprep.subr.mxu0 0.0
        %1444 = vmatpush2.msra.mxu0 0.0
        %1445 = vmatprep.subr.mxu0 0.0
        %1446 = vmatpush2.msra.mxu0 0.0
        %1447 = vmatprep.subr.mxu0 0.0
        %1448 = vmatpush2.msra.mxu0 0.0
        %1449 = vmatprep.subr.mxu0 0.0
        %1450 = vmatpush2.msra.mxu0 0.0
        %1451 = vmatprep.subr.mxu0 0.0
        %1452 = vmatpush2.msra.mxu0 0.0
        %1453 = vmatprep.subr.mxu0 0.0
        %1454 = vmatpush2.msra.mxu0 0.0
        %1455 = vmatprep.subr.mxu0 0.0
        %1456 = vmatpush2.msra.mxu0 0.0
        %1457 = vmatprep.subr.mxu0 0.0
        %1458 = vmatpush2.msra.mxu0 0.0
        %1459 = vmatprep.subr.mxu0 0.0
        %1460 = vmatpush2.msra.mxu0 0.0
        %1461 = vmatprep.subr.mxu0 0.0
        %1462 = vmatpush2.msra.mxu0 0.0
        %1463 = vmatprep.mubr.f32.mxu0 0.0
        %1464 = vmatmul.mubr.f32.gmra.mxu0 %v1391
        %v1465 = vpop.f32.mrf.mxu0
        %v1466 = vadd.f32 0.0, %v1465
        %v1467 = vpop.f32.mrf.mxu0
        %v1468 = vadd.f32 0.0, %v1467
        %1469 = vdwg.mxu0
        %1470 = vmatprep.subr.mxu0 0.0
        %1471 = vmatpush1.msra.mxu0 0.0
        %1472 = vmatprep.subr.mxu0 0.0
        %1473 = vmatpush1.msra.mxu0 0.0
        %1474 = vmatprep.subr.mxu0 0.0
        %1475 = vmatpush1.msra.mxu0 0.0
        %1476 = vmatprep.subr.mxu0 0.0
        %1477 = vmatpush1.msra.mxu0 0.0
        %1478 = vmatprep.subr.mxu0 0.0
        %1479 = vmatpush1.msra.mxu0 0.0
        %1480 = vmatprep.subr.mxu0 0.0
        %1481 = vmatpush1.msra.mxu0 0.0
        %1482 = vmatprep.subr.mxu0 0.0
        %1483 = vmatpush1.msra.mxu0 0.0
        %1484 = vmatprep.subr.mxu0 0.0
        %1485 = vmatpush1.msra.mxu0 0.0
        %1486 = vmatprep.subr.mxu0 0.0
        %1487 = vmatpush1.msra.mxu0 0.0
        %1488 = vmatprep.subr.mxu0 0.0
        %1489 = vmatpush1.msra.mxu0 0.0
        %1490 = vmatprep.subr.mxu0 0.0
        %1491 = vmatpush1.msra.mxu0 0.0
        %1492 = vmatprep.subr.mxu0 0.0
        %1493 = vmatpush1.msra.mxu0 0.0
        %1494 = vmatprep.subr.mxu0 0.0
        %1495 = vmatpush1.msra.mxu0 0.0
        %1496 = vmatprep.subr.mxu0 0.0
        %1497 = vmatpush1.msra.mxu0 0.0
        %1498 = vmatprep.subr.mxu0 0.0
        %1499 = vmatpush1.msra.mxu0 0.0
        %1500 = vmatprep.subr.mxu0 0.0
        %1501 = vmatpush1.msra.mxu0 %v1397
        %1502 = vmatprep.subr.mxu0 0.0
        %1503 = vmatpush2.msra.mxu0 0.0
        %1504 = vmatprep.subr.mxu0 0.0
        %1505 = vmatpush2.msra.mxu0 0.0
        %1506 = vmatprep.subr.mxu0 0.0
        %1507 = vmatpush2.msra.mxu0 0.0
        %1508 = vmatprep.subr.mxu0 0.0
        %1509 = vmatpush2.msra.mxu0 0.0
        %1510 = vmatprep.subr.mxu0 0.0
        %1511 = vmatpush2.msra.mxu0 0.0
        %1512 = vmatprep.subr.mxu0 0.0
        %1513 = vmatpush2.msra.mxu0 0.0
        %1514 = vmatprep.subr.mxu0 0.0
        %1515 = vmatpush2.msra.mxu0 0.0
        %1516 = vmatprep.subr.mxu0 0.0
        %1517 = vmatpush2.msra.mxu0 0.0
        %1518 = vmatprep.subr.mxu0 0.0
        %1519 = vmatpush2.msra.mxu0 0.0
        %1520 = vmatprep.subr.mxu0 0.0
        %1521 = vmatpush2.msra.mxu0 0.0
        %1522 = vmatprep.subr.mxu0 0.0
        %1523 = vmatpush2.msra.mxu0 0.0
        %1524 = vmatprep.subr.mxu0 0.0
        %1525 = vmatpush2.msra.mxu0 0.0
        %1526 = vmatprep.subr.mxu0 0.0
        %1527 = vmatpush2.msra.mxu0 0.0
        %1528 = vmatprep.subr.mxu0 0.0
        %1529 = vmatpush2.msra.mxu0 0.0
        %1530 = vmatprep.subr.mxu0 0.0
        %1531 = vmatpush2.msra.mxu0 0.0
        %1532 = vmatprep.subr.mxu0 0.0
        %1533 = vmatpush2.msra.mxu0 0.0
        %1534 = vmatprep.mubr.f32.mxu0 0.0
        %1535 = vmatmul.mubr.f32.gmra.mxu0 %v1391
        %v1536 = vpop.f32.mrf.mxu0
        %v1537 = vadd.f32 0.0, %v1536
        %v1538 = vpop.f32.mrf.mxu0
        %1539 = vdwg.mxu0
        %v1540 = vadd.f32 %v1367, %v1466
        %v1541 = vadd.f32 %v1368, %v1468
        %v1542 = vadd.f32 %v1369, %v1537
        %v1543 = vld [vmem:[%s168] sm:$0xff]
        %v1544 = vld [vmem:[%s168 + $0x8] sm:$0xf]
        %s1545 = scalar_lea.vmem %s1, 32
        %v1546 = vld [vmem:[%s1545] sm:$0xf]
        %v1549 = vcombine.high %v1543, %v1543
        %v1551 = vsel %vm191, %v1546, 0
        %v1553 = vsel %vm195, %v1543, 0
        %v1555 = vsel %vm195, %v1549, 0
        %v1557 = vsel %vm195, %v1544, 0
        %1559 = vmatprep.subr.mxu0 0.0
        %1560 = vmatpush1.msra.mxu0 0.0
        %1561 = vmatprep.subr.mxu0 0.0
        %1562 = vmatpush1.msra.mxu0 0.0
        %1563 = vmatprep.subr.mxu0 0.0
        %1564 = vmatpush1.msra.mxu0 0.0
        %1565 = vmatprep.subr.mxu0 0.0
        %1566 = vmatpush1.msra.mxu0 0.0
        %1567 = vmatprep.subr.mxu0 0.0
        %1568 = vmatpush1.msra.mxu0 0.0
        %1569 = vmatprep.subr.mxu0 0.0
        %1570 = vmatpush1.msra.mxu0 0.0
        %1571 = vmatprep.subr.mxu0 0.0
        %1572 = vmatpush1.msra.mxu0 0.0
        %1573 = vmatprep.subr.mxu0 0.0
        %1574 = vmatpush1.msra.mxu0 0.0
        %1575 = vmatprep.subr.mxu0 0.0
        %1576 = vmatpush1.msra.mxu0 0.0
        %1577 = vmatprep.subr.mxu0 0.0
        %1578 = vmatpush1.msra.mxu0 0.0
        %1579 = vmatprep.subr.mxu0 0.0
        %1580 = vmatpush1.msra.mxu0 0.0
        %1581 = vmatprep.subr.mxu0 0.0
        %1582 = vmatpush1.msra.mxu0 0.0
        %1583 = vmatprep.subr.mxu0 0.0
        %1584 = vmatpush1.msra.mxu0 0.0
        %1585 = vmatprep.subr.mxu0 0.0
        %1586 = vmatpush1.msra.mxu0 0.0
        %1587 = vmatprep.subr.mxu0 0.0
        %1588 = vmatpush1.msra.mxu0 0.0
        %1589 = vmatprep.subr.mxu0 %v1555
        %1590 = vmatpush1.msra.mxu0 %v1553
        %1591 = vmatprep.subr.mxu0 0.0
        %1592 = vmatpush2.msra.mxu0 0.0
        %1593 = vmatprep.subr.mxu0 0.0
        %1594 = vmatpush2.msra.mxu0 0.0
        %1595 = vmatprep.subr.mxu0 0.0
        %1596 = vmatpush2.msra.mxu0 0.0
        %1597 = vmatprep.subr.mxu0 0.0
        %1598 = vmatpush2.msra.mxu0 0.0
        %1599 = vmatprep.subr.mxu0 0.0
        %1600 = vmatpush2.msra.mxu0 0.0
        %1601 = vmatprep.subr.mxu0 0.0
        %1602 = vmatpush2.msra.mxu0 0.0
        %1603 = vmatprep.subr.mxu0 0.0
        %1604 = vmatpush2.msra.mxu0 0.0
        %1605 = vmatprep.subr.mxu0 0.0
        %1606 = vmatpush2.msra.mxu0 0.0
        %1607 = vmatprep.subr.mxu0 0.0
        %1608 = vmatpush2.msra.mxu0 0.0
        %1609 = vmatprep.subr.mxu0 0.0
        %1610 = vmatpush2.msra.mxu0 0.0
        %1611 = vmatprep.subr.mxu0 0.0
        %1612 = vmatpush2.msra.mxu0 0.0
        %1613 = vmatprep.subr.mxu0 0.0
        %1614 = vmatpush2.msra.mxu0 0.0
        %1615 = vmatprep.subr.mxu0 0.0
        %1616 = vmatpush2.msra.mxu0 0.0
        %1617 = vmatprep.subr.mxu0 0.0
        %1618 = vmatpush2.msra.mxu0 0.0
        %1619 = vmatprep.subr.mxu0 0.0
        %1620 = vmatpush2.msra.mxu0 0.0
        %1621 = vmatprep.subr.mxu0 0.0
        %1622 = vmatpush2.msra.mxu0 0.0
        %1623 = vmatprep.mubr.f32.mxu0 0.0
        %1624 = vmatmul.mubr.f32.gmra.mxu0 %v1551
        %v1625 = vpop.f32.mrf.mxu0
        %v1626 = vadd.f32 0.0, %v1625
        %v1627 = vpop.f32.mrf.mxu0
        %v1628 = vadd.f32 0.0, %v1627
        %1629 = vdwg.mxu0
        %1630 = vmatprep.subr.mxu0 0.0
        %1631 = vmatpush1.msra.mxu0 0.0
        %1632 = vmatprep.subr.mxu0 0.0
        %1633 = vmatpush1.msra.mxu0 0.0
        %1634 = vmatprep.subr.mxu0 0.0
        %1635 = vmatpush1.msra.mxu0 0.0
        %1636 = vmatprep.subr.mxu0 0.0
        %1637 = vmatpush1.msra.mxu0 0.0
        %1638 = vmatprep.subr.mxu0 0.0
        %1639 = vmatpush1.msra.mxu0 0.0
        %1640 = vmatprep.subr.mxu0 0.0
        %1641 = vmatpush1.msra.mxu0 0.0
        %1642 = vmatprep.subr.mxu0 0.0
        %1643 = vmatpush1.msra.mxu0 0.0
        %1644 = vmatprep.subr.mxu0 0.0
        %1645 = vmatpush1.msra.mxu0 0.0
        %1646 = vmatprep.subr.mxu0 0.0
        %1647 = vmatpush1.msra.mxu0 0.0
        %1648 = vmatprep.subr.mxu0 0.0
        %1649 = vmatpush1.msra.mxu0 0.0
        %1650 = vmatprep.subr.mxu0 0.0
        %1651 = vmatpush1.msra.mxu0 0.0
        %1652 = vmatprep.subr.mxu0 0.0
        %1653 = vmatpush1.msra.mxu0 0.0
        %1654 = vmatprep.subr.mxu0 0.0
        %1655 = vmatpush1.msra.mxu0 0.0
        %1656 = vmatprep.subr.mxu0 0.0
        %1657 = vmatpush1.msra.mxu0 0.0
        %1658 = vmatprep.subr.mxu0 0.0
        %1659 = vmatpush1.msra.mxu0 0.0
        %1660 = vmatprep.subr.mxu0 0.0
        %1661 = vmatpush1.msra.mxu0 %v1557
        %1662 = vmatprep.subr.mxu0 0.0
        %1663 = vmatpush2.msra.mxu0 0.0
        %1664 = vmatprep.subr.mxu0 0.0
        %1665 = vmatpush2.msra.mxu0 0.0
        %1666 = vmatprep.subr.mxu0 0.0
        %1667 = vmatpush2.msra.mxu0 0.0
        %1668 = vmatprep.subr.mxu0 0.0
        %1669 = vmatpush2.msra.mxu0 0.0
        %1670 = vmatprep.subr.mxu0 0.0
        %1671 = vmatpush2.msra.mxu0 0.0
        %1672 = vmatprep.subr.mxu0 0.0
        %1673 = vmatpush2.msra.mxu0 0.0
        %1674 = vmatprep.subr.mxu0 0.0
        %1675 = vmatpush2.msra.mxu0 0.0
        %1676 = vmatprep.subr.mxu0 0.0
        %1677 = vmatpush2.msra.mxu0 0.0
        %1678 = vmatprep.subr.mxu0 0.0
        %1679 = vmatpush2.msra.mxu0 0.0
        %1680 = vmatprep.subr.mxu0 0.0
        %1681 = vmatpush2.msra.mxu0 0.0
        %1682 = vmatprep.subr.mxu0 0.0
        %1683 = vmatpush2.msra.mxu0 0.0
        %1684 = vmatprep.subr.mxu0 0.0
        %1685 = vmatpush2.msra.mxu0 0.0
        %1686 = vmatprep.subr.mxu0 0.0
        %1687 = vmatpush2.msra.mxu0 0.0
        %1688 = vmatprep.subr.mxu0 0.0
        %1689 = vmatpush2.msra.mxu0 0.0
        %1690 = vmatprep.subr.mxu0 0.0
        %1691 = vmatpush2.msra.mxu0 0.0
        %1692 = vmatprep.subr.mxu0 0.0
        %1693 = vmatpush2.msra.mxu0 0.0
        %1694 = vmatprep.mubr.f32.mxu0 0.0
        %1695 = vmatmul.mubr.f32.gmra.mxu0 %v1551
        %v1696 = vpop.f32.mrf.mxu0
        %v1697 = vadd.f32 0.0, %v1696
        %v1698 = vpop.f32.mrf.mxu0
        %1699 = vdwg.mxu0
        %v1700 = vadd.f32 %v1540, %v1626
        %v1701 = vadd.f32 %v1541, %v1628
        %v1702 = vadd.f32 %v1542, %v1697
        %1704 = vset.pattern.permute.xlu0 0
        %1705 = vperm.xlu0 %1704, %v169
        %v1706 = vpop.permute.xlu0 %1705
        %v1708 = vadd.f32 %v1700, %v1706
        %v1709 = vadd.f32 %v1701, %v1706
        %v1710 = vadd.f32 %v1702, %v1706
        %v1713 = vcombine.low %v1708, %v1709
        %1715 = vst [vmem:[%s163] sm:$0xff] %v1713
        %1716 = vst [vmem:[%s163 + $0x8] sm:$0xf] %v1710
        %v1717 = vld [vmem:[%s168] sm:$0xff]
        %v1718 = vld [vmem:[%s168 + $0x8] sm:$0xff]
        %s1719 = scalar_lea.vmem %s1, 36
        %v1720 = vld [vmem:[%s1719] sm:$0xf]
        %s1721 = scalar_lea.vmem %s1, 40
        %v1722 = vld [vmem:[%s1721] sm:$0xf]
        %v1725 = vcombine.high %v1717, %v1717
        %v1726 = vcombine.high %v1718, %v1718
        %1727 = vrot.lane.b32.xlu0 %v1717, 87
        %v1728 = vpop.permute.xlu0 %1727
        %1729 = vrot.lane.b32.xlu0 %v1725, 87
        %v1730 = vpop.permute.xlu0 %1729
        %1731 = vrot.lane.b32.xlu0 %v1718, 87
        %v1732 = vpop.permute.xlu0 %1731
        %1733 = vrot.lane.b32.xlu0 %v1726, 87
        %v1734 = vpop.permute.xlu0 %1733
        %v1735 = vsel %vm187, %v1728, %v1730
        %v1736 = vsel %vm187, %v1730, %v1732
        %v1737 = vsel %vm187, %v1732, %v1734
        %v1739 = vsel %vm191, %v1722, 0
        %v1741 = vsel %vm195, %v1735, 0
        %v1743 = vsel %vm195, %v1736, 0
        %v1745 = vsel %vm195, %v1737, 0
        %1747 = vmatprep.subr.mxu0 0.0
        %1748 = vmatpush1.msra.mxu0 0.0
        %1749 = vmatprep.subr.mxu0 0.0
        %1750 = vmatpush1.msra.mxu0 0.0
        %1751 = vmatprep.subr.mxu0 0.0
        %1752 = vmatpush1.msra.mxu0 0.0
        %1753 = vmatprep.subr.mxu0 0.0
        %1754 = vmatpush1.msra.mxu0 0.0
        %1755 = vmatprep.subr.mxu0 0.0
        %1756 = vmatpush1.msra.mxu0 0.0
        %1757 = vmatprep.subr.mxu0 0.0
        %1758 = vmatpush1.msra.mxu0 0.0
        %1759 = vmatprep.subr.mxu0 0.0
        %1760 = vmatpush1.msra.mxu0 0.0
        %1761 = vmatprep.subr.mxu0 0.0
        %1762 = vmatpush1.msra.mxu0 0.0
        %1763 = vmatprep.subr.mxu0 0.0
        %1764 = vmatpush1.msra.mxu0 0.0
        %1765 = vmatprep.subr.mxu0 0.0
        %1766 = vmatpush1.msra.mxu0 0.0
        %1767 = vmatprep.subr.mxu0 0.0
        %1768 = vmatpush1.msra.mxu0 0.0
        %1769 = vmatprep.subr.mxu0 0.0
        %1770 = vmatpush1.msra.mxu0 0.0
        %1771 = vmatprep.subr.mxu0 0.0
        %1772 = vmatpush1.msra.mxu0 0.0
        %1773 = vmatprep.subr.mxu0 0.0
        %1774 = vmatpush1.msra.mxu0 0.0
        %1775 = vmatprep.subr.mxu0 0.0
        %1776 = vmatpush1.msra.mxu0 0.0
        %1777 = vmatprep.subr.mxu0 %v1743
        %1778 = vmatpush1.msra.mxu0 %v1741
        %1779 = vmatprep.subr.mxu0 0.0
        %1780 = vmatpush2.msra.mxu0 0.0
        %1781 = vmatprep.subr.mxu0 0.0
        %1782 = vmatpush2.msra.mxu0 0.0
        %1783 = vmatprep.subr.mxu0 0.0
        %1784 = vmatpush2.msra.mxu0 0.0
        %1785 = vmatprep.subr.mxu0 0.0
        %1786 = vmatpush2.msra.mxu0 0.0
        %1787 = vmatprep.subr.mxu0 0.0
        %1788 = vmatpush2.msra.mxu0 0.0
        %1789 = vmatprep.subr.mxu0 0.0
        %1790 = vmatpush2.msra.mxu0 0.0
        %1791 = vmatprep.subr.mxu0 0.0
        %1792 = vmatpush2.msra.mxu0 0.0
        %1793 = vmatprep.subr.mxu0 0.0
        %1794 = vmatpush2.msra.mxu0 0.0
        %1795 = vmatprep.subr.mxu0 0.0
        %1796 = vmatpush2.msra.mxu0 0.0
        %1797 = vmatprep.subr.mxu0 0.0
        %1798 = vmatpush2.msra.mxu0 0.0
        %1799 = vmatprep.subr.mxu0 0.0
        %1800 = vmatpush2.msra.mxu0 0.0
        %1801 = vmatprep.subr.mxu0 0.0
        %1802 = vmatpush2.msra.mxu0 0.0
        %1803 = vmatprep.subr.mxu0 0.0
        %1804 = vmatpush2.msra.mxu0 0.0
        %1805 = vmatprep.subr.mxu0 0.0
        %1806 = vmatpush2.msra.mxu0 0.0
        %1807 = vmatprep.subr.mxu0 0.0
        %1808 = vmatpush2.msra.mxu0 0.0
        %1809 = vmatprep.subr.mxu0 0.0
        %1810 = vmatpush2.msra.mxu0 0.0
        %1811 = vmatprep.mubr.f32.mxu0 0.0
        %1812 = vmatmul.mubr.f32.gmra.mxu0 %v1739
        %v1813 = vpop.f32.mrf.mxu0
        %v1814 = vadd.f32 0.0, %v1813
        %v1815 = vpop.f32.mrf.mxu0
        %v1816 = vadd.f32 0.0, %v1815
        %1817 = vdwg.mxu0
        %1818 = vmatprep.subr.mxu0 0.0
        %1819 = vmatpush1.msra.mxu0 0.0
        %1820 = vmatprep.subr.mxu0 0.0
        %1821 = vmatpush1.msra.mxu0 0.0
        %1822 = vmatprep.subr.mxu0 0.0
        %1823 = vmatpush1.msra.mxu0 0.0
        %1824 = vmatprep.subr.mxu0 0.0
        %1825 = vmatpush1.msra.mxu0 0.0
        %1826 = vmatprep.subr.mxu0 0.0
        %1827 = vmatpush1.msra.mxu0 0.0
        %1828 = vmatprep.subr.mxu0 0.0
        %1829 = vmatpush1.msra.mxu0 0.0
        %1830 = vmatprep.subr.mxu0 0.0
        %1831 = vmatpush1.msra.mxu0 0.0
        %1832 = vmatprep.subr.mxu0 0.0
        %1833 = vmatpush1.msra.mxu0 0.0
        %1834 = vmatprep.subr.mxu0 0.0
        %1835 = vmatpush1.msra.mxu0 0.0
        %1836 = vmatprep.subr.mxu0 0.0
        %1837 = vmatpush1.msra.mxu0 0.0
        %1838 = vmatprep.subr.mxu0 0.0
        %1839 = vmatpush1.msra.mxu0 0.0
        %1840 = vmatprep.subr.mxu0 0.0
        %1841 = vmatpush1.msra.mxu0 0.0
        %1842 = vmatprep.subr.mxu0 0.0
        %1843 = vmatpush1.msra.mxu0 0.0
        %1844 = vmatprep.subr.mxu0 0.0
        %1845 = vmatpush1.msra.mxu0 0.0
        %1846 = vmatprep.subr.mxu0 0.0
        %1847 = vmatpush1.msra.mxu0 0.0
        %1848 = vmatprep.subr.mxu0 0.0
        %1849 = vmatpush1.msra.mxu0 %v1745
        %1850 = vmatprep.subr.mxu0 0.0
        %1851 = vmatpush2.msra.mxu0 0.0
        %1852 = vmatprep.subr.mxu0 0.0
        %1853 = vmatpush2.msra.mxu0 0.0
        %1854 = vmatprep.subr.mxu0 0.0
        %1855 = vmatpush2.msra.mxu0 0.0
        %1856 = vmatprep.subr.mxu0 0.0
        %1857 = vmatpush2.msra.mxu0 0.0
        %1858 = vmatprep.subr.mxu0 0.0
        %1859 = vmatpush2.msra.mxu0 0.0
        %1860 = vmatprep.subr.mxu0 0.0
        %1861 = vmatpush2.msra.mxu0 0.0
        %1862 = vmatprep.subr.mxu0 0.0
        %1863 = vmatpush2.msra.mxu0 0.0
        %1864 = vmatprep.subr.mxu0 0.0
        %1865 = vmatpush2.msra.mxu0 0.0
        %1866 = vmatprep.subr.mxu0 0.0
        %1867 = vmatpush2.msra.mxu0 0.0
        %1868 = vmatprep.subr.mxu0 0.0
        %1869 = vmatpush2.msra.mxu0 0.0
        %1870 = vmatprep.subr.mxu0 0.0
        %1871 = vmatpush2.msra.mxu0 0.0
        %1872 = vmatprep.subr.mxu0 0.0
        %1873 = vmatpush2.msra.mxu0 0.0
        %1874 = vmatprep.subr.mxu0 0.0
        %1875 = vmatpush2.msra.mxu0 0.0
        %1876 = vmatprep.subr.mxu0 0.0
        %1877 = vmatpush2.msra.mxu0 0.0
        %1878 = vmatprep.subr.mxu0 0.0
        %1879 = vmatpush2.msra.mxu0 0.0
        %1880 = vmatprep.subr.mxu0 0.0
        %1881 = vmatpush2.msra.mxu0 0.0
        %1882 = vmatprep.mubr.f32.mxu0 0.0
        %1883 = vmatmul.mubr.f32.gmra.mxu0 %v1739
        %v1884 = vpop.f32.mrf.mxu0
        %v1885 = vadd.f32 0.0, %v1884
        %v1886 = vpop.f32.mrf.mxu0
        %1887 = vdwg.mxu0
        %1888 = vrot.lane.b32.xlu0 %v1717, 86
        %v1889 = vpop.permute.xlu0 %1888
        %1890 = vrot.lane.b32.xlu0 %v1725, 86
        %v1891 = vpop.permute.xlu0 %1890
        %1892 = vrot.lane.b32.xlu0 %v1718, 86
        %v1893 = vpop.permute.xlu0 %1892
        %1894 = vrot.lane.b32.xlu0 %v1726, 86
        %v1895 = vpop.permute.xlu0 %1894
        %v1896 = vsel %vm351, %v1889, %v1891
        %v1897 = vsel %vm351, %v1891, %v1893
        %v1898 = vsel %vm351, %v1893, %v1895
        %v1900 = vsel %vm191, %v1720, 0
        %v1902 = vsel %vm195, %v1896, 0
        %v1904 = vsel %vm195, %v1897, 0
        %v1906 = vsel %vm195, %v1898, 0
        %1908 = vmatprep.subr.mxu0 0.0
        %1909 = vmatpush1.msra.mxu0 0.0
        %1910 = vmatprep.subr.mxu0 0.0
        %1911 = vmatpush1.msra.mxu0 0.0
        %1912 = vmatprep.subr.mxu0 0.0
        %1913 = vmatpush1.msra.mxu0 0.0
        %1914 = vmatprep.subr.mxu0 0.0
        %1915 = vmatpush1.msra.mxu0 0.0
        %1916 = vmatprep.subr.mxu0 0.0
        %1917 = vmatpush1.msra.mxu0 0.0
        %1918 = vmatprep.subr.mxu0 0.0
        %1919 = vmatpush1.msra.mxu0 0.0
        %1920 = vmatprep.subr.mxu0 0.0
        %1921 = vmatpush1.msra.mxu0 0.0
        %1922 = vmatprep.subr.mxu0 0.0
        %1923 = vmatpush1.msra.mxu0 0.0
        %1924 = vmatprep.subr.mxu0 0.0
        %1925 = vmatpush1.msra.mxu0 0.0
        %1926 = vmatprep.subr.mxu0 0.0
        %1927 = vmatpush1.msra.mxu0 0.0
        %1928 = vmatprep.subr.mxu0 0.0
        %1929 = vmatpush1.msra.mxu0 0.0
        %1930 = vmatprep.subr.mxu0 0.0
        %1931 = vmatpush1.msra.mxu0 0.0
        %1932 = vmatprep.subr.mxu0 0.0
        %1933 = vmatpush1.msra.mxu0 0.0
        %1934 = vmatprep.subr.mxu0 0.0
        %1935 = vmatpush1.msra.mxu0 0.0
        %1936 = vmatprep.subr.mxu0 0.0
        %1937 = vmatpush1.msra.mxu0 0.0
        %1938 = vmatprep.subr.mxu0 %v1904
        %1939 = vmatpush1.msra.mxu0 %v1902
        %1940 = vmatprep.subr.mxu0 0.0
        %1941 = vmatpush2.msra.mxu0 0.0
        %1942 = vmatprep.subr.mxu0 0.0
        %1943 = vmatpush2.msra.mxu0 0.0
        %1944 = vmatprep.subr.mxu0 0.0
        %1945 = vmatpush2.msra.mxu0 0.0
        %1946 = vmatprep.subr.mxu0 0.0
        %1947 = vmatpush2.msra.mxu0 0.0
        %1948 = vmatprep.subr.mxu0 0.0
        %1949 = vmatpush2.msra.mxu0 0.0
        %1950 = vmatprep.subr.mxu0 0.0
        %1951 = vmatpush2.msra.mxu0 0.0
        %1952 = vmatprep.subr.mxu0 0.0
        %1953 = vmatpush2.msra.mxu0 0.0
        %1954 = vmatprep.subr.mxu0 0.0
        %1955 = vmatpush2.msra.mxu0 0.0
        %1956 = vmatprep.subr.mxu0 0.0
        %1957 = vmatpush2.msra.mxu0 0.0
        %1958 = vmatprep.subr.mxu0 0.0
        %1959 = vmatpush2.msra.mxu0 0.0
        %1960 = vmatprep.subr.mxu0 0.0
        %1961 = vmatpush2.msra.mxu0 0.0
        %1962 = vmatprep.subr.mxu0 0.0
        %1963 = vmatpush2.msra.mxu0 0.0
        %1964 = vmatprep.subr.mxu0 0.0
        %1965 = vmatpush2.msra.mxu0 0.0
        %1966 = vmatprep.subr.mxu0 0.0
        %1967 = vmatpush2.msra.mxu0 0.0
        %1968 = vmatprep.subr.mxu0 0.0
        %1969 = vmatpush2.msra.mxu0 0.0
        %1970 = vmatprep.subr.mxu0 0.0
        %1971 = vmatpush2.msra.mxu0 0.0
        %1972 = vmatprep.mubr.f32.mxu0 0.0
        %1973 = vmatmul.mubr.f32.gmra.mxu0 %v1900
        %v1974 = vpop.f32.mrf.mxu0
        %v1975 = vadd.f32 %v1814, %v1974
        %v1976 = vpop.f32.mrf.mxu0
        %v1977 = vadd.f32 %v1816, %v1976
        %1978 = vdwg.mxu0
        %1979 = vmatprep.subr.mxu0 0.0
        %1980 = vmatpush1.msra.mxu0 0.0
        %1981 = vmatprep.subr.mxu0 0.0
        %1982 = vmatpush1.msra.mxu0 0.0
        %1983 = vmatprep.subr.mxu0 0.0
        %1984 = vmatpush1.msra.mxu0 0.0
        %1985 = vmatprep.subr.mxu0 0.0
        %1986 = vmatpush1.msra.mxu0 0.0
        %1987 = vmatprep.subr.mxu0 0.0
        %1988 = vmatpush1.msra.mxu0 0.0
        %1989 = vmatprep.subr.mxu0 0.0
        %1990 = vmatpush1.msra.mxu0 0.0
        %1991 = vmatprep.subr.mxu0 0.0
        %1992 = vmatpush1.msra.mxu0 0.0
        %1993 = vmatprep.subr.mxu0 0.0
        %1994 = vmatpush1.msra.mxu0 0.0
        %1995 = vmatprep.subr.mxu0 0.0
        %1996 = vmatpush1.msra.mxu0 0.0
        %1997 = vmatprep.subr.mxu0 0.0
        %1998 = vmatpush1.msra.mxu0 0.0
        %1999 = vmatprep.subr.mxu0 0.0
        %2000 = vmatpush1.msra.mxu0 0.0
        %2001 = vmatprep.subr.mxu0 0.0
        %2002 = vmatpush1.msra.mxu0 0.0
        %2003 = vmatprep.subr.mxu0 0.0
        %2004 = vmatpush1.msra.mxu0 0.0
        %2005 = vmatprep.subr.mxu0 0.0
        %2006 = vmatpush1.msra.mxu0 0.0
        %2007 = vmatprep.subr.mxu0 0.0
        %2008 = vmatpush1.msra.mxu0 0.0
        %2009 = vmatprep.subr.mxu0 0.0
        %2010 = vmatpush1.msra.mxu0 %v1906
        %2011 = vmatprep.subr.mxu0 0.0
        %2012 = vmatpush2.msra.mxu0 0.0
        %2013 = vmatprep.subr.mxu0 0.0
        %2014 = vmatpush2.msra.mxu0 0.0
        %2015 = vmatprep.subr.mxu0 0.0
        %2016 = vmatpush2.msra.mxu0 0.0
        %2017 = vmatprep.subr.mxu0 0.0
        %2018 = vmatpush2.msra.mxu0 0.0
        %2019 = vmatprep.subr.mxu0 0.0
        %2020 = vmatpush2.msra.mxu0 0.0
        %2021 = vmatprep.subr.mxu0 0.0
        %2022 = vmatpush2.msra.mxu0 0.0
        %2023 = vmatprep.subr.mxu0 0.0
        %2024 = vmatpush2.msra.mxu0 0.0
        %2025 = vmatprep.subr.mxu0 0.0
        %2026 = vmatpush2.msra.mxu0 0.0
        %2027 = vmatprep.subr.mxu0 0.0
        %2028 = vmatpush2.msra.mxu0 0.0
        %2029 = vmatprep.subr.mxu0 0.0
        %2030 = vmatpush2.msra.mxu0 0.0
        %2031 = vmatprep.subr.mxu0 0.0
        %2032 = vmatpush2.msra.mxu0 0.0
        %2033 = vmatprep.subr.mxu0 0.0
        %2034 = vmatpush2.msra.mxu0 0.0
        %2035 = vmatprep.subr.mxu0 0.0
        %2036 = vmatpush2.msra.mxu0 0.0
        %2037 = vmatprep.subr.mxu0 0.0
        %2038 = vmatpush2.msra.mxu0 0.0
        %2039 = vmatprep.subr.mxu0 0.0
        %2040 = vmatpush2.msra.mxu0 0.0
        %2041 = vmatprep.subr.mxu0 0.0
        %2042 = vmatpush2.msra.mxu0 0.0
        %2043 = vmatprep.mubr.f32.mxu0 0.0
        %2044 = vmatmul.mubr.f32.gmra.mxu0 %v1900
        %v2045 = vpop.f32.mrf.mxu0
        %v2046 = vadd.f32 %v1885, %v2045
        %v2047 = vpop.f32.mrf.mxu0
        %2048 = vdwg.mxu0
        %v2049 = vld [vmem:[%s168] sm:$0xff]
        %v2050 = vld [vmem:[%s168 + $0x8] sm:$0xff]
        %s2051 = scalar_lea.vmem %s1, 44
        %v2052 = vld [vmem:[%s2051] sm:$0xf]
        %v2055 = vcombine.high %v2049, %v2049
        %v2056 = vcombine.high %v2050, %v2050
        %2057 = vrot.lane.b32.xlu0 %v2049, 106
        %v2058 = vpop.permute.xlu0 %2057
        %2059 = vrot.lane.b32.xlu0 %v2055, 106
        %v2060 = vpop.permute.xlu0 %2059
        %2061 = vrot.lane.b32.xlu0 %v2050, 106
        %v2062 = vpop.permute.xlu0 %2061
        %2063 = vrot.lane.b32.xlu0 %v2056, 106
        %v2064 = vpop.permute.xlu0 %2063
        %v2065 = vsel %vm694, %v2058, %v2060
        %v2066 = vsel %vm694, %v2060, %v2062
        %v2067 = vsel %vm694, %v2062, %v2064
        %v2069 = vsel %vm191, %v2052, 0
        %v2071 = vsel %vm195, %v2065, 0
        %v2073 = vsel %vm195, %v2066, 0
        %v2075 = vsel %vm195, %v2067, 0
        %2077 = vmatprep.subr.mxu0 0.0
        %2078 = vmatpush1.msra.mxu0 0.0
        %2079 = vmatprep.subr.mxu0 0.0
        %2080 = vmatpush1.msra.mxu0 0.0
        %2081 = vmatprep.subr.mxu0 0.0
        %2082 = vmatpush1.msra.mxu0 0.0
        %2083 = vmatprep.subr.mxu0 0.0
        %2084 = vmatpush1.msra.mxu0 0.0
        %2085 = vmatprep.subr.mxu0 0.0
        %2086 = vmatpush1.msra.mxu0 0.0
        %2087 = vmatprep.subr.mxu0 0.0
        %2088 = vmatpush1.msra.mxu0 0.0
        %2089 = vmatprep.subr.mxu0 0.0
        %2090 = vmatpush1.msra.mxu0 0.0
        %2091 = vmatprep.subr.mxu0 0.0
        %2092 = vmatpush1.msra.mxu0 0.0
        %2093 = vmatprep.subr.mxu0 0.0
        %2094 = vmatpush1.msra.mxu0 0.0
        %2095 = vmatprep.subr.mxu0 0.0
        %2096 = vmatpush1.msra.mxu0 0.0
        %2097 = vmatprep.subr.mxu0 0.0
        %2098 = vmatpush1.msra.mxu0 0.0
        %2099 = vmatprep.subr.mxu0 0.0
        %2100 = vmatpush1.msra.mxu0 0.0
        %2101 = vmatprep.subr.mxu0 0.0
        %2102 = vmatpush1.msra.mxu0 0.0
        %2103 = vmatprep.subr.mxu0 0.0
        %2104 = vmatpush1.msra.mxu0 0.0
        %2105 = vmatprep.subr.mxu0 0.0
        %2106 = vmatpush1.msra.mxu0 0.0
        %2107 = vmatprep.subr.mxu0 %v2073
        %2108 = vmatpush1.msra.mxu0 %v2071
        %2109 = vmatprep.subr.mxu0 0.0
        %2110 = vmatpush2.msra.mxu0 0.0
        %2111 = vmatprep.subr.mxu0 0.0
        %2112 = vmatpush2.msra.mxu0 0.0
        %2113 = vmatprep.subr.mxu0 0.0
        %2114 = vmatpush2.msra.mxu0 0.0
        %2115 = vmatprep.subr.mxu0 0.0
        %2116 = vmatpush2.msra.mxu0 0.0
        %2117 = vmatprep.subr.mxu0 0.0
        %2118 = vmatpush2.msra.mxu0 0.0
        %2119 = vmatprep.subr.mxu0 0.0
        %2120 = vmatpush2.msra.mxu0 0.0
        %2121 = vmatprep.subr.mxu0 0.0
        %2122 = vmatpush2.msra.mxu0 0.0
        %2123 = vmatprep.subr.mxu0 0.0
        %2124 = vmatpush2.msra.mxu0 0.0
        %2125 = vmatprep.subr.mxu0 0.0
        %2126 = vmatpush2.msra.mxu0 0.0
        %2127 = vmatprep.subr.mxu0 0.0
        %2128 = vmatpush2.msra.mxu0 0.0
        %2129 = vmatprep.subr.mxu0 0.0
        %2130 = vmatpush2.msra.mxu0 0.0
        %2131 = vmatprep.subr.mxu0 0.0
        %2132 = vmatpush2.msra.mxu0 0.0
        %2133 = vmatprep.subr.mxu0 0.0
        %2134 = vmatpush2.msra.mxu0 0.0
        %2135 = vmatprep.subr.mxu0 0.0
        %2136 = vmatpush2.msra.mxu0 0.0
        %2137 = vmatprep.subr.mxu0 0.0
        %2138 = vmatpush2.msra.mxu0 0.0
        %2139 = vmatprep.subr.mxu0 0.0
        %2140 = vmatpush2.msra.mxu0 0.0
        %2141 = vmatprep.mubr.f32.mxu0 0.0
        %2142 = vmatmul.mubr.f32.gmra.mxu0 %v2069
        %v2143 = vpop.f32.mrf.mxu0
        %v2144 = vadd.f32 0.0, %v2143
        %v2145 = vpop.f32.mrf.mxu0
        %v2146 = vadd.f32 0.0, %v2145
        %2147 = vdwg.mxu0
        %2148 = vmatprep.subr.mxu0 0.0
        %2149 = vmatpush1.msra.mxu0 0.0
        %2150 = vmatprep.subr.mxu0 0.0
        %2151 = vmatpush1.msra.mxu0 0.0
        %2152 = vmatprep.subr.mxu0 0.0
        %2153 = vmatpush1.msra.mxu0 0.0
        %2154 = vmatprep.subr.mxu0 0.0
        %2155 = vmatpush1.msra.mxu0 0.0
        %2156 = vmatprep.subr.mxu0 0.0
        %2157 = vmatpush1.msra.mxu0 0.0
        %2158 = vmatprep.subr.mxu0 0.0
        %2159 = vmatpush1.msra.mxu0 0.0
        %2160 = vmatprep.subr.mxu0 0.0
        %2161 = vmatpush1.msra.mxu0 0.0
        %2162 = vmatprep.subr.mxu0 0.0
        %2163 = vmatpush1.msra.mxu0 0.0
        %2164 = vmatprep.subr.mxu0 0.0
        %2165 = vmatpush1.msra.mxu0 0.0
        %2166 = vmatprep.subr.mxu0 0.0
        %2167 = vmatpush1.msra.mxu0 0.0
        %2168 = vmatprep.subr.mxu0 0.0
        %2169 = vmatpush1.msra.mxu0 0.0
        %2170 = vmatprep.subr.mxu0 0.0
        %2171 = vmatpush1.msra.mxu0 0.0
        %2172 = vmatprep.subr.mxu0 0.0
        %2173 = vmatpush1.msra.mxu0 0.0
        %2174 = vmatprep.subr.mxu0 0.0
        %2175 = vmatpush1.msra.mxu0 0.0
        %2176 = vmatprep.subr.mxu0 0.0
        %2177 = vmatpush1.msra.mxu0 0.0
        %2178 = vmatprep.subr.mxu0 0.0
        %2179 = vmatpush1.msra.mxu0 %v2075
        %2180 = vmatprep.subr.mxu0 0.0
        %2181 = vmatpush2.msra.mxu0 0.0
        %2182 = vmatprep.subr.mxu0 0.0
        %2183 = vmatpush2.msra.mxu0 0.0
        %2184 = vmatprep.subr.mxu0 0.0
        %2185 = vmatpush2.msra.mxu0 0.0
        %2186 = vmatprep.subr.mxu0 0.0
        %2187 = vmatpush2.msra.mxu0 0.0
        %2188 = vmatprep.subr.mxu0 0.0
        %2189 = vmatpush2.msra.mxu0 0.0
        %2190 = vmatprep.subr.mxu0 0.0
        %2191 = vmatpush2.msra.mxu0 0.0
        %2192 = vmatprep.subr.mxu0 0.0
        %2193 = vmatpush2.msra.mxu0 0.0
        %2194 = vmatprep.subr.mxu0 0.0
        %2195 = vmatpush2.msra.mxu0 0.0
        %2196 = vmatprep.subr.mxu0 0.0
        %2197 = vmatpush2.msra.mxu0 0.0
        %2198 = vmatprep.subr.mxu0 0.0
        %2199 = vmatpush2.msra.mxu0 0.0
        %2200 = vmatprep.subr.mxu0 0.0
        %2201 = vmatpush2.msra.mxu0 0.0
        %2202 = vmatprep.subr.mxu0 0.0
        %2203 = vmatpush2.msra.mxu0 0.0
        %2204 = vmatprep.subr.mxu0 0.0
        %2205 = vmatpush2.msra.mxu0 0.0
        %2206 = vmatprep.subr.mxu0 0.0
        %2207 = vmatpush2.msra.mxu0 0.0
        %2208 = vmatprep.subr.mxu0 0.0
        %2209 = vmatpush2.msra.mxu0 0.0
        %2210 = vmatprep.subr.mxu0 0.0
        %2211 = vmatpush2.msra.mxu0 0.0
        %2212 = vmatprep.mubr.f32.mxu0 0.0
        %2213 = vmatmul.mubr.f32.gmra.mxu0 %v2069
        %v2214 = vpop.f32.mrf.mxu0
        %v2215 = vadd.f32 0.0, %v2214
        %v2216 = vpop.f32.mrf.mxu0
        %2217 = vdwg.mxu0
        %v2218 = vadd.f32 %v1975, %v2144
        %v2219 = vadd.f32 %v1977, %v2146
        %v2220 = vadd.f32 %v2046, %v2215
        %v2221 = vld [vmem:[%s168] sm:$0xff]
        %v2222 = vld [vmem:[%s168 + $0x8] sm:$0xff]
        %s2223 = scalar_lea.vmem %s1, 48
        %v2224 = vld [vmem:[%s2223] sm:$0xf]
        %v2227 = vcombine.high %v2221, %v2221
        %v2228 = vcombine.high %v2222, %v2222
        %2229 = vrot.lane.b32.xlu0 %v2221, 107
        %v2230 = vpop.permute.xlu0 %2229
        %2231 = vrot.lane.b32.xlu0 %v2227, 107
        %v2232 = vpop.permute.xlu0 %2231
        %2233 = vrot.lane.b32.xlu0 %v2222, 107
        %v2234 = vpop.permute.xlu0 %2233
        %2235 = vrot.lane.b32.xlu0 %v2228, 107
        %v2236 = vpop.permute.xlu0 %2235
        %v2237 = vsel %vm867, %v2230, %v2232
        %v2238 = vsel %vm867, %v2232, %v2234
        %v2239 = vsel %vm867, %v2234, %v2236
        %v2241 = vsel %vm191, %v2224, 0
        %v2243 = vsel %vm195, %v2237, 0
        %v2245 = vsel %vm195, %v2238, 0
        %v2247 = vsel %vm195, %v2239, 0
        %2249 = vmatprep.subr.mxu0 0.0
        %2250 = vmatpush1.msra.mxu0 0.0
        %2251 = vmatprep.subr.mxu0 0.0
        %2252 = vmatpush1.msra.mxu0 0.0
        %2253 = vmatprep.subr.mxu0 0.0
        %2254 = vmatpush1.msra.mxu0 0.0
        %2255 = vmatprep.subr.mxu0 0.0
        %2256 = vmatpush1.msra.mxu0 0.0
        %2257 = vmatprep.subr.mxu0 0.0
        %2258 = vmatpush1.msra.mxu0 0.0
        %2259 = vmatprep.subr.mxu0 0.0
        %2260 = vmatpush1.msra.mxu0 0.0
        %2261 = vmatprep.subr.mxu0 0.0
        %2262 = vmatpush1.msra.mxu0 0.0
        %2263 = vmatprep.subr.mxu0 0.0
        %2264 = vmatpush1.msra.mxu0 0.0
        %2265 = vmatprep.subr.mxu0 0.0
        %2266 = vmatpush1.msra.mxu0 0.0
        %2267 = vmatprep.subr.mxu0 0.0
        %2268 = vmatpush1.msra.mxu0 0.0
        %2269 = vmatprep.subr.mxu0 0.0
        %2270 = vmatpush1.msra.mxu0 0.0
        %2271 = vmatprep.subr.mxu0 0.0
        %2272 = vmatpush1.msra.mxu0 0.0
        %2273 = vmatprep.subr.mxu0 0.0
        %2274 = vmatpush1.msra.mxu0 0.0
        %2275 = vmatprep.subr.mxu0 0.0
        %2276 = vmatpush1.msra.mxu0 0.0
        %2277 = vmatprep.subr.mxu0 0.0
        %2278 = vmatpush1.msra.mxu0 0.0
        %2279 = vmatprep.subr.mxu0 %v2245
        %2280 = vmatpush1.msra.mxu0 %v2243
        %2281 = vmatprep.subr.mxu0 0.0
        %2282 = vmatpush2.msra.mxu0 0.0
        %2283 = vmatprep.subr.mxu0 0.0
        %2284 = vmatpush2.msra.mxu0 0.0
        %2285 = vmatprep.subr.mxu0 0.0
        %2286 = vmatpush2.msra.mxu0 0.0
        %2287 = vmatprep.subr.mxu0 0.0
        %2288 = vmatpush2.msra.mxu0 0.0
        %2289 = vmatprep.subr.mxu0 0.0
        %2290 = vmatpush2.msra.mxu0 0.0
        %2291 = vmatprep.subr.mxu0 0.0
        %2292 = vmatpush2.msra.mxu0 0.0
        %2293 = vmatprep.subr.mxu0 0.0
        %2294 = vmatpush2.msra.mxu0 0.0
        %2295 = vmatprep.subr.mxu0 0.0
        %2296 = vmatpush2.msra.mxu0 0.0
        %2297 = vmatprep.subr.mxu0 0.0
        %2298 = vmatpush2.msra.mxu0 0.0
        %2299 = vmatprep.subr.mxu0 0.0
        %2300 = vmatpush2.msra.mxu0 0.0
        %2301 = vmatprep.subr.mxu0 0.0
        %2302 = vmatpush2.msra.mxu0 0.0
        %2303 = vmatprep.subr.mxu0 0.0
        %2304 = vmatpush2.msra.mxu0 0.0
        %2305 = vmatprep.subr.mxu0 0.0
        %2306 = vmatpush2.msra.mxu0 0.0
        %2307 = vmatprep.subr.mxu0 0.0
        %2308 = vmatpush2.msra.mxu0 0.0
        %2309 = vmatprep.subr.mxu0 0.0
        %2310 = vmatpush2.msra.mxu0 0.0
        %2311 = vmatprep.subr.mxu0 0.0
        %2312 = vmatpush2.msra.mxu0 0.0
        %2313 = vmatprep.mubr.f32.mxu0 0.0
        %2314 = vmatmul.mubr.f32.gmra.mxu0 %v2241
        %v2315 = vpop.f32.mrf.mxu0
        %v2316 = vadd.f32 0.0, %v2315
        %v2317 = vpop.f32.mrf.mxu0
        %v2318 = vadd.f32 0.0, %v2317
        %2319 = vdwg.mxu0
        %2320 = vmatprep.subr.mxu0 0.0
        %2321 = vmatpush1.msra.mxu0 0.0
        %2322 = vmatprep.subr.mxu0 0.0
        %2323 = vmatpush1.msra.mxu0 0.0
        %2324 = vmatprep.subr.mxu0 0.0
        %2325 = vmatpush1.msra.mxu0 0.0
        %2326 = vmatprep.subr.mxu0 0.0
        %2327 = vmatpush1.msra.mxu0 0.0
        %2328 = vmatprep.subr.mxu0 0.0
        %2329 = vmatpush1.msra.mxu0 0.0
        %2330 = vmatprep.subr.mxu0 0.0
        %2331 = vmatpush1.msra.mxu0 0.0
        %2332 = vmatprep.subr.mxu0 0.0
        %2333 = vmatpush1.msra.mxu0 0.0
        %2334 = vmatprep.subr.mxu0 0.0
        %2335 = vmatpush1.msra.mxu0 0.0
        %2336 = vmatprep.subr.mxu0 0.0
        %2337 = vmatpush1.msra.mxu0 0.0
        %2338 = vmatprep.subr.mxu0 0.0
        %2339 = vmatpush1.msra.mxu0 0.0
        %2340 = vmatprep.subr.mxu0 0.0
        %2341 = vmatpush1.msra.mxu0 0.0
        %2342 = vmatprep.subr.mxu0 0.0
        %2343 = vmatpush1.msra.mxu0 0.0
        %2344 = vmatprep.subr.mxu0 0.0
        %2345 = vmatpush1.msra.mxu0 0.0
        %2346 = vmatprep.subr.mxu0 0.0
        %2347 = vmatpush1.msra.mxu0 0.0
        %2348 = vmatprep.subr.mxu0 0.0
        %2349 = vmatpush1.msra.mxu0 0.0
        %2350 = vmatprep.subr.mxu0 0.0
        %2351 = vmatpush1.msra.mxu0 %v2247
        %2352 = vmatprep.subr.mxu0 0.0
        %2353 = vmatpush2.msra.mxu0 0.0
        %2354 = vmatprep.subr.mxu0 0.0
        %2355 = vmatpush2.msra.mxu0 0.0
        %2356 = vmatprep.subr.mxu0 0.0
        %2357 = vmatpush2.msra.mxu0 0.0
        %2358 = vmatprep.subr.mxu0 0.0
        %2359 = vmatpush2.msra.mxu0 0.0
        %2360 = vmatprep.subr.mxu0 0.0
        %2361 = vmatpush2.msra.mxu0 0.0
        %2362 = vmatprep.subr.mxu0 0.0
        %2363 = vmatpush2.msra.mxu0 0.0
        %2364 = vmatprep.subr.mxu0 0.0
        %2365 = vmatpush2.msra.mxu0 0.0
        %2366 = vmatprep.subr.mxu0 0.0
        %2367 = vmatpush2.msra.mxu0 0.0
        %2368 = vmatprep.subr.mxu0 0.0
        %2369 = vmatpush2.msra.mxu0 0.0
        %2370 = vmatprep.subr.mxu0 0.0
        %2371 = vmatpush2.msra.mxu0 0.0
        %2372 = vmatprep.subr.mxu0 0.0
        %2373 = vmatpush2.msra.mxu0 0.0
        %2374 = vmatprep.subr.mxu0 0.0
        %2375 = vmatpush2.msra.mxu0 0.0
        %2376 = vmatprep.subr.mxu0 0.0
        %2377 = vmatpush2.msra.mxu0 0.0
        %2378 = vmatprep.subr.mxu0 0.0
        %2379 = vmatpush2.msra.mxu0 0.0
        %2380 = vmatprep.subr.mxu0 0.0
        %2381 = vmatpush2.msra.mxu0 0.0
        %2382 = vmatprep.subr.mxu0 0.0
        %2383 = vmatpush2.msra.mxu0 0.0
        %2384 = vmatprep.mubr.f32.mxu0 0.0
        %2385 = vmatmul.mubr.f32.gmra.mxu0 %v2241
        %v2386 = vpop.f32.mrf.mxu0
        %v2387 = vadd.f32 0.0, %v2386
        %v2388 = vpop.f32.mrf.mxu0
        %2389 = vdwg.mxu0
        %v2390 = vadd.f32 %v2218, %v2316
        %v2391 = vadd.f32 %v2219, %v2318
        %v2392 = vadd.f32 %v2220, %v2387
        %v2393 = vld [vmem:[%s168] sm:$0xff]
        %v2394 = vld [vmem:[%s168 + $0x8] sm:$0xff]
        %s2395 = scalar_lea.vmem %s1, 52
        %v2396 = vld [vmem:[%s2395] sm:$0xf]
        %v2399 = vcombine.high %v2393, %v2393
        %v2400 = vcombine.high %v2394, %v2394
        %2401 = vrot.lane.b32.xlu0 %v2393, 126
        %v2402 = vpop.permute.xlu0 %2401
        %2403 = vrot.lane.b32.xlu0 %v2399, 126
        %v2404 = vpop.permute.xlu0 %2403
        %2405 = vrot.lane.b32.xlu0 %v2394, 126
        %v2406 = vpop.permute.xlu0 %2405
        %2407 = vrot.lane.b32.xlu0 %v2400, 126
        %v2408 = vpop.permute.xlu0 %2407
        %v2409 = vsel %vm1213, %v2402, %v2404
        %v2410 = vsel %vm1213, %v2404, %v2406
        %v2411 = vsel %vm1213, %v2406, %v2408
        %v2413 = vsel %vm191, %v2396, 0
        %v2415 = vsel %vm195, %v2409, 0
        %v2417 = vsel %vm195, %v2410, 0
        %v2419 = vsel %vm195, %v2411, 0
        %2421 = vmatprep.subr.mxu0 0.0
        %2422 = vmatpush1.msra.mxu0 0.0
        %2423 = vmatprep.subr.mxu0 0.0
        %2424 = vmatpush1.msra.mxu0 0.0
        %2425 = vmatprep.subr.mxu0 0.0
        %2426 = vmatpush1.msra.mxu0 0.0
        %2427 = vmatprep.subr.mxu0 0.0
        %2428 = vmatpush1.msra.mxu0 0.0
        %2429 = vmatprep.subr.mxu0 0.0
        %2430 = vmatpush1.msra.mxu0 0.0
        %2431 = vmatprep.subr.mxu0 0.0
        %2432 = vmatpush1.msra.mxu0 0.0
        %2433 = vmatprep.subr.mxu0 0.0
        %2434 = vmatpush1.msra.mxu0 0.0
        %2435 = vmatprep.subr.mxu0 0.0
        %2436 = vmatpush1.msra.mxu0 0.0
        %2437 = vmatprep.subr.mxu0 0.0
        %2438 = vmatpush1.msra.mxu0 0.0
        %2439 = vmatprep.subr.mxu0 0.0
        %2440 = vmatpush1.msra.mxu0 0.0
        %2441 = vmatprep.subr.mxu0 0.0
        %2442 = vmatpush1.msra.mxu0 0.0
        %2443 = vmatprep.subr.mxu0 0.0
        %2444 = vmatpush1.msra.mxu0 0.0
        %2445 = vmatprep.subr.mxu0 0.0
        %2446 = vmatpush1.msra.mxu0 0.0
        %2447 = vmatprep.subr.mxu0 0.0
        %2448 = vmatpush1.msra.mxu0 0.0
        %2449 = vmatprep.subr.mxu0 0.0
        %2450 = vmatpush1.msra.mxu0 0.0
        %2451 = vmatprep.subr.mxu0 %v2417
        %2452 = vmatpush1.msra.mxu0 %v2415
        %2453 = vmatprep.subr.mxu0 0.0
        %2454 = vmatpush2.msra.mxu0 0.0
        %2455 = vmatprep.subr.mxu0 0.0
        %2456 = vmatpush2.msra.mxu0 0.0
        %2457 = vmatprep.subr.mxu0 0.0
        %2458 = vmatpush2.msra.mxu0 0.0
        %2459 = vmatprep.subr.mxu0 0.0
        %2460 = vmatpush2.msra.mxu0 0.0
        %2461 = vmatprep.subr.mxu0 0.0
        %2462 = vmatpush2.msra.mxu0 0.0
        %2463 = vmatprep.subr.mxu0 0.0
        %2464 = vmatpush2.msra.mxu0 0.0
        %2465 = vmatprep.subr.mxu0 0.0
        %2466 = vmatpush2.msra.mxu0 0.0
        %2467 = vmatprep.subr.mxu0 0.0
        %2468 = vmatpush2.msra.mxu0 0.0
        %2469 = vmatprep.subr.mxu0 0.0
        %2470 = vmatpush2.msra.mxu0 0.0
        %2471 = vmatprep.subr.mxu0 0.0
        %2472 = vmatpush2.msra.mxu0 0.0
        %2473 = vmatprep.subr.mxu0 0.0
        %2474 = vmatpush2.msra.mxu0 0.0
        %2475 = vmatprep.subr.mxu0 0.0
        %2476 = vmatpush2.msra.mxu0 0.0
        %2477 = vmatprep.subr.mxu0 0.0
        %2478 = vmatpush2.msra.mxu0 0.0
        %2479 = vmatprep.subr.mxu0 0.0
        %2480 = vmatpush2.msra.mxu0 0.0
        %2481 = vmatprep.subr.mxu0 0.0
        %2482 = vmatpush2.msra.mxu0 0.0
        %2483 = vmatprep.subr.mxu0 0.0
        %2484 = vmatpush2.msra.mxu0 0.0
        %2485 = vmatprep.mubr.f32.mxu0 0.0
        %2486 = vmatmul.mubr.f32.gmra.mxu0 %v2413
        %v2487 = vpop.f32.mrf.mxu0
        %v2488 = vadd.f32 0.0, %v2487
        %v2489 = vpop.f32.mrf.mxu0
        %v2490 = vadd.f32 0.0, %v2489
        %2491 = vdwg.mxu0
        %2492 = vmatprep.subr.mxu0 0.0
        %2493 = vmatpush1.msra.mxu0 0.0
        %2494 = vmatprep.subr.mxu0 0.0
        %2495 = vmatpush1.msra.mxu0 0.0
        %2496 = vmatprep.subr.mxu0 0.0
        %2497 = vmatpush1.msra.mxu0 0.0
        %2498 = vmatprep.subr.mxu0 0.0
        %2499 = vmatpush1.msra.mxu0 0.0
        %2500 = vmatprep.subr.mxu0 0.0
        %2501 = vmatpush1.msra.mxu0 0.0
        %2502 = vmatprep.subr.mxu0 0.0
        %2503 = vmatpush1.msra.mxu0 0.0
        %2504 = vmatprep.subr.mxu0 0.0
        %2505 = vmatpush1.msra.mxu0 0.0
        %2506 = vmatprep.subr.mxu0 0.0
        %2507 = vmatpush1.msra.mxu0 0.0
        %2508 = vmatprep.subr.mxu0 0.0
        %2509 = vmatpush1.msra.mxu0 0.0
        %2510 = vmatprep.subr.mxu0 0.0
        %2511 = vmatpush1.msra.mxu0 0.0
        %2512 = vmatprep.subr.mxu0 0.0
        %2513 = vmatpush1.msra.mxu0 0.0
        %2514 = vmatprep.subr.mxu0 0.0
        %2515 = vmatpush1.msra.mxu0 0.0
        %2516 = vmatprep.subr.mxu0 0.0
        %2517 = vmatpush1.msra.mxu0 0.0
        %2518 = vmatprep.subr.mxu0 0.0
        %2519 = vmatpush1.msra.mxu0 0.0
        %2520 = vmatprep.subr.mxu0 0.0
        %2521 = vmatpush1.msra.mxu0 0.0
        %2522 = vmatprep.subr.mxu0 0.0
        %2523 = vmatpush1.msra.mxu0 %v2419
        %2524 = vmatprep.subr.mxu0 0.0
        %2525 = vmatpush2.msra.mxu0 0.0
        %2526 = vmatprep.subr.mxu0 0.0
        %2527 = vmatpush2.msra.mxu0 0.0
        %2528 = vmatprep.subr.mxu0 0.0
        %2529 = vmatpush2.msra.mxu0 0.0
        %2530 = vmatprep.subr.mxu0 0.0
        %2531 = vmatpush2.msra.mxu0 0.0
        %2532 = vmatprep.subr.mxu0 0.0
        %2533 = vmatpush2.msra.mxu0 0.0
        %2534 = vmatprep.subr.mxu0 0.0
        %2535 = vmatpush2.msra.mxu0 0.0
        %2536 = vmatprep.subr.mxu0 0.0
        %2537 = vmatpush2.msra.mxu0 0.0
        %2538 = vmatprep.subr.mxu0 0.0
        %2539 = vmatpush2.msra.mxu0 0.0
        %2540 = vmatprep.subr.mxu0 0.0
        %2541 = vmatpush2.msra.mxu0 0.0
        %2542 = vmatprep.subr.mxu0 0.0
        %2543 = vmatpush2.msra.mxu0 0.0
        %2544 = vmatprep.subr.mxu0 0.0
        %2545 = vmatpush2.msra.mxu0 0.0
        %2546 = vmatprep.subr.mxu0 0.0
        %2547 = vmatpush2.msra.mxu0 0.0
        %2548 = vmatprep.subr.mxu0 0.0
        %2549 = vmatpush2.msra.mxu0 0.0
        %2550 = vmatprep.subr.mxu0 0.0
        %2551 = vmatpush2.msra.mxu0 0.0
        %2552 = vmatprep.subr.mxu0 0.0
        %2553 = vmatpush2.msra.mxu0 0.0
        %2554 = vmatprep.subr.mxu0 0.0
        %2555 = vmatpush2.msra.mxu0 0.0
        %2556 = vmatprep.mubr.f32.mxu0 0.0
        %2557 = vmatmul.mubr.f32.gmra.mxu0 %v2413
        %v2558 = vpop.f32.mrf.mxu0
        %v2559 = vadd.f32 0.0, %v2558
        %v2560 = vpop.f32.mrf.mxu0
        %2561 = vdwg.mxu0
        %v2562 = vadd.f32 %v2390, %v2488
        %v2563 = vadd.f32 %v2391, %v2490
        %v2564 = vadd.f32 %v2392, %v2559
        %v2565 = vld [vmem:[%s168] sm:$0xff]
        %v2566 = vld [vmem:[%s168 + $0x8] sm:$0xff]
        %s2567 = scalar_lea.vmem %s1, 56
        %v2568 = vld [vmem:[%s2567] sm:$0xf]
        %v2571 = vcombine.high %v2565, %v2565
        %v2572 = vcombine.high %v2566, %v2566
        %2573 = vrot.lane.b32.xlu0 %v2565, 127
        %v2574 = vpop.permute.xlu0 %2573
        %2575 = vrot.lane.b32.xlu0 %v2571, 127
        %v2576 = vpop.permute.xlu0 %2575
        %2577 = vrot.lane.b32.xlu0 %v2566, 127
        %v2578 = vpop.permute.xlu0 %2577
        %2579 = vrot.lane.b32.xlu0 %v2572, 127
        %v2580 = vpop.permute.xlu0 %2579
        %v2581 = vsel %vm1386, %v2574, %v2576
        %v2582 = vsel %vm1386, %v2576, %v2578
        %v2583 = vsel %vm1386, %v2578, %v2580
        %v2585 = vsel %vm191, %v2568, 0
        %v2587 = vsel %vm195, %v2581, 0
        %v2589 = vsel %vm195, %v2582, 0
        %v2591 = vsel %vm195, %v2583, 0
        %2593 = vmatprep.subr.mxu0 0.0
        %2594 = vmatpush1.msra.mxu0 0.0
        %2595 = vmatprep.subr.mxu0 0.0
        %2596 = vmatpush1.msra.mxu0 0.0
        %2597 = vmatprep.subr.mxu0 0.0
        %2598 = vmatpush1.msra.mxu0 0.0
        %2599 = vmatprep.subr.mxu0 0.0
        %2600 = vmatpush1.msra.mxu0 0.0
        %2601 = vmatprep.subr.mxu0 0.0
        %2602 = vmatpush1.msra.mxu0 0.0
        %2603 = vmatprep.subr.mxu0 0.0
        %2604 = vmatpush1.msra.mxu0 0.0
        %2605 = vmatprep.subr.mxu0 0.0
        %2606 = vmatpush1.msra.mxu0 0.0
        %2607 = vmatprep.subr.mxu0 0.0
        %2608 = vmatpush1.msra.mxu0 0.0
        %2609 = vmatprep.subr.mxu0 0.0
        %2610 = vmatpush1.msra.mxu0 0.0
        %2611 = vmatprep.subr.mxu0 0.0
        %2612 = vmatpush1.msra.mxu0 0.0
        %2613 = vmatprep.subr.mxu0 0.0
        %2614 = vmatpush1.msra.mxu0 0.0
        %2615 = vmatprep.subr.mxu0 0.0
        %2616 = vmatpush1.msra.mxu0 0.0
        %2617 = vmatprep.subr.mxu0 0.0
        %2618 = vmatpush1.msra.mxu0 0.0
        %2619 = vmatprep.subr.mxu0 0.0
        %2620 = vmatpush1.msra.mxu0 0.0
        %2621 = vmatprep.subr.mxu0 0.0
        %2622 = vmatpush1.msra.mxu0 0.0
        %2623 = vmatprep.subr.mxu0 %v2589
        %2624 = vmatpush1.msra.mxu0 %v2587
        %2625 = vmatprep.subr.mxu0 0.0
        %2626 = vmatpush2.msra.mxu0 0.0
        %2627 = vmatprep.subr.mxu0 0.0
        %2628 = vmatpush2.msra.mxu0 0.0
        %2629 = vmatprep.subr.mxu0 0.0
        %2630 = vmatpush2.msra.mxu0 0.0
        %2631 = vmatprep.subr.mxu0 0.0
        %2632 = vmatpush2.msra.mxu0 0.0
        %2633 = vmatprep.subr.mxu0 0.0
        %2634 = vmatpush2.msra.mxu0 0.0
        %2635 = vmatprep.subr.mxu0 0.0
        %2636 = vmatpush2.msra.mxu0 0.0
        %2637 = vmatprep.subr.mxu0 0.0
        %2638 = vmatpush2.msra.mxu0 0.0
        %2639 = vmatprep.subr.mxu0 0.0
        %2640 = vmatpush2.msra.mxu0 0.0
        %2641 = vmatprep.subr.mxu0 0.0
        %2642 = vmatpush2.msra.mxu0 0.0
        %2643 = vmatprep.subr.mxu0 0.0
        %2644 = vmatpush2.msra.mxu0 0.0
        %2645 = vmatprep.subr.mxu0 0.0
        %2646 = vmatpush2.msra.mxu0 0.0
        %2647 = vmatprep.subr.mxu0 0.0
        %2648 = vmatpush2.msra.mxu0 0.0
        %2649 = vmatprep.subr.mxu0 0.0
        %2650 = vmatpush2.msra.mxu0 0.0
        %2651 = vmatprep.subr.mxu0 0.0
        %2652 = vmatpush2.msra.mxu0 0.0
        %2653 = vmatprep.subr.mxu0 0.0
        %2654 = vmatpush2.msra.mxu0 0.0
        %2655 = vmatprep.subr.mxu0 0.0
        %2656 = vmatpush2.msra.mxu0 0.0
        %2657 = vmatprep.mubr.f32.mxu0 0.0
        %2658 = vmatmul.mubr.f32.gmra.mxu0 %v2585
        %v2659 = vpop.f32.mrf.mxu0
        %v2660 = vadd.f32 0.0, %v2659
        %v2661 = vpop.f32.mrf.mxu0
        %v2662 = vadd.f32 0.0, %v2661
        %2663 = vdwg.mxu0
        %2664 = vmatprep.subr.mxu0 0.0
        %2665 = vmatpush1.msra.mxu0 0.0
        %2666 = vmatprep.subr.mxu0 0.0
        %2667 = vmatpush1.msra.mxu0 0.0
        %2668 = vmatprep.subr.mxu0 0.0
        %2669 = vmatpush1.msra.mxu0 0.0
        %2670 = vmatprep.subr.mxu0 0.0
        %2671 = vmatpush1.msra.mxu0 0.0
        %2672 = vmatprep.subr.mxu0 0.0
        %2673 = vmatpush1.msra.mxu0 0.0
        %2674 = vmatprep.subr.mxu0 0.0
        %2675 = vmatpush1.msra.mxu0 0.0
        %2676 = vmatprep.subr.mxu0 0.0
        %2677 = vmatpush1.msra.mxu0 0.0
        %2678 = vmatprep.subr.mxu0 0.0
        %2679 = vmatpush1.msra.mxu0 0.0
        %2680 = vmatprep.subr.mxu0 0.0
        %2681 = vmatpush1.msra.mxu0 0.0
        %2682 = vmatprep.subr.mxu0 0.0
        %2683 = vmatpush1.msra.mxu0 0.0
        %2684 = vmatprep.subr.mxu0 0.0
        %2685 = vmatpush1.msra.mxu0 0.0
        %2686 = vmatprep.subr.mxu0 0.0
        %2687 = vmatpush1.msra.mxu0 0.0
        %2688 = vmatprep.subr.mxu0 0.0
        %2689 = vmatpush1.msra.mxu0 0.0
        %2690 = vmatprep.subr.mxu0 0.0
        %2691 = vmatpush1.msra.mxu0 0.0
        %2692 = vmatprep.subr.mxu0 0.0
        %2693 = vmatpush1.msra.mxu0 0.0
        %2694 = vmatprep.subr.mxu0 0.0
        %2695 = vmatpush1.msra.mxu0 %v2591
        %2696 = vmatprep.subr.mxu0 0.0
        %2697 = vmatpush2.msra.mxu0 0.0
        %2698 = vmatprep.subr.mxu0 0.0
        %2699 = vmatpush2.msra.mxu0 0.0
        %2700 = vmatprep.subr.mxu0 0.0
        %2701 = vmatpush2.msra.mxu0 0.0
        %2702 = vmatprep.subr.mxu0 0.0
        %2703 = vmatpush2.msra.mxu0 0.0
        %2704 = vmatprep.subr.mxu0 0.0
        %2705 = vmatpush2.msra.mxu0 0.0
        %2706 = vmatprep.subr.mxu0 0.0
        %2707 = vmatpush2.msra.mxu0 0.0
        %2708 = vmatprep.subr.mxu0 0.0
        %2709 = vmatpush2.msra.mxu0 0.0
        %2710 = vmatprep.subr.mxu0 0.0
        %2711 = vmatpush2.msra.mxu0 0.0
        %2712 = vmatprep.subr.mxu0 0.0
        %2713 = vmatpush2.msra.mxu0 0.0
        %2714 = vmatprep.subr.mxu0 0.0
        %2715 = vmatpush2.msra.mxu0 0.0
        %2716 = vmatprep.subr.mxu0 0.0
        %2717 = vmatpush2.msra.mxu0 0.0
        %2718 = vmatprep.subr.mxu0 0.0
        %2719 = vmatpush2.msra.mxu0 0.0
        %2720 = vmatprep.subr.mxu0 0.0
        %2721 = vmatpush2.msra.mxu0 0.0
        %2722 = vmatprep.subr.mxu0 0.0
        %2723 = vmatpush2.msra.mxu0 0.0
        %2724 = vmatprep.subr.mxu0 0.0
        %2725 = vmatpush2.msra.mxu0 0.0
        %2726 = vmatprep.subr.mxu0 0.0
        %2727 = vmatpush2.msra.mxu0 0.0
        %2728 = vmatprep.mubr.f32.mxu0 0.0
        %2729 = vmatmul.mubr.f32.gmra.mxu0 %v2585
        %v2730 = vpop.f32.mrf.mxu0
        %v2731 = vadd.f32 0.0, %v2730
        %v2732 = vpop.f32.mrf.mxu0
        %2733 = vdwg.mxu0
        %v2734 = vadd.f32 %v2562, %v2660
        %v2735 = vadd.f32 %v2563, %v2662
        %v2736 = vadd.f32 %v2564, %v2731
        %v2737 = vadd.f32 %v2734, %v1706
        %v2738 = vadd.f32 %v2735, %v1706
        %v2739 = vadd.f32 %v2736, %v1706
        %v2742 = vcombine.low %v2737, %v2738
        %s2744 = scalar_lea.vmem %s163, 12 [#allocation2]
        %2745 = vst [vmem:[%s2744] sm:$0xff] %v2742
        %2746 = vst [vmem:[%s2744 + $0x8] sm:$0xf] %v2739
        %v2747 = vld [vmem:[%s168] sm:$0xff]
        %v2748 = vld [vmem:[%s168 + $0x8] sm:$0xff]
        %s2749 = scalar_lea.vmem %s1, 60
        %v2750 = vld [vmem:[%s2749] sm:$0xf]
        %s2751 = scalar_lea.vmem %s1, 64
        %v2752 = vld [vmem:[%s2751] sm:$0xf]
        %v2755 = vcombine.high %v2747, %v2747
        %v2756 = vcombine.high %v2748, %v2748
        %2757 = vrot.lane.b32.xlu0 %v2747, 87
        %v2758 = vpop.permute.xlu0 %2757
        %2759 = vrot.lane.b32.xlu0 %v2755, 87
        %v2760 = vpop.permute.xlu0 %2759
        %2761 = vrot.lane.b32.xlu0 %v2748, 87
        %v2762 = vpop.permute.xlu0 %2761
        %2763 = vrot.lane.b32.xlu0 %v2756, 87
        %v2764 = vpop.permute.xlu0 %2763
        %v2765 = vsel %vm187, %v2758, %v2760
        %v2766 = vsel %vm187, %v2760, %v2762
        %v2767 = vsel %vm187, %v2762, %v2764
        %v2769 = vsel %vm191, %v2752, 0
        %v2771 = vsel %vm195, %v2765, 0
        %v2773 = vsel %vm195, %v2766, 0
        %v2775 = vsel %vm195, %v2767, 0
        %2777 = vmatprep.subr.mxu0 0.0
        %2778 = vmatpush1.msra.mxu0 0.0
        %2779 = vmatprep.subr.mxu0 0.0
        %2780 = vmatpush1.msra.mxu0 0.0
        %2781 = vmatprep.subr.mxu0 0.0
        %2782 = vmatpush1.msra.mxu0 0.0
        %2783 = vmatprep.subr.mxu0 0.0
        %2784 = vmatpush1.msra.mxu0 0.0
        %2785 = vmatprep.subr.mxu0 0.0
        %2786 = vmatpush1.msra.mxu0 0.0
        %2787 = vmatprep.subr.mxu0 0.0
        %2788 = vmatpush1.msra.mxu0 0.0
        %2789 = vmatprep.subr.mxu0 0.0
        %2790 = vmatpush1.msra.mxu0 0.0
        %2791 = vmatprep.subr.mxu0 0.0
        %2792 = vmatpush1.msra.mxu0 0.0
        %2793 = vmatprep.subr.mxu0 0.0
        %2794 = vmatpush1.msra.mxu0 0.0
        %2795 = vmatprep.subr.mxu0 0.0
        %2796 = vmatpush1.msra.mxu0 0.0
        %2797 = vmatprep.subr.mxu0 0.0
        %2798 = vmatpush1.msra.mxu0 0.0
        %2799 = vmatprep.subr.mxu0 0.0
        %2800 = vmatpush1.msra.mxu0 0.0
        %2801 = vmatprep.subr.mxu0 0.0
        %2802 = vmatpush1.msra.mxu0 0.0
        %2803 = vmatprep.subr.mxu0 0.0
        %2804 = vmatpush1.msra.mxu0 0.0
        %2805 = vmatprep.subr.mxu0 0.0
        %2806 = vmatpush1.msra.mxu0 0.0
        %2807 = vmatprep.subr.mxu0 %v2773
        %2808 = vmatpush1.msra.mxu0 %v2771
        %2809 = vmatprep.subr.mxu0 0.0
        %2810 = vmatpush2.msra.mxu0 0.0
        %2811 = vmatprep.subr.mxu0 0.0
        %2812 = vmatpush2.msra.mxu0 0.0
        %2813 = vmatprep.subr.mxu0 0.0
        %2814 = vmatpush2.msra.mxu0 0.0
        %2815 = vmatprep.subr.mxu0 0.0
        %2816 = vmatpush2.msra.mxu0 0.0
        %2817 = vmatprep.subr.mxu0 0.0
        %2818 = vmatpush2.msra.mxu0 0.0
        %2819 = vmatprep.subr.mxu0 0.0
        %2820 = vmatpush2.msra.mxu0 0.0
        %2821 = vmatprep.subr.mxu0 0.0
        %2822 = vmatpush2.msra.mxu0 0.0
        %2823 = vmatprep.subr.mxu0 0.0
        %2824 = vmatpush2.msra.mxu0 0.0
        %2825 = vmatprep.subr.mxu0 0.0
        %2826 = vmatpush2.msra.mxu0 0.0
        %2827 = vmatprep.subr.mxu0 0.0
        %2828 = vmatpush2.msra.mxu0 0.0
        %2829 = vmatprep.subr.mxu0 0.0
        %2830 = vmatpush2.msra.mxu0 0.0
        %2831 = vmatprep.subr.mxu0 0.0
        %2832 = vmatpush2.msra.mxu0 0.0
        %2833 = vmatprep.subr.mxu0 0.0
        %2834 = vmatpush2.msra.mxu0 0.0
        %2835 = vmatprep.subr.mxu0 0.0
        %2836 = vmatpush2.msra.mxu0 0.0
        %2837 = vmatprep.subr.mxu0 0.0
        %2838 = vmatpush2.msra.mxu0 0.0
        %2839 = vmatprep.subr.mxu0 0.0
        %2840 = vmatpush2.msra.mxu0 0.0
        %2841 = vmatprep.mubr.f32.mxu0 0.0
        %2842 = vmatmul.mubr.f32.gmra.mxu0 %v2769
        %v2843 = vpop.f32.mrf.mxu0
        %v2844 = vadd.f32 0.0, %v2843
        %v2845 = vpop.f32.mrf.mxu0
        %v2846 = vadd.f32 0.0, %v2845
        %2847 = vdwg.mxu0
        %2848 = vmatprep.subr.mxu0 0.0
        %2849 = vmatpush1.msra.mxu0 0.0
        %2850 = vmatprep.subr.mxu0 0.0
        %2851 = vmatpush1.msra.mxu0 0.0
        %2852 = vmatprep.subr.mxu0 0.0
        %2853 = vmatpush1.msra.mxu0 0.0
        %2854 = vmatprep.subr.mxu0 0.0
        %2855 = vmatpush1.msra.mxu0 0.0
        %2856 = vmatprep.subr.mxu0 0.0
        %2857 = vmatpush1.msra.mxu0 0.0
        %2858 = vmatprep.subr.mxu0 0.0
        %2859 = vmatpush1.msra.mxu0 0.0
        %2860 = vmatprep.subr.mxu0 0.0
        %2861 = vmatpush1.msra.mxu0 0.0
        %2862 = vmatprep.subr.mxu0 0.0
        %2863 = vmatpush1.msra.mxu0 0.0
        %2864 = vmatprep.subr.mxu0 0.0
        %2865 = vmatpush1.msra.mxu0 0.0
        %2866 = vmatprep.subr.mxu0 0.0
        %2867 = vmatpush1.msra.mxu0 0.0
        %2868 = vmatprep.subr.mxu0 0.0
        %2869 = vmatpush1.msra.mxu0 0.0
        %2870 = vmatprep.subr.mxu0 0.0
        %2871 = vmatpush1.msra.mxu0 0.0
        %2872 = vmatprep.subr.mxu0 0.0
        %2873 = vmatpush1.msra.mxu0 0.0
        %2874 = vmatprep.subr.mxu0 0.0
        %2875 = vmatpush1.msra.mxu0 0.0
        %2876 = vmatprep.subr.mxu0 0.0
        %2877 = vmatpush1.msra.mxu0 0.0
        %2878 = vmatprep.subr.mxu0 0.0
        %2879 = vmatpush1.msra.mxu0 %v2775
        %2880 = vmatprep.subr.mxu0 0.0
        %2881 = vmatpush2.msra.mxu0 0.0
        %2882 = vmatprep.subr.mxu0 0.0
        %2883 = vmatpush2.msra.mxu0 0.0
        %2884 = vmatprep.subr.mxu0 0.0
        %2885 = vmatpush2.msra.mxu0 0.0
        %2886 = vmatprep.subr.mxu0 0.0
        %2887 = vmatpush2.msra.mxu0 0.0
        %2888 = vmatprep.subr.mxu0 0.0
        %2889 = vmatpush2.msra.mxu0 0.0
        %2890 = vmatprep.subr.mxu0 0.0
        %2891 = vmatpush2.msra.mxu0 0.0
        %2892 = vmatprep.subr.mxu0 0.0
        %2893 = vmatpush2.msra.mxu0 0.0
        %2894 = vmatprep.subr.mxu0 0.0
        %2895 = vmatpush2.msra.mxu0 0.0
        %2896 = vmatprep.subr.mxu0 0.0
        %2897 = vmatpush2.msra.mxu0 0.0
        %2898 = vmatprep.subr.mxu0 0.0
        %2899 = vmatpush2.msra.mxu0 0.0
        %2900 = vmatprep.subr.mxu0 0.0
        %2901 = vmatpush2.msra.mxu0 0.0
        %2902 = vmatprep.subr.mxu0 0.0
        %2903 = vmatpush2.msra.mxu0 0.0
        %2904 = vmatprep.subr.mxu0 0.0
        %2905 = vmatpush2.msra.mxu0 0.0
        %2906 = vmatprep.subr.mxu0 0.0
        %2907 = vmatpush2.msra.mxu0 0.0
        %2908 = vmatprep.subr.mxu0 0.0
        %2909 = vmatpush2.msra.mxu0 0.0
        %2910 = vmatprep.subr.mxu0 0.0
        %2911 = vmatpush2.msra.mxu0 0.0
        %2912 = vmatprep.mubr.f32.mxu0 0.0
        %2913 = vmatmul.mubr.f32.gmra.mxu0 %v2769
        %v2914 = vpop.f32.mrf.mxu0
        %v2915 = vadd.f32 0.0, %v2914
        %v2916 = vpop.f32.mrf.mxu0
        %2917 = vdwg.mxu0
        %2918 = vrot.lane.b32.xlu0 %v2747, 86
        %v2919 = vpop.permute.xlu0 %2918
        %2920 = vrot.lane.b32.xlu0 %v2755, 86
        %v2921 = vpop.permute.xlu0 %2920
        %2922 = vrot.lane.b32.xlu0 %v2748, 86
        %v2923 = vpop.permute.xlu0 %2922
        %2924 = vrot.lane.b32.xlu0 %v2756, 86
        %v2925 = vpop.permute.xlu0 %2924
        %v2926 = vsel %vm351, %v2919, %v2921
        %v2927 = vsel %vm351, %v2921, %v2923
        %v2928 = vsel %vm351, %v2923, %v2925
        %v2930 = vsel %vm191, %v2750, 0
        %v2932 = vsel %vm195, %v2926, 0
        %v2934 = vsel %vm195, %v2927, 0
        %v2936 = vsel %vm195, %v2928, 0
        %2938 = vmatprep.subr.mxu0 0.0
        %2939 = vmatpush1.msra.mxu0 0.0
        %2940 = vmatprep.subr.mxu0 0.0
        %2941 = vmatpush1.msra.mxu0 0.0
        %2942 = vmatprep.subr.mxu0 0.0
        %2943 = vmatpush1.msra.mxu0 0.0
        %2944 = vmatprep.subr.mxu0 0.0
        %2945 = vmatpush1.msra.mxu0 0.0
        %2946 = vmatprep.subr.mxu0 0.0
        %2947 = vmatpush1.msra.mxu0 0.0
        %2948 = vmatprep.subr.mxu0 0.0
        %2949 = vmatpush1.msra.mxu0 0.0
        %2950 = vmatprep.subr.mxu0 0.0
        %2951 = vmatpush1.msra.mxu0 0.0
        %2952 = vmatprep.subr.mxu0 0.0
        %2953 = vmatpush1.msra.mxu0 0.0
        %2954 = vmatprep.subr.mxu0 0.0
        %2955 = vmatpush1.msra.mxu0 0.0
        %2956 = vmatprep.subr.mxu0 0.0
        %2957 = vmatpush1.msra.mxu0 0.0
        %2958 = vmatprep.subr.mxu0 0.0
        %2959 = vmatpush1.msra.mxu0 0.0
        %2960 = vmatprep.subr.mxu0 0.0
        %2961 = vmatpush1.msra.mxu0 0.0
        %2962 = vmatprep.subr.mxu0 0.0
        %2963 = vmatpush1.msra.mxu0 0.0
        %2964 = vmatprep.subr.mxu0 0.0
        %2965 = vmatpush1.msra.mxu0 0.0
        %2966 = vmatprep.subr.mxu0 0.0
        %2967 = vmatpush1.msra.mxu0 0.0
        %2968 = vmatprep.subr.mxu0 %v2934
        %2969 = vmatpush1.msra.mxu0 %v2932
        %2970 = vmatprep.subr.mxu0 0.0
        %2971 = vmatpush2.msra.mxu0 0.0
        %2972 = vmatprep.subr.mxu0 0.0
        %2973 = vmatpush2.msra.mxu0 0.0
        %2974 = vmatprep.subr.mxu0 0.0
        %2975 = vmatpush2.msra.mxu0 0.0
        %2976 = vmatprep.subr.mxu0 0.0
        %2977 = vmatpush2.msra.mxu0 0.0
        %2978 = vmatprep.subr.mxu0 0.0
        %2979 = vmatpush2.msra.mxu0 0.0
        %2980 = vmatprep.subr.mxu0 0.0
        %2981 = vmatpush2.msra.mxu0 0.0
        %2982 = vmatprep.subr.mxu0 0.0
        %2983 = vmatpush2.msra.mxu0 0.0
        %2984 = vmatprep.subr.mxu0 0.0
        %2985 = vmatpush2.msra.mxu0 0.0
        %2986 = vmatprep.subr.mxu0 0.0
        %2987 = vmatpush2.msra.mxu0 0.0
        %2988 = vmatprep.subr.mxu0 0.0
        %2989 = vmatpush2.msra.mxu0 0.0
        %2990 = vmatprep.subr.mxu0 0.0
        %2991 = vmatpush2.msra.mxu0 0.0
        %2992 = vmatprep.subr.mxu0 0.0
        %2993 = vmatpush2.msra.mxu0 0.0
        %2994 = vmatprep.subr.mxu0 0.0
        %2995 = vmatpush2.msra.mxu0 0.0
        %2996 = vmatprep.subr.mxu0 0.0
        %2997 = vmatpush2.msra.mxu0 0.0
        %2998 = vmatprep.subr.mxu0 0.0
        %2999 = vmatpush2.msra.mxu0 0.0
        %3000 = vmatprep.subr.mxu0 0.0
        %3001 = vmatpush2.msra.mxu0 0.0
        %3002 = vmatprep.mubr.f32.mxu0 0.0
        %3003 = vmatmul.mubr.f32.gmra.mxu0 %v2930
        %v3004 = vpop.f32.mrf.mxu0
        %v3005 = vadd.f32 %v2844, %v3004
        %v3006 = vpop.f32.mrf.mxu0
        %v3007 = vadd.f32 %v2846, %v3006
        %3008 = vdwg.mxu0
        %3009 = vmatprep.subr.mxu0 0.0
        %3010 = vmatpush1.msra.mxu0 0.0
        %3011 = vmatprep.subr.mxu0 0.0
        %3012 = vmatpush1.msra.mxu0 0.0
        %3013 = vmatprep.subr.mxu0 0.0
        %3014 = vmatpush1.msra.mxu0 0.0
        %3015 = vmatprep.subr.mxu0 0.0
        %3016 = vmatpush1.msra.mxu0 0.0
        %3017 = vmatprep.subr.mxu0 0.0
        %3018 = vmatpush1.msra.mxu0 0.0
        %3019 = vmatprep.subr.mxu0 0.0
        %3020 = vmatpush1.msra.mxu0 0.0
        %3021 = vmatprep.subr.mxu0 0.0
        %3022 = vmatpush1.msra.mxu0 0.0
        %3023 = vmatprep.subr.mxu0 0.0
        %3024 = vmatpush1.msra.mxu0 0.0
        %3025 = vmatprep.subr.mxu0 0.0
        %3026 = vmatpush1.msra.mxu0 0.0
        %3027 = vmatprep.subr.mxu0 0.0
        %3028 = vmatpush1.msra.mxu0 0.0
        %3029 = vmatprep.subr.mxu0 0.0
        %3030 = vmatpush1.msra.mxu0 0.0
        %3031 = vmatprep.subr.mxu0 0.0
        %3032 = vmatpush1.msra.mxu0 0.0
        %3033 = vmatprep.subr.mxu0 0.0
        %3034 = vmatpush1.msra.mxu0 0.0
        %3035 = vmatprep.subr.mxu0 0.0
        %3036 = vmatpush1.msra.mxu0 0.0
        %3037 = vmatprep.subr.mxu0 0.0
        %3038 = vmatpush1.msra.mxu0 0.0
        %3039 = vmatprep.subr.mxu0 0.0
        %3040 = vmatpush1.msra.mxu0 %v2936
        %3041 = vmatprep.subr.mxu0 0.0
        %3042 = vmatpush2.msra.mxu0 0.0
        %3043 = vmatprep.subr.mxu0 0.0
        %3044 = vmatpush2.msra.mxu0 0.0
        %3045 = vmatprep.subr.mxu0 0.0
        %3046 = vmatpush2.msra.mxu0 0.0
        %3047 = vmatprep.subr.mxu0 0.0
        %3048 = vmatpush2.msra.mxu0 0.0
        %3049 = vmatprep.subr.mxu0 0.0
        %3050 = vmatpush2.msra.mxu0 0.0
        %3051 = vmatprep.subr.mxu0 0.0
        %3052 = vmatpush2.msra.mxu0 0.0
        %3053 = vmatprep.subr.mxu0 0.0
        %3054 = vmatpush2.msra.mxu0 0.0
        %3055 = vmatprep.subr.mxu0 0.0
        %3056 = vmatpush2.msra.mxu0 0.0
        %3057 = vmatprep.subr.mxu0 0.0
        %3058 = vmatpush2.msra.mxu0 0.0
        %3059 = vmatprep.subr.mxu0 0.0
        %3060 = vmatpush2.msra.mxu0 0.0
        %3061 = vmatprep.subr.mxu0 0.0
        %3062 = vmatpush2.msra.mxu0 0.0
        %3063 = vmatprep.subr.mxu0 0.0
        %3064 = vmatpush2.msra.mxu0 0.0
        %3065 = vmatprep.subr.mxu0 0.0
        %3066 = vmatpush2.msra.mxu0 0.0
        %3067 = vmatprep.subr.mxu0 0.0
        %3068 = vmatpush2.msra.mxu0 0.0
        %3069 = vmatprep.subr.mxu0 0.0
        %3070 = vmatpush2.msra.mxu0 0.0
        %3071 = vmatprep.subr.mxu0 0.0
        %3072 = vmatpush2.msra.mxu0 0.0
        %3073 = vmatprep.mubr.f32.mxu0 0.0
        %3074 = vmatmul.mubr.f32.gmra.mxu0 %v2930
        %v3075 = vpop.f32.mrf.mxu0
        %v3076 = vadd.f32 %v2915, %v3075
        %v3077 = vpop.f32.mrf.mxu0
        %3078 = vdwg.mxu0
        %v3079 = vld [vmem:[%s168] sm:$0xff]
        %v3080 = vld [vmem:[%s168 + $0x8] sm:$0xff]
        %s3081 = scalar_lea.vmem %s1, 68
        %v3082 = vld [vmem:[%s3081] sm:$0xf]
        %v3085 = vcombine.high %v3079, %v3079
        %v3086 = vcombine.high %v3080, %v3080
        %3087 = vrot.lane.b32.xlu0 %v3079, 88
        %v3088 = vpop.permute.xlu0 %3087
        %3089 = vrot.lane.b32.xlu0 %v3085, 88
        %v3090 = vpop.permute.xlu0 %3089
        %3091 = vrot.lane.b32.xlu0 %v3080, 88
        %v3092 = vpop.permute.xlu0 %3091
        %3093 = vrot.lane.b32.xlu0 %v3086, 88
        %v3094 = vpop.permute.xlu0 %3093
        %v3095 = vsel %vm521, %v3088, %v3090
        %v3096 = vsel %vm521, %v3090, %v3092
        %v3097 = vsel %vm521, %v3092, %v3094
        %v3099 = vsel %vm191, %v3082, 0
        %v3101 = vsel %vm195, %v3095, 0
        %v3103 = vsel %vm195, %v3096, 0
        %v3105 = vsel %vm195, %v3097, 0
        %3107 = vmatprep.subr.mxu0 0.0
        %3108 = vmatpush1.msra.mxu0 0.0
        %3109 = vmatprep.subr.mxu0 0.0
        %3110 = vmatpush1.msra.mxu0 0.0
        %3111 = vmatprep.subr.mxu0 0.0
        %3112 = vmatpush1.msra.mxu0 0.0
        %3113 = vmatprep.subr.mxu0 0.0
        %3114 = vmatpush1.msra.mxu0 0.0
        %3115 = vmatprep.subr.mxu0 0.0
        %3116 = vmatpush1.msra.mxu0 0.0
        %3117 = vmatprep.subr.mxu0 0.0
        %3118 = vmatpush1.msra.mxu0 0.0
        %3119 = vmatprep.subr.mxu0 0.0
        %3120 = vmatpush1.msra.mxu0 0.0
        %3121 = vmatprep.subr.mxu0 0.0
        %3122 = vmatpush1.msra.mxu0 0.0
        %3123 = vmatprep.subr.mxu0 0.0
        %3124 = vmatpush1.msra.mxu0 0.0
        %3125 = vmatprep.subr.mxu0 0.0
        %3126 = vmatpush1.msra.mxu0 0.0
        %3127 = vmatprep.subr.mxu0 0.0
        %3128 = vmatpush1.msra.mxu0 0.0
        %3129 = vmatprep.subr.mxu0 0.0
        %3130 = vmatpush1.msra.mxu0 0.0
        %3131 = vmatprep.subr.mxu0 0.0
        %3132 = vmatpush1.msra.mxu0 0.0
        %3133 = vmatprep.subr.mxu0 0.0
        %3134 = vmatpush1.msra.mxu0 0.0
        %3135 = vmatprep.subr.mxu0 0.0
        %3136 = vmatpush1.msra.mxu0 0.0
        %3137 = vmatprep.subr.mxu0 %v3103
        %3138 = vmatpush1.msra.mxu0 %v3101
        %3139 = vmatprep.subr.mxu0 0.0
        %3140 = vmatpush2.msra.mxu0 0.0
        %3141 = vmatprep.subr.mxu0 0.0
        %3142 = vmatpush2.msra.mxu0 0.0
        %3143 = vmatprep.subr.mxu0 0.0
        %3144 = vmatpush2.msra.mxu0 0.0
        %3145 = vmatprep.subr.mxu0 0.0
        %3146 = vmatpush2.msra.mxu0 0.0
        %3147 = vmatprep.subr.mxu0 0.0
        %3148 = vmatpush2.msra.mxu0 0.0
        %3149 = vmatprep.subr.mxu0 0.0
        %3150 = vmatpush2.msra.mxu0 0.0
        %3151 = vmatprep.subr.mxu0 0.0
        %3152 = vmatpush2.msra.mxu0 0.0
        %3153 = vmatprep.subr.mxu0 0.0
        %3154 = vmatpush2.msra.mxu0 0.0
        %3155 = vmatprep.subr.mxu0 0.0
        %3156 = vmatpush2.msra.mxu0 0.0
        %3157 = vmatprep.subr.mxu0 0.0
        %3158 = vmatpush2.msra.mxu0 0.0
        %3159 = vmatprep.subr.mxu0 0.0
        %3160 = vmatpush2.msra.mxu0 0.0
        %3161 = vmatprep.subr.mxu0 0.0
        %3162 = vmatpush2.msra.mxu0 0.0
        %3163 = vmatprep.subr.mxu0 0.0
        %3164 = vmatpush2.msra.mxu0 0.0
        %3165 = vmatprep.subr.mxu0 0.0
        %3166 = vmatpush2.msra.mxu0 0.0
        %3167 = vmatprep.subr.mxu0 0.0
        %3168 = vmatpush2.msra.mxu0 0.0
        %3169 = vmatprep.subr.mxu0 0.0
        %3170 = vmatpush2.msra.mxu0 0.0
        %3171 = vmatprep.mubr.f32.mxu0 0.0
        %3172 = vmatmul.mubr.f32.gmra.mxu0 %v3099
        %v3173 = vpop.f32.mrf.mxu0
        %v3174 = vadd.f32 0.0, %v3173
        %v3175 = vpop.f32.mrf.mxu0
        %v3176 = vadd.f32 0.0, %v3175
        %3177 = vdwg.mxu0
        %3178 = vmatprep.subr.mxu0 0.0
        %3179 = vmatpush1.msra.mxu0 0.0
        %3180 = vmatprep.subr.mxu0 0.0
        %3181 = vmatpush1.msra.mxu0 0.0
        %3182 = vmatprep.subr.mxu0 0.0
        %3183 = vmatpush1.msra.mxu0 0.0
        %3184 = vmatprep.subr.mxu0 0.0
        %3185 = vmatpush1.msra.mxu0 0.0
        %3186 = vmatprep.subr.mxu0 0.0
        %3187 = vmatpush1.msra.mxu0 0.0
        %3188 = vmatprep.subr.mxu0 0.0
        %3189 = vmatpush1.msra.mxu0 0.0
        %3190 = vmatprep.subr.mxu0 0.0
        %3191 = vmatpush1.msra.mxu0 0.0
        %3192 = vmatprep.subr.mxu0 0.0
        %3193 = vmatpush1.msra.mxu0 0.0
        %3194 = vmatprep.subr.mxu0 0.0
        %3195 = vmatpush1.msra.mxu0 0.0
        %3196 = vmatprep.subr.mxu0 0.0
        %3197 = vmatpush1.msra.mxu0 0.0
        %3198 = vmatprep.subr.mxu0 0.0
        %3199 = vmatpush1.msra.mxu0 0.0
        %3200 = vmatprep.subr.mxu0 0.0
        %3201 = vmatpush1.msra.mxu0 0.0
        %3202 = vmatprep.subr.mxu0 0.0
        %3203 = vmatpush1.msra.mxu0 0.0
        %3204 = vmatprep.subr.mxu0 0.0
        %3205 = vmatpush1.msra.mxu0 0.0
        %3206 = vmatprep.subr.mxu0 0.0
        %3207 = vmatpush1.msra.mxu0 0.0
        %3208 = vmatprep.subr.mxu0 0.0
        %3209 = vmatpush1.msra.mxu0 %v3105
        %3210 = vmatprep.subr.mxu0 0.0
        %3211 = vmatpush2.msra.mxu0 0.0
        %3212 = vmatprep.subr.mxu0 0.0
        %3213 = vmatpush2.msra.mxu0 0.0
        %3214 = vmatprep.subr.mxu0 0.0
        %3215 = vmatpush2.msra.mxu0 0.0
        %3216 = vmatprep.subr.mxu0 0.0
        %3217 = vmatpush2.msra.mxu0 0.0
        %3218 = vmatprep.subr.mxu0 0.0
        %3219 = vmatpush2.msra.mxu0 0.0
        %3220 = vmatprep.subr.mxu0 0.0
        %3221 = vmatpush2.msra.mxu0 0.0
        %3222 = vmatprep.subr.mxu0 0.0
        %3223 = vmatpush2.msra.mxu0 0.0
        %3224 = vmatprep.subr.mxu0 0.0
        %3225 = vmatpush2.msra.mxu0 0.0
        %3226 = vmatprep.subr.mxu0 0.0
        %3227 = vmatpush2.msra.mxu0 0.0
        %3228 = vmatprep.subr.mxu0 0.0
        %3229 = vmatpush2.msra.mxu0 0.0
        %3230 = vmatprep.subr.mxu0 0.0
        %3231 = vmatpush2.msra.mxu0 0.0
        %3232 = vmatprep.subr.mxu0 0.0
        %3233 = vmatpush2.msra.mxu0 0.0
        %3234 = vmatprep.subr.mxu0 0.0
        %3235 = vmatpush2.msra.mxu0 0.0
        %3236 = vmatprep.subr.mxu0 0.0
        %3237 = vmatpush2.msra.mxu0 0.0
        %3238 = vmatprep.subr.mxu0 0.0
        %3239 = vmatpush2.msra.mxu0 0.0
        %3240 = vmatprep.subr.mxu0 0.0
        %3241 = vmatpush2.msra.mxu0 0.0
        %3242 = vmatprep.mubr.f32.mxu0 0.0
        %3243 = vmatmul.mubr.f32.gmra.mxu0 %v3099
        %v3244 = vpop.f32.mrf.mxu0
        %v3245 = vadd.f32 0.0, %v3244
        %v3246 = vpop.f32.mrf.mxu0
        %3247 = vdwg.mxu0
        %v3248 = vadd.f32 %v3005, %v3174
        %v3249 = vadd.f32 %v3007, %v3176
        %v3250 = vadd.f32 %v3076, %v3245
        %v3251 = vld [vmem:[%s168] sm:$0xff]
        %v3252 = vld [vmem:[%s168 + $0x8] sm:$0xff]
        %s3253 = scalar_lea.vmem %s1, 72
        %v3254 = vld [vmem:[%s3253] sm:$0xf]
        %v3257 = vcombine.high %v3251, %v3251
        %v3258 = vcombine.high %v3252, %v3252
        %3259 = vrot.lane.b32.xlu0 %v3251, 106
        %v3260 = vpop.permute.xlu0 %3259
        %3261 = vrot.lane.b32.xlu0 %v3257, 106
        %v3262 = vpop.permute.xlu0 %3261
        %3263 = vrot.lane.b32.xlu0 %v3252, 106
        %v3264 = vpop.permute.xlu0 %3263
        %3265 = vrot.lane.b32.xlu0 %v3258, 106
        %v3266 = vpop.permute.xlu0 %3265
        %v3267 = vsel %vm694, %v3260, %v3262
        %v3268 = vsel %vm694, %v3262, %v3264
        %v3269 = vsel %vm694, %v3264, %v3266
        %v3271 = vsel %vm191, %v3254, 0
        %v3273 = vsel %vm195, %v3267, 0
        %v3275 = vsel %vm195, %v3268, 0
        %v3277 = vsel %vm195, %v3269, 0
        %3279 = vmatprep.subr.mxu0 0.0
        %3280 = vmatpush1.msra.mxu0 0.0
        %3281 = vmatprep.subr.mxu0 0.0
        %3282 = vmatpush1.msra.mxu0 0.0
        %3283 = vmatprep.subr.mxu0 0.0
        %3284 = vmatpush1.msra.mxu0 0.0
        %3285 = vmatprep.subr.mxu0 0.0
        %3286 = vmatpush1.msra.mxu0 0.0
        %3287 = vmatprep.subr.mxu0 0.0
        %3288 = vmatpush1.msra.mxu0 0.0
        %3289 = vmatprep.subr.mxu0 0.0
        %3290 = vmatpush1.msra.mxu0 0.0
        %3291 = vmatprep.subr.mxu0 0.0
        %3292 = vmatpush1.msra.mxu0 0.0
        %3293 = vmatprep.subr.mxu0 0.0
        %3294 = vmatpush1.msra.mxu0 0.0
        %3295 = vmatprep.subr.mxu0 0.0
        %3296 = vmatpush1.msra.mxu0 0.0
        %3297 = vmatprep.subr.mxu0 0.0
        %3298 = vmatpush1.msra.mxu0 0.0
        %3299 = vmatprep.subr.mxu0 0.0
        %3300 = vmatpush1.msra.mxu0 0.0
        %3301 = vmatprep.subr.mxu0 0.0
        %3302 = vmatpush1.msra.mxu0 0.0
        %3303 = vmatprep.subr.mxu0 0.0
        %3304 = vmatpush1.msra.mxu0 0.0
        %3305 = vmatprep.subr.mxu0 0.0
        %3306 = vmatpush1.msra.mxu0 0.0
        %3307 = vmatprep.subr.mxu0 0.0
        %3308 = vmatpush1.msra.mxu0 0.0
        %3309 = vmatprep.subr.mxu0 %v3275
        %3310 = vmatpush1.msra.mxu0 %v3273
        %3311 = vmatprep.subr.mxu0 0.0
        %3312 = vmatpush2.msra.mxu0 0.0
        %3313 = vmatprep.subr.mxu0 0.0
        %3314 = vmatpush2.msra.mxu0 0.0
        %3315 = vmatprep.subr.mxu0 0.0
        %3316 = vmatpush2.msra.mxu0 0.0
        %3317 = vmatprep.subr.mxu0 0.0
        %3318 = vmatpush2.msra.mxu0 0.0
        %3319 = vmatprep.subr.mxu0 0.0
        %3320 = vmatpush2.msra.mxu0 0.0
        %3321 = vmatprep.subr.mxu0 0.0
        %3322 = vmatpush2.msra.mxu0 0.0
        %3323 = vmatprep.subr.mxu0 0.0
        %3324 = vmatpush2.msra.mxu0 0.0
        %3325 = vmatprep.subr.mxu0 0.0
        %3326 = vmatpush2.msra.mxu0 0.0
        %3327 = vmatprep.subr.mxu0 0.0
        %3328 = vmatpush2.msra.mxu0 0.0
        %3329 = vmatprep.subr.mxu0 0.0
        %3330 = vmatpush2.msra.mxu0 0.0
        %3331 = vmatprep.subr.mxu0 0.0
        %3332 = vmatpush2.msra.mxu0 0.0
        %3333 = vmatprep.subr.mxu0 0.0
        %3334 = vmatpush2.msra.mxu0 0.0
        %3335 = vmatprep.subr.mxu0 0.0
        %3336 = vmatpush2.msra.mxu0 0.0
        %3337 = vmatprep.subr.mxu0 0.0
        %3338 = vmatpush2.msra.mxu0 0.0
        %3339 = vmatprep.subr.mxu0 0.0
        %3340 = vmatpush2.msra.mxu0 0.0
        %3341 = vmatprep.subr.mxu0 0.0
        %3342 = vmatpush2.msra.mxu0 0.0
        %3343 = vmatprep.mubr.f32.mxu0 0.0
        %3344 = vmatmul.mubr.f32.gmra.mxu0 %v3271
        %v3345 = vpop.f32.mrf.mxu0
        %v3346 = vadd.f32 0.0, %v3345
        %v3347 = vpop.f32.mrf.mxu0
        %v3348 = vadd.f32 0.0, %v3347
        %3349 = vdwg.mxu0
        %3350 = vmatprep.subr.mxu0 0.0
        %3351 = vmatpush1.msra.mxu0 0.0
        %3352 = vmatprep.subr.mxu0 0.0
        %3353 = vmatpush1.msra.mxu0 0.0
        %3354 = vmatprep.subr.mxu0 0.0
        %3355 = vmatpush1.msra.mxu0 0.0
        %3356 = vmatprep.subr.mxu0 0.0
        %3357 = vmatpush1.msra.mxu0 0.0
        %3358 = vmatprep.subr.mxu0 0.0
        %3359 = vmatpush1.msra.mxu0 0.0
        %3360 = vmatprep.subr.mxu0 0.0
        %3361 = vmatpush1.msra.mxu0 0.0
        %3362 = vmatprep.subr.mxu0 0.0
        %3363 = vmatpush1.msra.mxu0 0.0
        %3364 = vmatprep.subr.mxu0 0.0
        %3365 = vmatpush1.msra.mxu0 0.0
        %3366 = vmatprep.subr.mxu0 0.0
        %3367 = vmatpush1.msra.mxu0 0.0
        %3368 = vmatprep.subr.mxu0 0.0
        %3369 = vmatpush1.msra.mxu0 0.0
        %3370 = vmatprep.subr.mxu0 0.0
        %3371 = vmatpush1.msra.mxu0 0.0
        %3372 = vmatprep.subr.mxu0 0.0
        %3373 = vmatpush1.msra.mxu0 0.0
        %3374 = vmatprep.subr.mxu0 0.0
        %3375 = vmatpush1.msra.mxu0 0.0
        %3376 = vmatprep.subr.mxu0 0.0
        %3377 = vmatpush1.msra.mxu0 0.0
        %3378 = vmatprep.subr.mxu0 0.0
        %3379 = vmatpush1.msra.mxu0 0.0
        %3380 = vmatprep.subr.mxu0 0.0
        %3381 = vmatpush1.msra.mxu0 %v3277
        %3382 = vmatprep.subr.mxu0 0.0
        %3383 = vmatpush2.msra.mxu0 0.0
        %3384 = vmatprep.subr.mxu0 0.0
        %3385 = vmatpush2.msra.mxu0 0.0
        %3386 = vmatprep.subr.mxu0 0.0
        %3387 = vmatpush2.msra.mxu0 0.0
        %3388 = vmatprep.subr.mxu0 0.0
        %3389 = vmatpush2.msra.mxu0 0.0
        %3390 = vmatprep.subr.mxu0 0.0
        %3391 = vmatpush2.msra.mxu0 0.0
        %3392 = vmatprep.subr.mxu0 0.0
        %3393 = vmatpush2.msra.mxu0 0.0
        %3394 = vmatprep.subr.mxu0 0.0
        %3395 = vmatpush2.msra.mxu0 0.0
        %3396 = vmatprep.subr.mxu0 0.0
        %3397 = vmatpush2.msra.mxu0 0.0
        %3398 = vmatprep.subr.mxu0 0.0
        %3399 = vmatpush2.msra.mxu0 0.0
        %3400 = vmatprep.subr.mxu0 0.0
        %3401 = vmatpush2.msra.mxu0 0.0
        %3402 = vmatprep.subr.mxu0 0.0
        %3403 = vmatpush2.msra.mxu0 0.0
        %3404 = vmatprep.subr.mxu0 0.0
        %3405 = vmatpush2.msra.mxu0 0.0
        %3406 = vmatprep.subr.mxu0 0.0
        %3407 = vmatpush2.msra.mxu0 0.0
        %3408 = vmatprep.subr.mxu0 0.0
        %3409 = vmatpush2.msra.mxu0 0.0
        %3410 = vmatprep.subr.mxu0 0.0
        %3411 = vmatpush2.msra.mxu0 0.0
        %3412 = vmatprep.subr.mxu0 0.0
        %3413 = vmatpush2.msra.mxu0 0.0
        %3414 = vmatprep.mubr.f32.mxu0 0.0
        %3415 = vmatmul.mubr.f32.gmra.mxu0 %v3271
        %v3416 = vpop.f32.mrf.mxu0
        %v3417 = vadd.f32 0.0, %v3416
        %v3418 = vpop.f32.mrf.mxu0
        %3419 = vdwg.mxu0
        %v3420 = vadd.f32 %v3248, %v3346
        %v3421 = vadd.f32 %v3249, %v3348
        %v3422 = vadd.f32 %v3250, %v3417
        %v3423 = vld [vmem:[%s168] sm:$0xff]
        %v3424 = vld [vmem:[%s168 + $0x8] sm:$0xff]
        %s3425 = scalar_lea.vmem %s1, 76
        %v3426 = vld [vmem:[%s3425] sm:$0xf]
        %v3429 = vcombine.high %v3423, %v3423
        %v3430 = vcombine.high %v3424, %v3424
        %3431 = vrot.lane.b32.xlu0 %v3423, 107
        %v3432 = vpop.permute.xlu0 %3431
        %3433 = vrot.lane.b32.xlu0 %v3429, 107
        %v3434 = vpop.permute.xlu0 %3433
        %3435 = vrot.lane.b32.xlu0 %v3424, 107
        %v3436 = vpop.permute.xlu0 %3435
        %3437 = vrot.lane.b32.xlu0 %v3430, 107
        %v3438 = vpop.permute.xlu0 %3437
        %v3439 = vsel %vm867, %v3432, %v3434
        %v3440 = vsel %vm867, %v3434, %v3436
        %v3441 = vsel %vm867, %v3436, %v3438
        %v3443 = vsel %vm191, %v3426, 0
        %v3445 = vsel %vm195, %v3439, 0
        %v3447 = vsel %vm195, %v3440, 0
        %v3449 = vsel %vm195, %v3441, 0
        %3451 = vmatprep.subr.mxu0 0.0
        %3452 = vmatpush1.msra.mxu0 0.0
        %3453 = vmatprep.subr.mxu0 0.0
        %3454 = vmatpush1.msra.mxu0 0.0
        %3455 = vmatprep.subr.mxu0 0.0
        %3456 = vmatpush1.msra.mxu0 0.0
        %3457 = vmatprep.subr.mxu0 0.0
        %3458 = vmatpush1.msra.mxu0 0.0
        %3459 = vmatprep.subr.mxu0 0.0
        %3460 = vmatpush1.msra.mxu0 0.0
        %3461 = vmatprep.subr.mxu0 0.0
        %3462 = vmatpush1.msra.mxu0 0.0
        %3463 = vmatprep.subr.mxu0 0.0
        %3464 = vmatpush1.msra.mxu0 0.0
        %3465 = vmatprep.subr.mxu0 0.0
        %3466 = vmatpush1.msra.mxu0 0.0
        %3467 = vmatprep.subr.mxu0 0.0
        %3468 = vmatpush1.msra.mxu0 0.0
        %3469 = vmatprep.subr.mxu0 0.0
        %3470 = vmatpush1.msra.mxu0 0.0
        %3471 = vmatprep.subr.mxu0 0.0
        %3472 = vmatpush1.msra.mxu0 0.0
        %3473 = vmatprep.subr.mxu0 0.0
        %3474 = vmatpush1.msra.mxu0 0.0
        %3475 = vmatprep.subr.mxu0 0.0
        %3476 = vmatpush1.msra.mxu0 0.0
        %3477 = vmatprep.subr.mxu0 0.0
        %3478 = vmatpush1.msra.mxu0 0.0
        %3479 = vmatprep.subr.mxu0 0.0
        %3480 = vmatpush1.msra.mxu0 0.0
        %3481 = vmatprep.subr.mxu0 %v3447
        %3482 = vmatpush1.msra.mxu0 %v3445
        %3483 = vmatprep.subr.mxu0 0.0
        %3484 = vmatpush2.msra.mxu0 0.0
        %3485 = vmatprep.subr.mxu0 0.0
        %3486 = vmatpush2.msra.mxu0 0.0
        %3487 = vmatprep.subr.mxu0 0.0
        %3488 = vmatpush2.msra.mxu0 0.0
        %3489 = vmatprep.subr.mxu0 0.0
        %3490 = vmatpush2.msra.mxu0 0.0
        %3491 = vmatprep.subr.mxu0 0.0
        %3492 = vmatpush2.msra.mxu0 0.0
        %3493 = vmatprep.subr.mxu0 0.0
        %3494 = vmatpush2.msra.mxu0 0.0
        %3495 = vmatprep.subr.mxu0 0.0
        %3496 = vmatpush2.msra.mxu0 0.0
        %3497 = vmatprep.subr.mxu0 0.0
        %3498 = vmatpush2.msra.mxu0 0.0
        %3499 = vmatprep.subr.mxu0 0.0
        %3500 = vmatpush2.msra.mxu0 0.0
        %3501 = vmatprep.subr.mxu0 0.0
        %3502 = vmatpush2.msra.mxu0 0.0
        %3503 = vmatprep.subr.mxu0 0.0
        %3504 = vmatpush2.msra.mxu0 0.0
        %3505 = vmatprep.subr.mxu0 0.0
        %3506 = vmatpush2.msra.mxu0 0.0
        %3507 = vmatprep.subr.mxu0 0.0
        %3508 = vmatpush2.msra.mxu0 0.0
        %3509 = vmatprep.subr.mxu0 0.0
        %3510 = vmatpush2.msra.mxu0 0.0
        %3511 = vmatprep.subr.mxu0 0.0
        %3512 = vmatpush2.msra.mxu0 0.0
        %3513 = vmatprep.subr.mxu0 0.0
        %3514 = vmatpush2.msra.mxu0 0.0
        %3515 = vmatprep.mubr.f32.mxu0 0.0
        %3516 = vmatmul.mubr.f32.gmra.mxu0 %v3443
        %v3517 = vpop.f32.mrf.mxu0
        %v3518 = vadd.f32 0.0, %v3517
        %v3519 = vpop.f32.mrf.mxu0
        %v3520 = vadd.f32 0.0, %v3519
        %3521 = vdwg.mxu0
        %3522 = vmatprep.subr.mxu0 0.0
        %3523 = vmatpush1.msra.mxu0 0.0
        %3524 = vmatprep.subr.mxu0 0.0
        %3525 = vmatpush1.msra.mxu0 0.0
        %3526 = vmatprep.subr.mxu0 0.0
        %3527 = vmatpush1.msra.mxu0 0.0
        %3528 = vmatprep.subr.mxu0 0.0
        %3529 = vmatpush1.msra.mxu0 0.0
        %3530 = vmatprep.subr.mxu0 0.0
        %3531 = vmatpush1.msra.mxu0 0.0
        %3532 = vmatprep.subr.mxu0 0.0
        %3533 = vmatpush1.msra.mxu0 0.0
        %3534 = vmatprep.subr.mxu0 0.0
        %3535 = vmatpush1.msra.mxu0 0.0
        %3536 = vmatprep.subr.mxu0 0.0
        %3537 = vmatpush1.msra.mxu0 0.0
        %3538 = vmatprep.subr.mxu0 0.0
        %3539 = vmatpush1.msra.mxu0 0.0
        %3540 = vmatprep.subr.mxu0 0.0
        %3541 = vmatpush1.msra.mxu0 0.0
        %3542 = vmatprep.subr.mxu0 0.0
        %3543 = vmatpush1.msra.mxu0 0.0
        %3544 = vmatprep.subr.mxu0 0.0
        %3545 = vmatpush1.msra.mxu0 0.0
        %3546 = vmatprep.subr.mxu0 0.0
        %3547 = vmatpush1.msra.mxu0 0.0
        %3548 = vmatprep.subr.mxu0 0.0
        %3549 = vmatpush1.msra.mxu0 0.0
        %3550 = vmatprep.subr.mxu0 0.0
        %3551 = vmatpush1.msra.mxu0 0.0
        %3552 = vmatprep.subr.mxu0 0.0
        %3553 = vmatpush1.msra.mxu0 %v3449
        %3554 = vmatprep.subr.mxu0 0.0
        %3555 = vmatpush2.msra.mxu0 0.0
        %3556 = vmatprep.subr.mxu0 0.0
        %3557 = vmatpush2.msra.mxu0 0.0
        %3558 = vmatprep.subr.mxu0 0.0
        %3559 = vmatpush2.msra.mxu0 0.0
        %3560 = vmatprep.subr.mxu0 0.0
        %3561 = vmatpush2.msra.mxu0 0.0
        %3562 = vmatprep.subr.mxu0 0.0
        %3563 = vmatpush2.msra.mxu0 0.0
        %3564 = vmatprep.subr.mxu0 0.0
        %3565 = vmatpush2.msra.mxu0 0.0
        %3566 = vmatprep.subr.mxu0 0.0
        %3567 = vmatpush2.msra.mxu0 0.0
        %3568 = vmatprep.subr.mxu0 0.0
        %3569 = vmatpush2.msra.mxu0 0.0
        %3570 = vmatprep.subr.mxu0 0.0
        %3571 = vmatpush2.msra.mxu0 0.0
        %3572 = vmatprep.subr.mxu0 0.0
        %3573 = vmatpush2.msra.mxu0 0.0
        %3574 = vmatprep.subr.mxu0 0.0
        %3575 = vmatpush2.msra.mxu0 0.0
        %3576 = vmatprep.subr.mxu0 0.0
        %3577 = vmatpush2.msra.mxu0 0.0
        %3578 = vmatprep.subr.mxu0 0.0
        %3579 = vmatpush2.msra.mxu0 0.0
        %3580 = vmatprep.subr.mxu0 0.0
        %3581 = vmatpush2.msra.mxu0 0.0
        %3582 = vmatprep.subr.mxu0 0.0
        %3583 = vmatpush2.msra.mxu0 0.0
        %3584 = vmatprep.subr.mxu0 0.0
        %3585 = vmatpush2.msra.mxu0 0.0
        %3586 = vmatprep.mubr.f32.mxu0 0.0
        %3587 = vmatmul.mubr.f32.gmra.mxu0 %v3443
        %v3588 = vpop.f32.mrf.mxu0
        %v3589 = vadd.f32 0.0, %v3588
        %v3590 = vpop.f32.mrf.mxu0
        %3591 = vdwg.mxu0
        %v3592 = vadd.f32 %v3420, %v3518
        %v3593 = vadd.f32 %v3421, %v3520
        %v3594 = vadd.f32 %v3422, %v3589
        %v3595 = vld [vmem:[%s168] sm:$0xff]
        %v3596 = vld [vmem:[%s168 + $0x8] sm:$0xff]
        %s3597 = scalar_lea.vmem %s1, 80
        %v3598 = vld [vmem:[%s3597] sm:$0xf]
        %v3601 = vcombine.high %v3595, %v3595
        %v3602 = vcombine.high %v3596, %v3596
        %3603 = vrot.lane.b32.xlu0 %v3595, 108
        %v3604 = vpop.permute.xlu0 %3603
        %3605 = vrot.lane.b32.xlu0 %v3601, 108
        %v3606 = vpop.permute.xlu0 %3605
        %3607 = vrot.lane.b32.xlu0 %v3596, 108
        %v3608 = vpop.permute.xlu0 %3607
        %3609 = vrot.lane.b32.xlu0 %v3602, 108
        %v3610 = vpop.permute.xlu0 %3609
        %v3611 = vsel %vm1040, %v3604, %v3606
        %v3612 = vsel %vm1040, %v3606, %v3608
        %v3613 = vsel %vm1040, %v3608, %v3610
        %v3615 = vsel %vm191, %v3598, 0
        %v3617 = vsel %vm195, %v3611, 0
        %v3619 = vsel %vm195, %v3612, 0
        %v3621 = vsel %vm195, %v3613, 0
        %3623 = vmatprep.subr.mxu0 0.0
        %3624 = vmatpush1.msra.mxu0 0.0
        %3625 = vmatprep.subr.mxu0 0.0
        %3626 = vmatpush1.msra.mxu0 0.0
        %3627 = vmatprep.subr.mxu0 0.0
        %3628 = vmatpush1.msra.mxu0 0.0
        %3629 = vmatprep.subr.mxu0 0.0
        %3630 = vmatpush1.msra.mxu0 0.0
        %3631 = vmatprep.subr.mxu0 0.0
        %3632 = vmatpush1.msra.mxu0 0.0
        %3633 = vmatprep.subr.mxu0 0.0
        %3634 = vmatpush1.msra.mxu0 0.0
        %3635 = vmatprep.subr.mxu0 0.0
        %3636 = vmatpush1.msra.mxu0 0.0
        %3637 = vmatprep.subr.mxu0 0.0
        %3638 = vmatpush1.msra.mxu0 0.0
        %3639 = vmatprep.subr.mxu0 0.0
        %3640 = vmatpush1.msra.mxu0 0.0
        %3641 = vmatprep.subr.mxu0 0.0
        %3642 = vmatpush1.msra.mxu0 0.0
        %3643 = vmatprep.subr.mxu0 0.0
        %3644 = vmatpush1.msra.mxu0 0.0
        %3645 = vmatprep.subr.mxu0 0.0
        %3646 = vmatpush1.msra.mxu0 0.0
        %3647 = vmatprep.subr.mxu0 0.0
        %3648 = vmatpush1.msra.mxu0 0.0
        %3649 = vmatprep.subr.mxu0 0.0
        %3650 = vmatpush1.msra.mxu0 0.0
        %3651 = vmatprep.subr.mxu0 0.0
        %3652 = vmatpush1.msra.mxu0 0.0
        %3653 = vmatprep.subr.mxu0 %v3619
        %3654 = vmatpush1.msra.mxu0 %v3617
        %3655 = vmatprep.subr.mxu0 0.0
        %3656 = vmatpush2.msra.mxu0 0.0
        %3657 = vmatprep.subr.mxu0 0.0
        %3658 = vmatpush2.msra.mxu0 0.0
        %3659 = vmatprep.subr.mxu0 0.0
        %3660 = vmatpush2.msra.mxu0 0.0
        %3661 = vmatprep.subr.mxu0 0.0
        %3662 = vmatpush2.msra.mxu0 0.0
        %3663 = vmatprep.subr.mxu0 0.0
        %3664 = vmatpush2.msra.mxu0 0.0
        %3665 = vmatprep.subr.mxu0 0.0
        %3666 = vmatpush2.msra.mxu0 0.0
        %3667 = vmatprep.subr.mxu0 0.0
        %3668 = vmatpush2.msra.mxu0 0.0
        %3669 = vmatprep.subr.mxu0 0.0
        %3670 = vmatpush2.msra.mxu0 0.0
        %3671 = vmatprep.subr.mxu0 0.0
        %3672 = vmatpush2.msra.mxu0 0.0
        %3673 = vmatprep.subr.mxu0 0.0
        %3674 = vmatpush2.msra.mxu0 0.0
        %3675 = vmatprep.subr.mxu0 0.0
        %3676 = vmatpush2.msra.mxu0 0.0
        %3677 = vmatprep.subr.mxu0 0.0
        %3678 = vmatpush2.msra.mxu0 0.0
        %3679 = vmatprep.subr.mxu0 0.0
        %3680 = vmatpush2.msra.mxu0 0.0
        %3681 = vmatprep.subr.mxu0 0.0
        %3682 = vmatpush2.msra.mxu0 0.0
        %3683 = vmatprep.subr.mxu0 0.0
        %3684 = vmatpush2.msra.mxu0 0.0
        %3685 = vmatprep.subr.mxu0 0.0
        %3686 = vmatpush2.msra.mxu0 0.0
        %3687 = vmatprep.mubr.f32.mxu0 0.0
        %3688 = vmatmul.mubr.f32.gmra.mxu0 %v3615
        %v3689 = vpop.f32.mrf.mxu0
        %v3690 = vadd.f32 0.0, %v3689
        %v3691 = vpop.f32.mrf.mxu0
        %v3692 = vadd.f32 0.0, %v3691
        %3693 = vdwg.mxu0
        %3694 = vmatprep.subr.mxu0 0.0
        %3695 = vmatpush1.msra.mxu0 0.0
        %3696 = vmatprep.subr.mxu0 0.0
        %3697 = vmatpush1.msra.mxu0 0.0
        %3698 = vmatprep.subr.mxu0 0.0
        %3699 = vmatpush1.msra.mxu0 0.0
        %3700 = vmatprep.subr.mxu0 0.0
        %3701 = vmatpush1.msra.mxu0 0.0
        %3702 = vmatprep.subr.mxu0 0.0
        %3703 = vmatpush1.msra.mxu0 0.0
        %3704 = vmatprep.subr.mxu0 0.0
        %3705 = vmatpush1.msra.mxu0 0.0
        %3706 = vmatprep.subr.mxu0 0.0
        %3707 = vmatpush1.msra.mxu0 0.0
        %3708 = vmatprep.subr.mxu0 0.0
        %3709 = vmatpush1.msra.mxu0 0.0
        %3710 = vmatprep.subr.mxu0 0.0
        %3711 = vmatpush1.msra.mxu0 0.0
        %3712 = vmatprep.subr.mxu0 0.0
        %3713 = vmatpush1.msra.mxu0 0.0
        %3714 = vmatprep.subr.mxu0 0.0
        %3715 = vmatpush1.msra.mxu0 0.0
        %3716 = vmatprep.subr.mxu0 0.0
        %3717 = vmatpush1.msra.mxu0 0.0
        %3718 = vmatprep.subr.mxu0 0.0
        %3719 = vmatpush1.msra.mxu0 0.0
        %3720 = vmatprep.subr.mxu0 0.0
        %3721 = vmatpush1.msra.mxu0 0.0
        %3722 = vmatprep.subr.mxu0 0.0
        %3723 = vmatpush1.msra.mxu0 0.0
        %3724 = vmatprep.subr.mxu0 0.0
        %3725 = vmatpush1.msra.mxu0 %v3621
        %3726 = vmatprep.subr.mxu0 0.0
        %3727 = vmatpush2.msra.mxu0 0.0
        %3728 = vmatprep.subr.mxu0 0.0
        %3729 = vmatpush2.msra.mxu0 0.0
        %3730 = vmatprep.subr.mxu0 0.0
        %3731 = vmatpush2.msra.mxu0 0.0
        %3732 = vmatprep.subr.mxu0 0.0
        %3733 = vmatpush2.msra.mxu0 0.0
        %3734 = vmatprep.subr.mxu0 0.0
        %3735 = vmatpush2.msra.mxu0 0.0
        %3736 = vmatprep.subr.mxu0 0.0
        %3737 = vmatpush2.msra.mxu0 0.0
        %3738 = vmatprep.subr.mxu0 0.0
        %3739 = vmatpush2.msra.mxu0 0.0
        %3740 = vmatprep.subr.mxu0 0.0
        %3741 = vmatpush2.msra.mxu0 0.0
        %3742 = vmatprep.subr.mxu0 0.0
        %3743 = vmatpush2.msra.mxu0 0.0
        %3744 = vmatprep.subr.mxu0 0.0
        %3745 = vmatpush2.msra.mxu0 0.0
        %3746 = vmatprep.subr.mxu0 0.0
        %3747 = vmatpush2.msra.mxu0 0.0
        %3748 = vmatprep.subr.mxu0 0.0
        %3749 = vmatpush2.msra.mxu0 0.0
        %3750 = vmatprep.subr.mxu0 0.0
        %3751 = vmatpush2.msra.mxu0 0.0
        %3752 = vmatprep.subr.mxu0 0.0
        %3753 = vmatpush2.msra.mxu0 0.0
        %3754 = vmatprep.subr.mxu0 0.0
        %3755 = vmatpush2.msra.mxu0 0.0
        %3756 = vmatprep.subr.mxu0 0.0
        %3757 = vmatpush2.msra.mxu0 0.0
        %3758 = vmatprep.mubr.f32.mxu0 0.0
        %3759 = vmatmul.mubr.f32.gmra.mxu0 %v3615
        %v3760 = vpop.f32.mrf.mxu0
        %v3761 = vadd.f32 0.0, %v3760
        %v3762 = vpop.f32.mrf.mxu0
        %3763 = vdwg.mxu0
        %v3764 = vadd.f32 %v3592, %v3690
        %v3765 = vadd.f32 %v3593, %v3692
        %v3766 = vadd.f32 %v3594, %v3761
        %v3767 = vadd.f32 %v3764, %v1706
        %v3768 = vadd.f32 %v3765, %v1706
        %v3769 = vadd.f32 %v3766, %v1706
        %v3772 = vcombine.low %v3767, %v3768
        %s3774 = scalar_lea.vmem %s163, 24 [#allocation2]
        %3775 = vst [vmem:[%s3774] sm:$0xff] %v3772
        %3776 = vst [vmem:[%s3774 + $0x8] sm:$0xf] %v3769
        %v3777 = vld [vmem:[%s168] sm:$0xff]
        %v3778 = vld [vmem:[%s168 + $0x8] sm:$0xff]
        %s3779 = scalar_lea.vmem %s1, 84
        %v3780 = vld [vmem:[%s3779] sm:$0xf]
        %s3781 = scalar_lea.vmem %s1, 88
        %v3782 = vld [vmem:[%s3781] sm:$0xf]
        %v3785 = vcombine.high %v3777, %v3777
        %v3786 = vcombine.high %v3778, %v3778
        %3787 = vrot.lane.b32.xlu0 %v3777, 87
        %v3788 = vpop.permute.xlu0 %3787
        %3789 = vrot.lane.b32.xlu0 %v3785, 87
        %v3790 = vpop.permute.xlu0 %3789
        %3791 = vrot.lane.b32.xlu0 %v3778, 87
        %v3792 = vpop.permute.xlu0 %3791
        %3793 = vrot.lane.b32.xlu0 %v3786, 87
        %v3794 = vpop.permute.xlu0 %3793
        %v3795 = vsel %vm187, %v3788, %v3790
        %v3796 = vsel %vm187, %v3790, %v3792
        %v3797 = vsel %vm187, %v3792, %v3794
        %v3799 = vsel %vm191, %v3782, 0
        %v3801 = vsel %vm195, %v3795, 0
        %v3803 = vsel %vm195, %v3796, 0
        %v3805 = vsel %vm195, %v3797, 0
        %3807 = vmatprep.subr.mxu0 0.0
        %3808 = vmatpush1.msra.mxu0 0.0
        %3809 = vmatprep.subr.mxu0 0.0
        %3810 = vmatpush1.msra.mxu0 0.0
        %3811 = vmatprep.subr.mxu0 0.0
        %3812 = vmatpush1.msra.mxu0 0.0
        %3813 = vmatprep.subr.mxu0 0.0
        %3814 = vmatpush1.msra.mxu0 0.0
        %3815 = vmatprep.subr.mxu0 0.0
        %3816 = vmatpush1.msra.mxu0 0.0
        %3817 = vmatprep.subr.mxu0 0.0
        %3818 = vmatpush1.msra.mxu0 0.0
        %3819 = vmatprep.subr.mxu0 0.0
        %3820 = vmatpush1.msra.mxu0 0.0
        %3821 = vmatprep.subr.mxu0 0.0
        %3822 = vmatpush1.msra.mxu0 0.0
        %3823 = vmatprep.subr.mxu0 0.0
        %3824 = vmatpush1.msra.mxu0 0.0
        %3825 = vmatprep.subr.mxu0 0.0
        %3826 = vmatpush1.msra.mxu0 0.0
        %3827 = vmatprep.subr.mxu0 0.0
        %3828 = vmatpush1.msra.mxu0 0.0
        %3829 = vmatprep.subr.mxu0 0.0
        %3830 = vmatpush1.msra.mxu0 0.0
        %3831 = vmatprep.subr.mxu0 0.0
        %3832 = vmatpush1.msra.mxu0 0.0
        %3833 = vmatprep.subr.mxu0 0.0
        %3834 = vmatpush1.msra.mxu0 0.0
        %3835 = vmatprep.subr.mxu0 0.0
        %3836 = vmatpush1.msra.mxu0 0.0
        %3837 = vmatprep.subr.mxu0 %v3803
        %3838 = vmatpush1.msra.mxu0 %v3801
        %3839 = vmatprep.subr.mxu0 0.0
        %3840 = vmatpush2.msra.mxu0 0.0
        %3841 = vmatprep.subr.mxu0 0.0
        %3842 = vmatpush2.msra.mxu0 0.0
        %3843 = vmatprep.subr.mxu0 0.0
        %3844 = vmatpush2.msra.mxu0 0.0
        %3845 = vmatprep.subr.mxu0 0.0
        %3846 = vmatpush2.msra.mxu0 0.0
        %3847 = vmatprep.subr.mxu0 0.0
        %3848 = vmatpush2.msra.mxu0 0.0
        %3849 = vmatprep.subr.mxu0 0.0
        %3850 = vmatpush2.msra.mxu0 0.0
        %3851 = vmatprep.subr.mxu0 0.0
        %3852 = vmatpush2.msra.mxu0 0.0
        %3853 = vmatprep.subr.mxu0 0.0
        %3854 = vmatpush2.msra.mxu0 0.0
        %3855 = vmatprep.subr.mxu0 0.0
        %3856 = vmatpush2.msra.mxu0 0.0
        %3857 = vmatprep.subr.mxu0 0.0
        %3858 = vmatpush2.msra.mxu0 0.0
        %3859 = vmatprep.subr.mxu0 0.0
        %3860 = vmatpush2.msra.mxu0 0.0
        %3861 = vmatprep.subr.mxu0 0.0
        %3862 = vmatpush2.msra.mxu0 0.0
        %3863 = vmatprep.subr.mxu0 0.0
        %3864 = vmatpush2.msra.mxu0 0.0
        %3865 = vmatprep.subr.mxu0 0.0
        %3866 = vmatpush2.msra.mxu0 0.0
        %3867 = vmatprep.subr.mxu0 0.0
        %3868 = vmatpush2.msra.mxu0 0.0
        %3869 = vmatprep.subr.mxu0 0.0
        %3870 = vmatpush2.msra.mxu0 0.0
        %3871 = vmatprep.mubr.f32.mxu0 0.0
        %3872 = vmatmul.mubr.f32.gmra.mxu0 %v3799
        %v3873 = vpop.f32.mrf.mxu0
        %v3874 = vadd.f32 0.0, %v3873
        %v3875 = vpop.f32.mrf.mxu0
        %v3876 = vadd.f32 0.0, %v3875
        %3877 = vdwg.mxu0
        %3878 = vmatprep.subr.mxu0 0.0
        %3879 = vmatpush1.msra.mxu0 0.0
        %3880 = vmatprep.subr.mxu0 0.0
        %3881 = vmatpush1.msra.mxu0 0.0
        %3882 = vmatprep.subr.mxu0 0.0
        %3883 = vmatpush1.msra.mxu0 0.0
        %3884 = vmatprep.subr.mxu0 0.0
        %3885 = vmatpush1.msra.mxu0 0.0
        %3886 = vmatprep.subr.mxu0 0.0
        %3887 = vmatpush1.msra.mxu0 0.0
        %3888 = vmatprep.subr.mxu0 0.0
        %3889 = vmatpush1.msra.mxu0 0.0
        %3890 = vmatprep.subr.mxu0 0.0
        %3891 = vmatpush1.msra.mxu0 0.0
        %3892 = vmatprep.subr.mxu0 0.0
        %3893 = vmatpush1.msra.mxu0 0.0
        %3894 = vmatprep.subr.mxu0 0.0
        %3895 = vmatpush1.msra.mxu0 0.0
        %3896 = vmatprep.subr.mxu0 0.0
        %3897 = vmatpush1.msra.mxu0 0.0
        %3898 = vmatprep.subr.mxu0 0.0
        %3899 = vmatpush1.msra.mxu0 0.0
        %3900 = vmatprep.subr.mxu0 0.0
        %3901 = vmatpush1.msra.mxu0 0.0
        %3902 = vmatprep.subr.mxu0 0.0
        %3903 = vmatpush1.msra.mxu0 0.0
        %3904 = vmatprep.subr.mxu0 0.0
        %3905 = vmatpush1.msra.mxu0 0.0
        %3906 = vmatprep.subr.mxu0 0.0
        %3907 = vmatpush1.msra.mxu0 0.0
        %3908 = vmatprep.subr.mxu0 0.0
        %3909 = vmatpush1.msra.mxu0 %v3805
        %3910 = vmatprep.subr.mxu0 0.0
        %3911 = vmatpush2.msra.mxu0 0.0
        %3912 = vmatprep.subr.mxu0 0.0
        %3913 = vmatpush2.msra.mxu0 0.0
        %3914 = vmatprep.subr.mxu0 0.0
        %3915 = vmatpush2.msra.mxu0 0.0
        %3916 = vmatprep.subr.mxu0 0.0
        %3917 = vmatpush2.msra.mxu0 0.0
        %3918 = vmatprep.subr.mxu0 0.0
        %3919 = vmatpush2.msra.mxu0 0.0
        %3920 = vmatprep.subr.mxu0 0.0
        %3921 = vmatpush2.msra.mxu0 0.0
        %3922 = vmatprep.subr.mxu0 0.0
        %3923 = vmatpush2.msra.mxu0 0.0
        %3924 = vmatprep.subr.mxu0 0.0
        %3925 = vmatpush2.msra.mxu0 0.0
        %3926 = vmatprep.subr.mxu0 0.0
        %3927 = vmatpush2.msra.mxu0 0.0
        %3928 = vmatprep.subr.mxu0 0.0
        %3929 = vmatpush2.msra.mxu0 0.0
        %3930 = vmatprep.subr.mxu0 0.0
        %3931 = vmatpush2.msra.mxu0 0.0
        %3932 = vmatprep.subr.mxu0 0.0
        %3933 = vmatpush2.msra.mxu0 0.0
        %3934 = vmatprep.subr.mxu0 0.0
        %3935 = vmatpush2.msra.mxu0 0.0
        %3936 = vmatprep.subr.mxu0 0.0
        %3937 = vmatpush2.msra.mxu0 0.0
        %3938 = vmatprep.subr.mxu0 0.0
        %3939 = vmatpush2.msra.mxu0 0.0
        %3940 = vmatprep.subr.mxu0 0.0
        %3941 = vmatpush2.msra.mxu0 0.0
        %3942 = vmatprep.mubr.f32.mxu0 0.0
        %3943 = vmatmul.mubr.f32.gmra.mxu0 %v3799
        %v3944 = vpop.f32.mrf.mxu0
        %v3945 = vadd.f32 0.0, %v3944
        %v3946 = vpop.f32.mrf.mxu0
        %3947 = vdwg.mxu0
        %3948 = vrot.lane.b32.xlu0 %v3777, 86
        %v3949 = vpop.permute.xlu0 %3948
        %3950 = vrot.lane.b32.xlu0 %v3785, 86
        %v3951 = vpop.permute.xlu0 %3950
        %3952 = vrot.lane.b32.xlu0 %v3778, 86
        %v3953 = vpop.permute.xlu0 %3952
        %3954 = vrot.lane.b32.xlu0 %v3786, 86
        %v3955 = vpop.permute.xlu0 %3954
        %v3956 = vsel %vm351, %v3949, %v3951
        %v3957 = vsel %vm351, %v3951, %v3953
        %v3958 = vsel %vm351, %v3953, %v3955
        %v3960 = vsel %vm191, %v3780, 0
        %v3962 = vsel %vm195, %v3956, 0
        %v3964 = vsel %vm195, %v3957, 0
        %v3966 = vsel %vm195, %v3958, 0
        %3968 = vmatprep.subr.mxu0 0.0
        %3969 = vmatpush1.msra.mxu0 0.0
        %3970 = vmatprep.subr.mxu0 0.0
        %3971 = vmatpush1.msra.mxu0 0.0
        %3972 = vmatprep.subr.mxu0 0.0
        %3973 = vmatpush1.msra.mxu0 0.0
        %3974 = vmatprep.subr.mxu0 0.0
        %3975 = vmatpush1.msra.mxu0 0.0
        %3976 = vmatprep.subr.mxu0 0.0
        %3977 = vmatpush1.msra.mxu0 0.0
        %3978 = vmatprep.subr.mxu0 0.0
        %3979 = vmatpush1.msra.mxu0 0.0
        %3980 = vmatprep.subr.mxu0 0.0
        %3981 = vmatpush1.msra.mxu0 0.0
        %3982 = vmatprep.subr.mxu0 0.0
        %3983 = vmatpush1.msra.mxu0 0.0
        %3984 = vmatprep.subr.mxu0 0.0
        %3985 = vmatpush1.msra.mxu0 0.0
        %3986 = vmatprep.subr.mxu0 0.0
        %3987 = vmatpush1.msra.mxu0 0.0
        %3988 = vmatprep.subr.mxu0 0.0
        %3989 = vmatpush1.msra.mxu0 0.0
        %3990 = vmatprep.subr.mxu0 0.0
        %3991 = vmatpush1.msra.mxu0 0.0
        %3992 = vmatprep.subr.mxu0 0.0
        %3993 = vmatpush1.msra.mxu0 0.0
        %3994 = vmatprep.subr.mxu0 0.0
        %3995 = vmatpush1.msra.mxu0 0.0
        %3996 = vmatprep.subr.mxu0 0.0
        %3997 = vmatpush1.msra.mxu0 0.0
        %3998 = vmatprep.subr.mxu0 %v3964
        %3999 = vmatpush1.msra.mxu0 %v3962
        %4000 = vmatprep.subr.mxu0 0.0
        %4001 = vmatpush2.msra.mxu0 0.0
        %4002 = vmatprep.subr.mxu0 0.0
        %4003 = vmatpush2.msra.mxu0 0.0
        %4004 = vmatprep.subr.mxu0 0.0
        %4005 = vmatpush2.msra.mxu0 0.0
        %4006 = vmatprep.subr.mxu0 0.0
        %4007 = vmatpush2.msra.mxu0 0.0
        %4008 = vmatprep.subr.mxu0 0.0
        %4009 = vmatpush2.msra.mxu0 0.0
        %4010 = vmatprep.subr.mxu0 0.0
        %4011 = vmatpush2.msra.mxu0 0.0
        %4012 = vmatprep.subr.mxu0 0.0
        %4013 = vmatpush2.msra.mxu0 0.0
        %4014 = vmatprep.subr.mxu0 0.0
        %4015 = vmatpush2.msra.mxu0 0.0
        %4016 = vmatprep.subr.mxu0 0.0
        %4017 = vmatpush2.msra.mxu0 0.0
        %4018 = vmatprep.subr.mxu0 0.0
        %4019 = vmatpush2.msra.mxu0 0.0
        %4020 = vmatprep.subr.mxu0 0.0
        %4021 = vmatpush2.msra.mxu0 0.0
        %4022 = vmatprep.subr.mxu0 0.0
        %4023 = vmatpush2.msra.mxu0 0.0
        %4024 = vmatprep.subr.mxu0 0.0
        %4025 = vmatpush2.msra.mxu0 0.0
        %4026 = vmatprep.subr.mxu0 0.0
        %4027 = vmatpush2.msra.mxu0 0.0
        %4028 = vmatprep.subr.mxu0 0.0
        %4029 = vmatpush2.msra.mxu0 0.0
        %4030 = vmatprep.subr.mxu0 0.0
        %4031 = vmatpush2.msra.mxu0 0.0
        %4032 = vmatprep.mubr.f32.mxu0 0.0
        %4033 = vmatmul.mubr.f32.gmra.mxu0 %v3960
        %v4034 = vpop.f32.mrf.mxu0
        %v4035 = vadd.f32 %v3874, %v4034
        %v4036 = vpop.f32.mrf.mxu0
        %v4037 = vadd.f32 %v3876, %v4036
        %4038 = vdwg.mxu0
        %4039 = vmatprep.subr.mxu0 0.0
        %4040 = vmatpush1.msra.mxu0 0.0
        %4041 = vmatprep.subr.mxu0 0.0
        %4042 = vmatpush1.msra.mxu0 0.0
        %4043 = vmatprep.subr.mxu0 0.0
        %4044 = vmatpush1.msra.mxu0 0.0
        %4045 = vmatprep.subr.mxu0 0.0
        %4046 = vmatpush1.msra.mxu0 0.0
        %4047 = vmatprep.subr.mxu0 0.0
        %4048 = vmatpush1.msra.mxu0 0.0
        %4049 = vmatprep.subr.mxu0 0.0
        %4050 = vmatpush1.msra.mxu0 0.0
        %4051 = vmatprep.subr.mxu0 0.0
        %4052 = vmatpush1.msra.mxu0 0.0
        %4053 = vmatprep.subr.mxu0 0.0
        %4054 = vmatpush1.msra.mxu0 0.0
        %4055 = vmatprep.subr.mxu0 0.0
        %4056 = vmatpush1.msra.mxu0 0.0
        %4057 = vmatprep.subr.mxu0 0.0
        %4058 = vmatpush1.msra.mxu0 0.0
        %4059 = vmatprep.subr.mxu0 0.0
        %4060 = vmatpush1.msra.mxu0 0.0
        %4061 = vmatprep.subr.mxu0 0.0
        %4062 = vmatpush1.msra.mxu0 0.0
        %4063 = vmatprep.subr.mxu0 0.0
        %4064 = vmatpush1.msra.mxu0 0.0
        %4065 = vmatprep.subr.mxu0 0.0
        %4066 = vmatpush1.msra.mxu0 0.0
        %4067 = vmatprep.subr.mxu0 0.0
        %4068 = vmatpush1.msra.mxu0 0.0
        %4069 = vmatprep.subr.mxu0 0.0
        %4070 = vmatpush1.msra.mxu0 %v3966
        %4071 = vmatprep.subr.mxu0 0.0
        %4072 = vmatpush2.msra.mxu0 0.0
        %4073 = vmatprep.subr.mxu0 0.0
        %4074 = vmatpush2.msra.mxu0 0.0
        %4075 = vmatprep.subr.mxu0 0.0
        %4076 = vmatpush2.msra.mxu0 0.0
        %4077 = vmatprep.subr.mxu0 0.0
        %4078 = vmatpush2.msra.mxu0 0.0
        %4079 = vmatprep.subr.mxu0 0.0
        %4080 = vmatpush2.msra.mxu0 0.0
        %4081 = vmatprep.subr.mxu0 0.0
        %4082 = vmatpush2.msra.mxu0 0.0
        %4083 = vmatprep.subr.mxu0 0.0
        %4084 = vmatpush2.msra.mxu0 0.0
        %4085 = vmatprep.subr.mxu0 0.0
        %4086 = vmatpush2.msra.mxu0 0.0
        %4087 = vmatprep.subr.mxu0 0.0
        %4088 = vmatpush2.msra.mxu0 0.0
        %4089 = vmatprep.subr.mxu0 0.0
        %4090 = vmatpush2.msra.mxu0 0.0
        %4091 = vmatprep.subr.mxu0 0.0
        %4092 = vmatpush2.msra.mxu0 0.0
        %4093 = vmatprep.subr.mxu0 0.0
        %4094 = vmatpush2.msra.mxu0 0.0
        %4095 = vmatprep.subr.mxu0 0.0
        %4096 = vmatpush2.msra.mxu0 0.0
        %4097 = vmatprep.subr.mxu0 0.0
        %4098 = vmatpush2.msra.mxu0 0.0
        %4099 = vmatprep.subr.mxu0 0.0
        %4100 = vmatpush2.msra.mxu0 0.0
        %4101 = vmatprep.subr.mxu0 0.0
        %4102 = vmatpush2.msra.mxu0 0.0
        %4103 = vmatprep.mubr.f32.mxu0 0.0
        %4104 = vmatmul.mubr.f32.gmra.mxu0 %v3960
        %v4105 = vpop.f32.mrf.mxu0
        %v4106 = vadd.f32 %v3945, %v4105
        %v4107 = vpop.f32.mrf.mxu0
        %4108 = vdwg.mxu0
        %v4109 = vld [vmem:[%s168] sm:$0xff]
        %v4110 = vld [vmem:[%s168 + $0x8] sm:$0xff]
        %s4111 = scalar_lea.vmem %s1, 92
        %v4112 = vld [vmem:[%s4111] sm:$0xf]
        %v4115 = vcombine.high %v4109, %v4109
        %v4116 = vcombine.high %v4110, %v4110
        %4117 = vrot.lane.b32.xlu0 %v4109, 106
        %v4118 = vpop.permute.xlu0 %4117
        %4119 = vrot.lane.b32.xlu0 %v4115, 106
        %v4120 = vpop.permute.xlu0 %4119
        %4121 = vrot.lane.b32.xlu0 %v4110, 106
        %v4122 = vpop.permute.xlu0 %4121
        %4123 = vrot.lane.b32.xlu0 %v4116, 106
        %v4124 = vpop.permute.xlu0 %4123
        %v4125 = vsel %vm694, %v4118, %v4120
        %v4126 = vsel %vm694, %v4120, %v4122
        %v4127 = vsel %vm694, %v4122, %v4124
        %v4129 = vsel %vm191, %v4112, 0
        %v4131 = vsel %vm195, %v4125, 0
        %v4133 = vsel %vm195, %v4126, 0
        %v4135 = vsel %vm195, %v4127, 0
        %4137 = vmatprep.subr.mxu0 0.0
        %4138 = vmatpush1.msra.mxu0 0.0
        %4139 = vmatprep.subr.mxu0 0.0
        %4140 = vmatpush1.msra.mxu0 0.0
        %4141 = vmatprep.subr.mxu0 0.0
        %4142 = vmatpush1.msra.mxu0 0.0
        %4143 = vmatprep.subr.mxu0 0.0
        %4144 = vmatpush1.msra.mxu0 0.0
        %4145 = vmatprep.subr.mxu0 0.0
        %4146 = vmatpush1.msra.mxu0 0.0
        %4147 = vmatprep.subr.mxu0 0.0
        %4148 = vmatpush1.msra.mxu0 0.0
        %4149 = vmatprep.subr.mxu0 0.0
        %4150 = vmatpush1.msra.mxu0 0.0
        %4151 = vmatprep.subr.mxu0 0.0
        %4152 = vmatpush1.msra.mxu0 0.0
        %4153 = vmatprep.subr.mxu0 0.0
        %4154 = vmatpush1.msra.mxu0 0.0
        %4155 = vmatprep.subr.mxu0 0.0
        %4156 = vmatpush1.msra.mxu0 0.0
        %4157 = vmatprep.subr.mxu0 0.0
        %4158 = vmatpush1.msra.mxu0 0.0
        %4159 = vmatprep.subr.mxu0 0.0
        %4160 = vmatpush1.msra.mxu0 0.0
        %4161 = vmatprep.subr.mxu0 0.0
        %4162 = vmatpush1.msra.mxu0 0.0
        %4163 = vmatprep.subr.mxu0 0.0
        %4164 = vmatpush1.msra.mxu0 0.0
        %4165 = vmatprep.subr.mxu0 0.0
        %4166 = vmatpush1.msra.mxu0 0.0
        %4167 = vmatprep.subr.mxu0 %v4133
        %4168 = vmatpush1.msra.mxu0 %v4131
        %4169 = vmatprep.subr.mxu0 0.0
        %4170 = vmatpush2.msra.mxu0 0.0
        %4171 = vmatprep.subr.mxu0 0.0
        %4172 = vmatpush2.msra.mxu0 0.0
        %4173 = vmatprep.subr.mxu0 0.0
        %4174 = vmatpush2.msra.mxu0 0.0
        %4175 = vmatprep.subr.mxu0 0.0
        %4176 = vmatpush2.msra.mxu0 0.0
        %4177 = vmatprep.subr.mxu0 0.0
        %4178 = vmatpush2.msra.mxu0 0.0
        %4179 = vmatprep.subr.mxu0 0.0
        %4180 = vmatpush2.msra.mxu0 0.0
        %4181 = vmatprep.subr.mxu0 0.0
        %4182 = vmatpush2.msra.mxu0 0.0
        %4183 = vmatprep.subr.mxu0 0.0
        %4184 = vmatpush2.msra.mxu0 0.0
        %4185 = vmatprep.subr.mxu0 0.0
        %4186 = vmatpush2.msra.mxu0 0.0
        %4187 = vmatprep.subr.mxu0 0.0
        %4188 = vmatpush2.msra.mxu0 0.0
        %4189 = vmatprep.subr.mxu0 0.0
        %4190 = vmatpush2.msra.mxu0 0.0
        %4191 = vmatprep.subr.mxu0 0.0
        %4192 = vmatpush2.msra.mxu0 0.0
        %4193 = vmatprep.subr.mxu0 0.0
        %4194 = vmatpush2.msra.mxu0 0.0
        %4195 = vmatprep.subr.mxu0 0.0
        %4196 = vmatpush2.msra.mxu0 0.0
        %4197 = vmatprep.subr.mxu0 0.0
        %4198 = vmatpush2.msra.mxu0 0.0
        %4199 = vmatprep.subr.mxu0 0.0
        %4200 = vmatpush2.msra.mxu0 0.0
        %4201 = vmatprep.mubr.f32.mxu0 0.0
        %4202 = vmatmul.mubr.f32.gmra.mxu0 %v4129
        %v4203 = vpop.f32.mrf.mxu0
        %v4204 = vadd.f32 0.0, %v4203
        %v4205 = vpop.f32.mrf.mxu0
        %v4206 = vadd.f32 0.0, %v4205
        %4207 = vdwg.mxu0
        %4208 = vmatprep.subr.mxu0 0.0
        %4209 = vmatpush1.msra.mxu0 0.0
        %4210 = vmatprep.subr.mxu0 0.0
        %4211 = vmatpush1.msra.mxu0 0.0
        %4212 = vmatprep.subr.mxu0 0.0
        %4213 = vmatpush1.msra.mxu0 0.0
        %4214 = vmatprep.subr.mxu0 0.0
        %4215 = vmatpush1.msra.mxu0 0.0
        %4216 = vmatprep.subr.mxu0 0.0
        %4217 = vmatpush1.msra.mxu0 0.0
        %4218 = vmatprep.subr.mxu0 0.0
        %4219 = vmatpush1.msra.mxu0 0.0
        %4220 = vmatprep.subr.mxu0 0.0
        %4221 = vmatpush1.msra.mxu0 0.0
        %4222 = vmatprep.subr.mxu0 0.0
        %4223 = vmatpush1.msra.mxu0 0.0
        %4224 = vmatprep.subr.mxu0 0.0
        %4225 = vmatpush1.msra.mxu0 0.0
        %4226 = vmatprep.subr.mxu0 0.0
        %4227 = vmatpush1.msra.mxu0 0.0
        %4228 = vmatprep.subr.mxu0 0.0
        %4229 = vmatpush1.msra.mxu0 0.0
        %4230 = vmatprep.subr.mxu0 0.0
        %4231 = vmatpush1.msra.mxu0 0.0
        %4232 = vmatprep.subr.mxu0 0.0
        %4233 = vmatpush1.msra.mxu0 0.0
        %4234 = vmatprep.subr.mxu0 0.0
        %4235 = vmatpush1.msra.mxu0 0.0
        %4236 = vmatprep.subr.mxu0 0.0
        %4237 = vmatpush1.msra.mxu0 0.0
        %4238 = vmatprep.subr.mxu0 0.0
        %4239 = vmatpush1.msra.mxu0 %v4135
        %4240 = vmatprep.subr.mxu0 0.0
        %4241 = vmatpush2.msra.mxu0 0.0
        %4242 = vmatprep.subr.mxu0 0.0
        %4243 = vmatpush2.msra.mxu0 0.0
        %4244 = vmatprep.subr.mxu0 0.0
        %4245 = vmatpush2.msra.mxu0 0.0
        %4246 = vmatprep.subr.mxu0 0.0
        %4247 = vmatpush2.msra.mxu0 0.0
        %4248 = vmatprep.subr.mxu0 0.0
        %4249 = vmatpush2.msra.mxu0 0.0
        %4250 = vmatprep.subr.mxu0 0.0
        %4251 = vmatpush2.msra.mxu0 0.0
        %4252 = vmatprep.subr.mxu0 0.0
        %4253 = vmatpush2.msra.mxu0 0.0
        %4254 = vmatprep.subr.mxu0 0.0
        %4255 = vmatpush2.msra.mxu0 0.0
        %4256 = vmatprep.subr.mxu0 0.0
        %4257 = vmatpush2.msra.mxu0 0.0
        %4258 = vmatprep.subr.mxu0 0.0
        %4259 = vmatpush2.msra.mxu0 0.0
        %4260 = vmatprep.subr.mxu0 0.0
        %4261 = vmatpush2.msra.mxu0 0.0
        %4262 = vmatprep.subr.mxu0 0.0
        %4263 = vmatpush2.msra.mxu0 0.0
        %4264 = vmatprep.subr.mxu0 0.0
        %4265 = vmatpush2.msra.mxu0 0.0
        %4266 = vmatprep.subr.mxu0 0.0
        %4267 = vmatpush2.msra.mxu0 0.0
        %4268 = vmatprep.subr.mxu0 0.0
        %4269 = vmatpush2.msra.mxu0 0.0
        %4270 = vmatprep.subr.mxu0 0.0
        %4271 = vmatpush2.msra.mxu0 0.0
        %4272 = vmatprep.mubr.f32.mxu0 0.0
        %4273 = vmatmul.mubr.f32.gmra.mxu0 %v4129
        %v4274 = vpop.f32.mrf.mxu0
        %v4275 = vadd.f32 0.0, %v4274
        %v4276 = vpop.f32.mrf.mxu0
        %4277 = vdwg.mxu0
        %v4278 = vadd.f32 %v4035, %v4204
        %v4279 = vadd.f32 %v4037, %v4206
        %v4280 = vadd.f32 %v4106, %v4275
        %v4281 = vld [vmem:[%s168] sm:$0xff]
        %v4282 = vld [vmem:[%s168 + $0x8] sm:$0xff]
        %s4283 = scalar_lea.vmem %s1, 96
        %v4284 = vld [vmem:[%s4283] sm:$0xf]
        %v4287 = vcombine.high %v4281, %v4281
        %v4288 = vcombine.high %v4282, %v4282
        %4289 = vrot.lane.b32.xlu0 %v4281, 107
        %v4290 = vpop.permute.xlu0 %4289
        %4291 = vrot.lane.b32.xlu0 %v4287, 107
        %v4292 = vpop.permute.xlu0 %4291
        %4293 = vrot.lane.b32.xlu0 %v4282, 107
        %v4294 = vpop.permute.xlu0 %4293
        %4295 = vrot.lane.b32.xlu0 %v4288, 107
        %v4296 = vpop.permute.xlu0 %4295
        %v4297 = vsel %vm867, %v4290, %v4292
        %v4298 = vsel %vm867, %v4292, %v4294
        %v4299 = vsel %vm867, %v4294, %v4296
        %v4301 = vsel %vm191, %v4284, 0
        %v4303 = vsel %vm195, %v4297, 0
        %v4305 = vsel %vm195, %v4298, 0
        %v4307 = vsel %vm195, %v4299, 0
        %4309 = vmatprep.subr.mxu0 0.0
        %4310 = vmatpush1.msra.mxu0 0.0
        %4311 = vmatprep.subr.mxu0 0.0
        %4312 = vmatpush1.msra.mxu0 0.0
        %4313 = vmatprep.subr.mxu0 0.0
        %4314 = vmatpush1.msra.mxu0 0.0
        %4315 = vmatprep.subr.mxu0 0.0
        %4316 = vmatpush1.msra.mxu0 0.0
        %4317 = vmatprep.subr.mxu0 0.0
        %4318 = vmatpush1.msra.mxu0 0.0
        %4319 = vmatprep.subr.mxu0 0.0
        %4320 = vmatpush1.msra.mxu0 0.0
        %4321 = vmatprep.subr.mxu0 0.0
        %4322 = vmatpush1.msra.mxu0 0.0
        %4323 = vmatprep.subr.mxu0 0.0
        %4324 = vmatpush1.msra.mxu0 0.0
        %4325 = vmatprep.subr.mxu0 0.0
        %4326 = vmatpush1.msra.mxu0 0.0
        %4327 = vmatprep.subr.mxu0 0.0
        %4328 = vmatpush1.msra.mxu0 0.0
        %4329 = vmatprep.subr.mxu0 0.0
        %4330 = vmatpush1.msra.mxu0 0.0
        %4331 = vmatprep.subr.mxu0 0.0
        %4332 = vmatpush1.msra.mxu0 0.0
        %4333 = vmatprep.subr.mxu0 0.0
        %4334 = vmatpush1.msra.mxu0 0.0
        %4335 = vmatprep.subr.mxu0 0.0
        %4336 = vmatpush1.msra.mxu0 0.0
        %4337 = vmatprep.subr.mxu0 0.0
        %4338 = vmatpush1.msra.mxu0 0.0
        %4339 = vmatprep.subr.mxu0 %v4305
        %4340 = vmatpush1.msra.mxu0 %v4303
        %4341 = vmatprep.subr.mxu0 0.0
        %4342 = vmatpush2.msra.mxu0 0.0
        %4343 = vmatprep.subr.mxu0 0.0
        %4344 = vmatpush2.msra.mxu0 0.0
        %4345 = vmatprep.subr.mxu0 0.0
        %4346 = vmatpush2.msra.mxu0 0.0
        %4347 = vmatprep.subr.mxu0 0.0
        %4348 = vmatpush2.msra.mxu0 0.0
        %4349 = vmatprep.subr.mxu0 0.0
        %4350 = vmatpush2.msra.mxu0 0.0
        %4351 = vmatprep.subr.mxu0 0.0
        %4352 = vmatpush2.msra.mxu0 0.0
        %4353 = vmatprep.subr.mxu0 0.0
        %4354 = vmatpush2.msra.mxu0 0.0
        %4355 = vmatprep.subr.mxu0 0.0
        %4356 = vmatpush2.msra.mxu0 0.0
        %4357 = vmatprep.subr.mxu0 0.0
        %4358 = vmatpush2.msra.mxu0 0.0
        %4359 = vmatprep.subr.mxu0 0.0
        %4360 = vmatpush2.msra.mxu0 0.0
        %4361 = vmatprep.subr.mxu0 0.0
        %4362 = vmatpush2.msra.mxu0 0.0
        %4363 = vmatprep.subr.mxu0 0.0
        %4364 = vmatpush2.msra.mxu0 0.0
        %4365 = vmatprep.subr.mxu0 0.0
        %4366 = vmatpush2.msra.mxu0 0.0
        %4367 = vmatprep.subr.mxu0 0.0
        %4368 = vmatpush2.msra.mxu0 0.0
        %4369 = vmatprep.subr.mxu0 0.0
        %4370 = vmatpush2.msra.mxu0 0.0
        %4371 = vmatprep.subr.mxu0 0.0
        %4372 = vmatpush2.msra.mxu0 0.0
        %4373 = vmatprep.mubr.f32.mxu0 0.0
        %4374 = vmatmul.mubr.f32.gmra.mxu0 %v4301
        %v4375 = vpop.f32.mrf.mxu0
        %v4376 = vadd.f32 0.0, %v4375
        %v4377 = vpop.f32.mrf.mxu0
        %v4378 = vadd.f32 0.0, %v4377
        %4379 = vdwg.mxu0
        %4380 = vmatprep.subr.mxu0 0.0
        %4381 = vmatpush1.msra.mxu0 0.0
        %4382 = vmatprep.subr.mxu0 0.0
        %4383 = vmatpush1.msra.mxu0 0.0
        %4384 = vmatprep.subr.mxu0 0.0
        %4385 = vmatpush1.msra.mxu0 0.0
        %4386 = vmatprep.subr.mxu0 0.0
        %4387 = vmatpush1.msra.mxu0 0.0
        %4388 = vmatprep.subr.mxu0 0.0
        %4389 = vmatpush1.msra.mxu0 0.0
        %4390 = vmatprep.subr.mxu0 0.0
        %4391 = vmatpush1.msra.mxu0 0.0
        %4392 = vmatprep.subr.mxu0 0.0
        %4393 = vmatpush1.msra.mxu0 0.0
        %4394 = vmatprep.subr.mxu0 0.0
        %4395 = vmatpush1.msra.mxu0 0.0
        %4396 = vmatprep.subr.mxu0 0.0
        %4397 = vmatpush1.msra.mxu0 0.0
        %4398 = vmatprep.subr.mxu0 0.0
        %4399 = vmatpush1.msra.mxu0 0.0
        %4400 = vmatprep.subr.mxu0 0.0
        %4401 = vmatpush1.msra.mxu0 0.0
        %4402 = vmatprep.subr.mxu0 0.0
        %4403 = vmatpush1.msra.mxu0 0.0
        %4404 = vmatprep.subr.mxu0 0.0
        %4405 = vmatpush1.msra.mxu0 0.0
        %4406 = vmatprep.subr.mxu0 0.0
        %4407 = vmatpush1.msra.mxu0 0.0
        %4408 = vmatprep.subr.mxu0 0.0
        %4409 = vmatpush1.msra.mxu0 0.0
        %4410 = vmatprep.subr.mxu0 0.0
        %4411 = vmatpush1.msra.mxu0 %v4307
        %4412 = vmatprep.subr.mxu0 0.0
        %4413 = vmatpush2.msra.mxu0 0.0
        %4414 = vmatprep.subr.mxu0 0.0
        %4415 = vmatpush2.msra.mxu0 0.0
        %4416 = vmatprep.subr.mxu0 0.0
        %4417 = vmatpush2.msra.mxu0 0.0
        %4418 = vmatprep.subr.mxu0 0.0
        %4419 = vmatpush2.msra.mxu0 0.0
        %4420 = vmatprep.subr.mxu0 0.0
        %4421 = vmatpush2.msra.mxu0 0.0
        %4422 = vmatprep.subr.mxu0 0.0
        %4423 = vmatpush2.msra.mxu0 0.0
        %4424 = vmatprep.subr.mxu0 0.0
        %4425 = vmatpush2.msra.mxu0 0.0
        %4426 = vmatprep.subr.mxu0 0.0
        %4427 = vmatpush2.msra.mxu0 0.0
        %4428 = vmatprep.subr.mxu0 0.0
        %4429 = vmatpush2.msra.mxu0 0.0
        %4430 = vmatprep.subr.mxu0 0.0
        %4431 = vmatpush2.msra.mxu0 0.0
        %4432 = vmatprep.subr.mxu0 0.0
        %4433 = vmatpush2.msra.mxu0 0.0
        %4434 = vmatprep.subr.mxu0 0.0
        %4435 = vmatpush2.msra.mxu0 0.0
        %4436 = vmatprep.subr.mxu0 0.0
        %4437 = vmatpush2.msra.mxu0 0.0
        %4438 = vmatprep.subr.mxu0 0.0
        %4439 = vmatpush2.msra.mxu0 0.0
        %4440 = vmatprep.subr.mxu0 0.0
        %4441 = vmatpush2.msra.mxu0 0.0
        %4442 = vmatprep.subr.mxu0 0.0
        %4443 = vmatpush2.msra.mxu0 0.0
        %4444 = vmatprep.mubr.f32.mxu0 0.0
        %4445 = vmatmul.mubr.f32.gmra.mxu0 %v4301
        %v4446 = vpop.f32.mrf.mxu0
        %v4447 = vadd.f32 0.0, %v4446
        %v4448 = vpop.f32.mrf.mxu0
        %4449 = vdwg.mxu0
        %v4450 = vadd.f32 %v4278, %v4376
        %v4451 = vadd.f32 %v4279, %v4378
        %v4452 = vadd.f32 %v4280, %v4447
        %v4453 = vadd.f32 %v4450, %v1706
        %v4454 = vadd.f32 %v4451, %v1706
        %v4455 = vadd.f32 %v4452, %v1706
        %v4458 = vcombine.low %v4453, %v4454
        %s4460 = scalar_lea.vmem %s163, 36 [#allocation2]
        %4461 = vst [vmem:[%s4460] sm:$0xff] %v4458
        %4462 = vst [vmem:[%s4460 + $0x8] sm:$0xf] %v4455
        %s4463 = sand.u32 %s93, 1
        %s4464 = scalar_lea.sflag [#allocation3], %s4463
        %s4465 = sand.u32 %s93, 1
        %s4466 = smul.addr %s4465, 48
        %s4467 = scalar_lea.vmem [#allocation2], %s4466
        // Predicated region
        $region33: #{tpu_custom_call.1} parent=31 // pred_check
          %p4468 = pneg %p103
        $region34: #{tpu_custom_call.1} parent=31 // pred_check_branch
          %4470 = sbr.rel (%p4468) target = $region36
        $region35: #{tpu_custom_call.1} parent=31 // pred_region
          %s4472 = ssub.s32 768, 768
          %4473 = vsyncadd %s4464, %s4472
          %s4474 = smul.addr %s17, 12
          %s4475 = smul.addr %s4474, 64
          %s4476 = scalar_lea.hbm %s3, %s4475
          %s4477 = sshll.u32 %s4467, 4
          %s4478 = int_to_ptr.vmem [resolvable:$true] %s4477
          %4483 = dma.vmem_to_hbm [thread:$0]  %s4478, 768, %s4476, %s4464, 192, 192, 12
        $region36: #{tpu_custom_call.1} parent=31 // pred_fallthru
          _
      $region32: #{tpu_custom_call.1} parent=5 // pred_fallthru
        _
      %p4484 = scmp.le.s32.totalorder 2, %s12
      // Predicated region
      $region37: #{tpu_custom_call.1} parent=5 // pred_check
        %p4485 = pneg %p4484
      $region38: #{tpu_custom_call.1} parent=5 // pred_check_branch
        %4487 = sbr.rel (%p4485) target = $region40
      $region39: #{tpu_custom_call.1} parent=5 // pred_region
        %s4488 = ssub.s32 %s12, 2
        // Predicated region
        $region41: #{tpu_custom_call.1} parent=39 // pred_check
          %p4489 = pneg %p109
        $region42: #{tpu_custom_call.1} parent=39 // pred_check_branch
          %4491 = sbr.rel (%p4489) target = $region44
        $region43: #{tpu_custom_call.1} parent=39 // pred_region
          %s4492 = sand.u32 %s94, 1
          %s4493 = scalar_lea.sflag [#allocation3], %s4492
          %s4494 = sand.u32 %s94, 1
          %s4495 = smul.addr %s4494, 48
          %s4496 = scalar_lea.vmem [#allocation2], %s4495
          %4497 = dma.done %s4493, 768
        $region44: #{tpu_custom_call.1} parent=39 // pred_fallthru
          _
      $region40: #{tpu_custom_call.1} parent=5 // pred_fallthru
        _
    $region6: #{tpu_custom_call.1} parent=1 // loop_footer
      %s16 = sadd.s32 1, %s12
    $region7: #{tpu_custom_call.1} parent=1 // loop_footer_branch
      %11 = sbr.rel target = $region3
    $region8: #{tpu_custom_call.1} parent=1 // loop_exit
      _
    %4498 = vsyncpa [#allocation3], 1
    %s4499 = scalar_lea.sflag [#allocation3], 1
    %4500 = vsyncpa %s4499, 1

</llo_original>
